<compile_context>
chip_gen: v6e
topology: v6e:2x2x1
jax: 0.10.0
libtpu: 0.0.40
codegen_flags: <defaults>
</compile_context>

<pallas_src>
import functools
import numpy as np

import jax
import jax.numpy as jnp
from jax import lax
from jax.experimental import pallas as pl
from jax.experimental.pallas import tpu as pltpu


# -----------------------------------------------------------------------------
# Fused 3-layer conv-chain kernel (one grid step = fb frames, end to end).
# -----------------------------------------------------------------------------
def _fused_conv3_kernel(x_ref,
                        s1_ref, w1_ref, b1_ref,
                        s2_ref, w2_ref, b2_ref,
                        s3_ref, w3_ref, b3_ref,
                        o_ref, *, acts):
    """x_ref : (fb*H0, W0*C0)                bf16 channel-flattened frame rows
       si    : (3, fb*Hout_i, fb*Hin_i)      bf16 0/1 block-diag row-tap select
                                             (row halo + stride + upsample)
       wi    : (3, Win_i*Cin_i, Wout_i*Cout_i) bf16 banded width-tap weights
                                             (col halo + stride + upsample)
       bi    : (1, Wout_i*Cout_i)            f32
       o_ref : (fb*Hout_3, Wout_3*Cout_3)    bf16
    """
    x = x_ref[...]
    layer_refs = ((s1_ref, w1_ref, b1_ref),
                  (s2_ref, w2_ref, b2_ref),
                  (s3_ref, w3_ref, b3_ref))
    for (s_ref, w_ref, b_ref), act in zip(layer_refs, acts):
        acc = None
        for di in range(3):
            # Exact 0/1 row selection as a matmul: M stays at fb*H_out and
            # stride-2 / 2x-upsample / halo rows never reach the conv matmul.
            rows = jnp.dot(s_ref[di], x, preferred_element_type=jnp.float32)
            part = jnp.dot(rows.astype(jnp.bfloat16), w_ref[di],
                           preferred_element_type=jnp.float32)
            acc = part if acc is None else acc + part
        acc = acc + b_ref[...]                    # one (1,N) broadcast per layer
        if act:
            acc = acc * jax.nn.sigmoid(acc)       # f32 epilogue (v5e-safe)
        x = acc.astype(jnp.bfloat16)              # bf16 inter-layer storage
    o_ref[...] = x


def _pick_fb(n):
    # Prefer >=2 grid steps (keeps both v7x TensorCores fed) with the largest
    # frame block; cap fb so the fb^2-sized row-selection matrices stay tiny.
    for fb in (8, 4, 2):
        if n % fb == 0 and n // fb >= 2:
            return fb
    return 1


def _conv_out_size(size, stride, upsample):
    # 3x3 conv, pad=1; optional 2x nearest-neighbor upsample applied first.
    return 2 * size if upsample else (size - 1) // stride + 1


class PallasFusedConvChain:
    """Three fused 3x3 convs (pad=1) in one pallas_call on channel-last frames.

    Each layer may have stride in {1,2}, an optional preceding 2x nearest
    upsample (folded into its weights), and an optional SiLU."""

    def __init__(self, layers, acts):
        self.layers = [dict(w=np.asarray(l["w"], np.float32),
                            b=np.asarray(l["b"], np.float32),
                            stride=int(l["stride"]),
                            upsample=bool(l["upsample"])) for l in layers]
        self.acts = tuple(bool(a) for a in acts)
        assert len(self.layers) == 3 and len(self.acts) == 3
        for l in self.layers:
            assert not (l["upsample"] and l["stride"] != 1)
        self._cache = {}

    # ---- host-side packing ---------------------------------------------------
    def _pack(self, h0, w0, fb):
        key = (h0, w0, fb)
        if key in self._cache:
            return self._cache[key]
        params, h, w = [], h0, w0
        out_hwc = None
        for lyr in self.layers:
            wgt, bias = lyr["w"], lyr["b"]
            stride, ups = lyr["stride"], lyr["upsample"]
            cout, cin = int(wgt.shape[0]), int(wgt.shape[1])
            h_o = _conv_out_size(h, stride, ups)
            w_o = _conv_out_size(w, stride, ups)
            eff_w, eff_h = (2 * w, 2 * h) if ups else (w, h)

            # Banded width-tap weights over K = w*cin: out-of-range taps read
            # zero padding and are simply omitted (no column halo needed);
            # stride-2 and 2x-upsample column mapping are folded in here.
            banded = np.zeros((3, w * cin, w_o * cout), np.float32)
            for di in range(3):
                for dj in range(3):
                    blk = wgt[:, :, di, dj].T                     # (cin, cout)
                    for j in range(w_o):
                        q = (j if ups else stride * j) + dj - 1
                        if not (0 <= q < eff_w):
                            continue
                        src = q // 2 if ups else q
                        banded[di, src * cin:(src + 1) * cin,
                               j * cout:(j + 1) * cout] += blk

            bias_p = np.zeros((1, w_o * cout), np.float32)
            for j in range(w_o):
                bias_p[0, j * cout:(j + 1) * cout] = bias

            # Block-diagonal 0/1 row-tap selection (fb frames per block).
            sel = np.zeros((3, fb * h_o, fb * h), np.float32)
            for di in range(3):
                for f in range(fb):
                    for r in range(h_o):
                        p = (r if ups else stride * r) + di - 1
                        if not (0 <= p < eff_h):
                            continue
                        src = p // 2 if ups else p
                        sel[di, f * h_o + r, f * h + src] = 1.0

            params += [jnp.asarray(sel, jnp.bfloat16),
                       jnp.asarray(banded, jnp.bfloat16),
                       jnp.asarray(bias_p, jnp.float32)]
            h, w = h_o, w_o
            out_hwc = (h_o, w_o, cout)
        packed = (tuple(params), out_hwc)
        self._cache[key] = packed
        return packed

    # ---- pallas_call ---------------------------------------------------------
    def __call__(self, x_nhwc):
        n, h, w, c = x_nhwc.shape
        assert c == int(self.layers[0]["w"].shape[1]), (c, self.layers[0]["w"].shape)

        h_o, w_o = h, w
        for lyr in self.layers:
            h_o = _conv_out_size(h_o, lyr["stride"], lyr["upsample"])
            w_o = _conv_out_size(w_o, lyr["stride"], lyr["upsample"])

        fb = _pick_fb(n)
        if (fb * h) % 8 != 0 or (fb * h_o) % 8 != 0:
            fb = n  # full-extent row block (always BlockSpec-legal)

        params, (h_o, w_o, c_o) = self._pack(h, w, fb)
        k_in, n_out = w * c, w_o * c_o

        # Channel-flattened (frame-major rows): free reshape + one bf16 cast;
        # this is exactly the layout the kernel consumes and produces.
        x_flat = x_nhwc.reshape(n * h, k_in).astype(jnp.bfloat16)

        def resident(arr):
            nd = arr.ndim
            return pl.BlockSpec(arr.shape, lambda i, _nd=nd: (0,) * _nd)

        out = pl.pallas_call(
            functools.partial(_fused_conv3_kernel, acts=self.acts),
            out_shape=jax.ShapeDtypeStruct((n * h_o, n_out), jnp.bfloat16),
            grid=(n // fb,),
            in_specs=[pl.BlockSpec((fb * h, k_in), lambda i: (i, 0))]
                     + [resident(p) for p in params],
            out_specs=pl.BlockSpec((fb * h_o, n_out), lambda i: (i, 0)),
            compiler_params=pltpu.CompilerParams(
                dimension_semantics=("parallel",)),
        )(x_flat, *params)

        # Only the API-boundary unflatten remains (a free reshape).
        return out.reshape(n, h_o, w_o, c_o)


# -----------------------------------------------------------------------------
# Minimal VideoAutoencoderKL-style model (frame-wise 2D VAE).
# -----------------------------------------------------------------------------
def _init_conv_params(key, cout, cin, kh=3, kw=3):
    wkey, bkey = jax.random.split(key)
    fan_in = cin * kh * kw
    scale = 1.0 / np.sqrt(fan_in)
    w = jax.random.uniform(wkey, (cout, cin, kh, kw), jnp.float32, -scale, scale)
    b = jax.random.uniform(bkey, (cout,), jnp.float32, -scale, scale)
    return np.asarray(w), np.asarray(b)


class VideoAutoencoderKL:
    """Tiny deterministic stand-in: conv(silu) -> conv stride2 (silu) ->
    conv-to-latent (scaling folded); decoder mirrors it with the 2x nearest
    upsample folded into its middle conv."""

    def __init__(self, model_id="vae", in_channels=3, hidden_channels=32,
                 latent_channels=4, scaling_factor=0.18215, **kwargs):
        del model_id, kwargs
        self.in_channels = int(in_channels)
        self.hidden = int(hidden_channels)
        self.latent = int(latent_channels)
        self.scaling_factor = float(scaling_factor)

        key = jax.random.PRNGKey(0)
        ks = jax.random.split(key, 6)
        ew1, eb1 = _init_conv_params(ks[0], self.hidden, self.in_channels)
        ew2, eb2 = _init_conv_params(ks[1], self.hidden, self.hidden)
        ew3, eb3 = _init_conv_params(ks[2], 2 * self.latent, self.hidden)
        dw1, db1 = _init_conv_params(ks[3], self.hidden, self.latent)
        dw2, db2 = _init_conv_params(ks[4], self.hidden, self.hidden)
        dw3, db3 = _init_conv_params(ks[5], self.in_channels, self.hidden)

        sf = self.scaling_factor
        # encode() returns the deterministic mean scaled by scaling_factor, so
        # only the mean channels of the moments conv are materialized and the
        # scale is folded into its weights.
        # TODO(synk): the reference AEModel samples a DiagonalGaussian here.
        enc3_w = ew3[: self.latent] * sf
        enc3_b = eb3[: self.latent] * sf
        # decode() divides by scaling_factor first; fold 1/sf into dec1 weights.
        dec1_w = dw1 * (1.0 / sf)

        self._acts = (True, True, False)
        self._enc_layers = [
            dict(w=ew1, b=eb1, stride=1, upsample=False),
            dict(w=ew2, b=eb2, stride=2, upsample=False),
            dict(w=enc3_w, b=enc3_b, stride=1, upsample=False),
        ]
        self._dec_layers = [
            dict(w=dec1_w, b=db1, stride=1, upsample=False),
            dict(w=dw2, b=db2, stride=1, upsample=True),   # 2x NN upsample folded
            dict(w=dw3, b=db3, stride=1, upsample=False),
        ]
        self.encoder = PallasFusedConvChain(self._enc_layers, self._acts)
        self.decoder = PallasFusedConvChain(self._dec_layers, self._acts)

    # ----- video <-> frame folding (B,C,T,H,W) <-> (B*T,H,W,C) -----
    @staticmethod
    def _fold(x_bcthw):
        b, c, t, h, w = x_bcthw.shape
        x = jnp.transpose(x_bcthw, (0, 2, 3, 4, 1))        # B,T,H,W,C
        return x.reshape(b * t, h, w, c), (b, t)

    @staticmethod
    def _unfold(x_nhwc, bt):
        b, t = bt
        n, h, w, c = x_nhwc.shape
        return jnp.transpose(x_nhwc.reshape(b, t, h, w, c), (0, 4, 1, 2, 3))

    def encode(self, x_bcthw):
        h, bt = self._fold(x_bcthw)
        z = self.encoder(h).astype(jnp.float32)
        return self._unfold(z, bt)

    def decode(self, z_bcthw):
        h, bt = self._fold(z_bcthw)
        x = self.decoder(h).astype(jnp.float32)
        return self._unfold(x, bt)


# TODO(synk): VideoAutoencoder3D / CausalVAE / CogVideoX variants not ported;
# all ids map to the 2D frame-wise VAE stand-in.
AE_MODEL_MAPPINGS = {
    "vae": VideoAutoencoderKL,
    "vae3D": VideoAutoencoderKL,
    "casualvae": VideoAutoencoderKL,
    "cogvideox": VideoAutoencoderKL,
}


class AEConfig:
    def __init__(self, **kwargs):
        self._d = dict(kwargs)
        for k, v in kwargs.items():
            setattr(self, k, v)

    def to_dict(self):
        return dict(self._d)


class AEModel:
    def __init__(self, config):
        self.config = config
        self.model = AE_MODEL_MAPPINGS[config.model_id](**config.to_dict())

    def get_model(self):
        return self.model

    def encode(self, x):
        return self.model.encode(x)

    def decode(self, x):
        return self.model.decode(x)

    def forward(self, x):
        raise NotImplementedError("forward function is not implemented")

    __call__ = forward


# -----------------------------------------------------------------------------
# Pure-XLA reference (same folded weights, same bf16 quantization points).
# -----------------------------------------------------------------------------
def _ref_chain(x_nhwc, layers, acts):
    h = x_nhwc.astype(jnp.bfloat16).astype(jnp.float32)
    for lyr, act in zip(layers, acts):
        if lyr["upsample"]:
            h = jnp.repeat(jnp.repeat(h, 2, axis=1), 2, axis=2)
        wq = jnp.asarray(lyr["w"]).astype(jnp.bfloat16).astype(jnp.float32)
        wq = jnp.transpose(wq, (2, 3, 1, 0))               # OIHW -> HWIO
        y = lax.conv_general_dilated(
            h, wq, window_strides=(lyr["stride"], lyr["stride"]),
            padding=((1, 1), (1, 1)),
            dimension_numbers=("NHWC", "HWIO", "NHWC"))
        y = y + jnp.asarray(lyr["b"], jnp.float32)
        if act:
            y = y * jax.nn.sigmoid(y)
        h = y.astype(jnp.bfloat16).astype(jnp.float32)     # bf16 inter-layer
    return h


def _ref_encode(m, x):
    h, bt = m._fold(x)
    return m._unfold(_ref_chain(h, m._enc_layers, m._acts), bt)


def _ref_decode(m, z):
    h, bt = m._fold(z)
    return m._unfold(_ref_chain(h, m._dec_layers, m._acts), bt)


if __name__ == "__main__":
    cfg = AEConfig(model_id="vae", in_channels=3, hidden_channels=32,
                   latent_channels=4, scaling_factor=0.18215)
    ae = AEModel(cfg)

    key = jax.random.PRNGKey(0)
    x = jax.random.normal(key, (2, 3, 2, 16, 16), dtype=jnp.float32)  # [B,C,T,H,W]

    z = jax.block_until_ready(ae.encode(x))
    assert z.shape == (2, 4, 2, 8, 8), z.shape

    recon = jax.block_until_ready(ae.decode(z))
    assert recon.shape == (2, 3, 2, 16, 16), recon.shape

    # numerical check against a pure-XLA reference with matched bf16 rounding
    m = ae.get_model()
    z_ref = jax.block_until_ready(_ref_encode(m, x))
    r_ref = jax.block_until_ready(_ref_decode(m, z))
    assert jnp.allclose(z, z_ref, atol=2e-2, rtol=2e-2), \
        float(jnp.max(jnp.abs(z - z_ref)))
    assert jnp.allclose(recon, r_ref, atol=2e-2, rtol=2e-2), \
        float(jnp.max(jnp.abs(recon - r_ref)))

    # forward must raise, matching the reference module
    try:
        ae.forward(x)
        raise AssertionError("forward should raise NotImplementedError")
    except NotImplementedError:
        pass

    print("KERNEL_OK")
</pallas_src>

<mosaic_0001>
module attributes {stable_mosaic.version = 11 : i64} {
  func.func @_fused_conv3_kernel(%arg0: i32, %arg1: memref<32x48xbf16, #tpu.memory_space<vmem>>, %arg2: memref<3x32x32xbf16, #tpu.memory_space<vmem>>, %arg3: memref<3x48x512xbf16, #tpu.memory_space<vmem>>, %arg4: memref<1x512xf32, #tpu.memory_space<vmem>>, %arg5: memref<3x16x32xbf16, #tpu.memory_space<vmem>>, %arg6: memref<3x512x256xbf16, #tpu.memory_space<vmem>>, %arg7: memref<1x256xf32, #tpu.memory_space<vmem>>, %arg8: memref<3x16x16xbf16, #tpu.memory_space<vmem>>, %arg9: memref<3x256x32xbf16, #tpu.memory_space<vmem>>, %arg10: memref<1x32xf32, #tpu.memory_space<vmem>>, %arg11: memref<16x32xbf16, #tpu.memory_space<vmem>>) attributes {dimension_semantics = [#tpu.dimension_semantics<parallel>], iteration_bounds = array<i64: 2>, scalar_prefetch = 0 : i64, scratch_operands = 0 : i64, tpu.core_type = #tpu.core_type<tc>, window_params = [{transform_indices = @transform_0, window_bounds = array<i64: 32, 48>}, {pipeline_mode = #tpu.pipeline_mode<synchronous>, transform_indices = @transform_1, window_bounds = array<i64: 3, 32, 32>}, {pipeline_mode = #tpu.pipeline_mode<synchronous>, transform_indices = @transform_2, window_bounds = array<i64: 3, 48, 512>}, {pipeline_mode = #tpu.pipeline_mode<synchronous>, transform_indices = @transform_3, window_bounds = array<i64: 1, 512>}, {pipeline_mode = #tpu.pipeline_mode<synchronous>, transform_indices = @transform_4, window_bounds = array<i64: 3, 16, 32>}, {pipeline_mode = #tpu.pipeline_mode<synchronous>, transform_indices = @transform_5, window_bounds = array<i64: 3, 512, 256>}, {pipeline_mode = #tpu.pipeline_mode<synchronous>, transform_indices = @transform_6, window_bounds = array<i64: 1, 256>}, {pipeline_mode = #tpu.pipeline_mode<synchronous>, transform_indices = @transform_7, window_bounds = array<i64: 3, 16, 16>}, {pipeline_mode = #tpu.pipeline_mode<synchronous>, transform_indices = @transform_8, window_bounds = array<i64: 3, 256, 32>}, {pipeline_mode = #tpu.pipeline_mode<synchronous>, transform_indices = @transform_9, window_bounds = array<i64: 1, 32>}, {transform_indices = @transform_10, window_bounds = array<i64: 16, 32>}]} {
    %c0 = arith.constant 0 : index
    %c0_0 = arith.constant 0 : index
    %0 = vector.load %arg1[%c0, %c0_0] : memref<32x48xbf16, #tpu.memory_space<vmem>>, vector<32x48xbf16>
    %c0_1 = arith.constant 0 : index
    %c0_2 = arith.constant 0 : index
    %c0_3 = arith.constant 0 : index
    %1 = vector.load %arg2[%c0_1, %c0_2, %c0_3] : memref<3x32x32xbf16, #tpu.memory_space<vmem>>, vector<1x32x32xbf16>
    %2 = vector.shape_cast %1 : vector<1x32x32xbf16> to vector<32x32xbf16>
    %cst = arith.constant dense<0.000000e+00> : vector<32x48xf32>
    %3 = tpu.matmul %2, %0, %cst {dimension_numbers = #tpu.dot_dimension_numbers<[1], [0], [0], [1], [0, 0, 1, 1], [], []>} : vector<32x32xbf16>, vector<32x48xbf16>, vector<32x48xf32> -> vector<32x48xf32>
    %4 = arith.truncf %3 : vector<32x48xf32> to vector<32x48xbf16>
    %c0_4 = arith.constant 0 : index
    %c0_5 = arith.constant 0 : index
    %c0_6 = arith.constant 0 : index
    %5 = vector.load %arg3[%c0_4, %c0_5, %c0_6] : memref<3x48x512xbf16, #tpu.memory_space<vmem>>, vector<1x48x512xbf16>
    %6 = vector.shape_cast %5 : vector<1x48x512xbf16> to vector<48x512xbf16>
    %cst_7 = arith.constant dense<0.000000e+00> : vector<32x512xf32>
    %7 = tpu.matmul %4, %6, %cst_7 {dimension_numbers = #tpu.dot_dimension_numbers<[1], [0], [0], [1], [0, 0, 1, 1], [], []>} : vector<32x48xbf16>, vector<48x512xbf16>, vector<32x512xf32> -> vector<32x512xf32>
    %c1 = arith.constant 1 : index
    %c0_8 = arith.constant 0 : index
    %c0_9 = arith.constant 0 : index
    %8 = vector.load %arg2[%c1, %c0_8, %c0_9] : memref<3x32x32xbf16, #tpu.memory_space<vmem>>, vector<1x32x32xbf16>
    %9 = vector.shape_cast %8 : vector<1x32x32xbf16> to vector<32x32xbf16>
    %cst_10 = arith.constant dense<0.000000e+00> : vector<32x48xf32>
    %10 = tpu.matmul %9, %0, %cst_10 {dimension_numbers = #tpu.dot_dimension_numbers<[1], [0], [0], [1], [0, 0, 1, 1], [], []>} : vector<32x32xbf16>, vector<32x48xbf16>, vector<32x48xf32> -> vector<32x48xf32>
    %11 = arith.truncf %10 : vector<32x48xf32> to vector<32x48xbf16>
    %c1_11 = arith.constant 1 : index
    %c0_12 = arith.constant 0 : index
    %c0_13 = arith.constant 0 : index
    %12 = vector.load %arg3[%c1_11, %c0_12, %c0_13] : memref<3x48x512xbf16, #tpu.memory_space<vmem>>, vector<1x48x512xbf16>
    %13 = vector.shape_cast %12 : vector<1x48x512xbf16> to vector<48x512xbf16>
    %cst_14 = arith.constant dense<0.000000e+00> : vector<32x512xf32>
    %14 = tpu.matmul %11, %13, %cst_14 {dimension_numbers = #tpu.dot_dimension_numbers<[1], [0], [0], [1], [0, 0, 1, 1], [], []>} : vector<32x48xbf16>, vector<48x512xbf16>, vector<32x512xf32> -> vector<32x512xf32>
    %15 = arith.addf %7, %14 : vector<32x512xf32>
    %c2 = arith.constant 2 : index
    %c0_15 = arith.constant 0 : index
    %c0_16 = arith.constant 0 : index
    %16 = vector.load %arg2[%c2, %c0_15, %c0_16] : memref<3x32x32xbf16, #tpu.memory_space<vmem>>, vector<1x32x32xbf16>
    %17 = vector.shape_cast %16 : vector<1x32x32xbf16> to vector<32x32xbf16>
    %cst_17 = arith.constant dense<0.000000e+00> : vector<32x48xf32>
    %18 = tpu.matmul %17, %0, %cst_17 {dimension_numbers = #tpu.dot_dimension_numbers<[1], [0], [0], [1], [0, 0, 1, 1], [], []>} : vector<32x32xbf16>, vector<32x48xbf16>, vector<32x48xf32> -> vector<32x48xf32>
    %19 = arith.truncf %18 : vector<32x48xf32> to vector<32x48xbf16>
    %c2_18 = arith.constant 2 : index
    %c0_19 = arith.constant 0 : index
    %c0_20 = arith.constant 0 : index
    %20 = vector.load %arg3[%c2_18, %c0_19, %c0_20] : memref<3x48x512xbf16, #tpu.memory_space<vmem>>, vector<1x48x512xbf16>
    %21 = vector.shape_cast %20 : vector<1x48x512xbf16> to vector<48x512xbf16>
    %cst_21 = arith.constant dense<0.000000e+00> : vector<32x512xf32>
    %22 = tpu.matmul %19, %21, %cst_21 {dimension_numbers = #tpu.dot_dimension_numbers<[1], [0], [0], [1], [0, 0, 1, 1], [], []>} : vector<32x48xbf16>, vector<48x512xbf16>, vector<32x512xf32> -> vector<32x512xf32>
    %23 = arith.addf %15, %22 : vector<32x512xf32>
    %c0_22 = arith.constant 0 : index
    %c0_23 = arith.constant 0 : index
    %24 = vector.load %arg4[%c0_22, %c0_23] : memref<1x512xf32, #tpu.memory_space<vmem>>, vector<1x512xf32>
    %25 = vector.broadcast %24 : vector<1x512xf32> to vector<32x512xf32>
    %26 = arith.addf %23, %25 : vector<32x512xf32>
    %27 = arith.negf %26 : vector<32x512xf32>
    %28 = math.exp %27 : vector<32x512xf32>
    %cst_24 = arith.constant 1.000000e+00 : f32
    %29 = vector.broadcast %cst_24 : f32 to vector<32x512xf32>
    %30 = arith.addf %29, %28 : vector<32x512xf32>
    %31 = arith.divf %29, %30 : vector<32x512xf32>
    %32 = arith.mulf %26, %31 : vector<32x512xf32>
    %33 = arith.truncf %32 : vector<32x512xf32> to vector<32x512xbf16>
    %c0_25 = arith.constant 0 : index
    %c0_26 = arith.constant 0 : index
    %c0_27 = arith.constant 0 : index
    %34 = vector.load %arg5[%c0_25, %c0_26, %c0_27] : memref<3x16x32xbf16, #tpu.memory_space<vmem>>, vector<1x16x32xbf16>
    %35 = vector.shape_cast %34 : vector<1x16x32xbf16> to vector<16x32xbf16>
    %cst_28 = arith.constant dense<0.000000e+00> : vector<16x512xf32>
    %36 = tpu.matmul %35, %33, %cst_28 {dimension_numbers = #tpu.dot_dimension_numbers<[1], [0], [0], [1], [0, 0, 1, 1], [], []>} : vector<16x32xbf16>, vector<32x512xbf16>, vector<16x512xf32> -> vector<16x512xf32>
    %37 = arith.truncf %36 : vector<16x512xf32> to vector<16x512xbf16>
    %c0_29 = arith.constant 0 : index
    %c0_30 = arith.constant 0 : index
    %c0_31 = arith.constant 0 : index
    %38 = vector.load %arg6[%c0_29, %c0_30, %c0_31] : memref<3x512x256xbf16, #tpu.memory_space<vmem>>, vector<1x512x256xbf16>
    %39 = vector.shape_cast %38 : vector<1x512x256xbf16> to vector<512x256xbf16>
    %cst_32 = arith.constant dense<0.000000e+00> : vector<16x256xf32>
    %40 = tpu.matmul %37, %39, %cst_32 {dimension_numbers = #tpu.dot_dimension_numbers<[1], [0], [0], [1], [0, 0, 1, 1], [], []>} : vector<16x512xbf16>, vector<512x256xbf16>, vector<16x256xf32> -> vector<16x256xf32>
    %c1_33 = arith.constant 1 : index
    %c0_34 = arith.constant 0 : index
    %c0_35 = arith.constant 0 : index
    %41 = vector.load %arg5[%c1_33, %c0_34, %c0_35] : memref<3x16x32xbf16, #tpu.memory_space<vmem>>, vector<1x16x32xbf16>
    %42 = vector.shape_cast %41 : vector<1x16x32xbf16> to vector<16x32xbf16>
    %cst_36 = arith.constant dense<0.000000e+00> : vector<16x512xf32>
    %43 = tpu.matmul %42, %33, %cst_36 {dimension_numbers = #tpu.dot_dimension_numbers<[1], [0], [0], [1], [0, 0, 1, 1], [], []>} : vector<16x32xbf16>, vector<32x512xbf16>, vector<16x512xf32> -> vector<16x512xf32>
    %44 = arith.truncf %43 : vector<16x512xf32> to vector<16x512xbf16>
    %c1_37 = arith.constant 1 : index
    %c0_38 = arith.constant 0 : index
    %c0_39 = arith.constant 0 : index
    %45 = vector.load %arg6[%c1_37, %c0_38, %c0_39] : memref<3x512x256xbf16, #tpu.memory_space<vmem>>, vector<1x512x256xbf16>
    %46 = vector.shape_cast %45 : vector<1x512x256xbf16> to vector<512x256xbf16>
    %cst_40 = arith.constant dense<0.000000e+00> : vector<16x256xf32>
    %47 = tpu.matmul %44, %46, %cst_40 {dimension_numbers = #tpu.dot_dimension_numbers<[1], [0], [0], [1], [0, 0, 1, 1], [], []>} : vector<16x512xbf16>, vector<512x256xbf16>, vector<16x256xf32> -> vector<16x256xf32>
    %48 = arith.addf %40, %47 : vector<16x256xf32>
    %c2_41 = arith.constant 2 : index
    %c0_42 = arith.constant 0 : index
    %c0_43 = arith.constant 0 : index
    %49 = vector.load %arg5[%c2_41, %c0_42, %c0_43] : memref<3x16x32xbf16, #tpu.memory_space<vmem>>, vector<1x16x32xbf16>
    %50 = vector.shape_cast %49 : vector<1x16x32xbf16> to vector<16x32xbf16>
    %cst_44 = arith.constant dense<0.000000e+00> : vector<16x512xf32>
    %51 = tpu.matmul %50, %33, %cst_44 {dimension_numbers = #tpu.dot_dimension_numbers<[1], [0], [0], [1], [0, 0, 1, 1], [], []>} : vector<16x32xbf16>, vector<32x512xbf16>, vector<16x512xf32> -> vector<16x512xf32>
    %52 = arith.truncf %51 : vector<16x512xf32> to vector<16x512xbf16>
    %c2_45 = arith.constant 2 : index
    %c0_46 = arith.constant 0 : index
    %c0_47 = arith.constant 0 : index
    %53 = vector.load %arg6[%c2_45, %c0_46, %c0_47] : memref<3x512x256xbf16, #tpu.memory_space<vmem>>, vector<1x512x256xbf16>
    %54 = vector.shape_cast %53 : vector<1x512x256xbf16> to vector<512x256xbf16>
    %cst_48 = arith.constant dense<0.000000e+00> : vector<16x256xf32>
    %55 = tpu.matmul %52, %54, %cst_48 {dimension_numbers = #tpu.dot_dimension_numbers<[1], [0], [0], [1], [0, 0, 1, 1], [], []>} : vector<16x512xbf16>, vector<512x256xbf16>, vector<16x256xf32> -> vector<16x256xf32>
    %56 = arith.addf %48, %55 : vector<16x256xf32>
    %c0_49 = arith.constant 0 : index
    %c0_50 = arith.constant 0 : index
    %57 = vector.load %arg7[%c0_49, %c0_50] : memref<1x256xf32, #tpu.memory_space<vmem>>, vector<1x256xf32>
    %58 = vector.broadcast %57 : vector<1x256xf32> to vector<16x256xf32>
    %59 = arith.addf %56, %58 : vector<16x256xf32>
    %60 = arith.negf %59 : vector<16x256xf32>
    %61 = math.exp %60 : vector<16x256xf32>
    %cst_51 = arith.constant 1.000000e+00 : f32
    %62 = vector.broadcast %cst_51 : f32 to vector<16x256xf32>
    %63 = arith.addf %62, %61 : vector<16x256xf32>
    %64 = arith.divf %62, %63 : vector<16x256xf32>
    %65 = arith.mulf %59, %64 : vector<16x256xf32>
    %66 = arith.truncf %65 : vector<16x256xf32> to vector<16x256xbf16>
    %c0_52 = arith.constant 0 : index
    %c0_53 = arith.constant 0 : index
    %c0_54 = arith.constant 0 : index
    %67 = vector.load %arg8[%c0_52, %c0_53, %c0_54] : memref<3x16x16xbf16, #tpu.memory_space<vmem>>, vector<1x16x16xbf16>
    %68 = vector.shape_cast %67 : vector<1x16x16xbf16> to vector<16x16xbf16>
    %cst_55 = arith.constant dense<0.000000e+00> : vector<16x256xf32>
    %69 = tpu.matmul %68, %66, %cst_55 {dimension_numbers = #tpu.dot_dimension_numbers<[1], [0], [0], [1], [0, 0, 1, 1], [], []>} : vector<16x16xbf16>, vector<16x256xbf16>, vector<16x256xf32> -> vector<16x256xf32>
    %70 = arith.truncf %69 : vector<16x256xf32> to vector<16x256xbf16>
    %c0_56 = arith.constant 0 : index
    %c0_57 = arith.constant 0 : index
    %c0_58 = arith.constant 0 : index
    %71 = vector.load %arg9[%c0_56, %c0_57, %c0_58] : memref<3x256x32xbf16, #tpu.memory_space<vmem>>, vector<1x256x32xbf16>
    %72 = vector.shape_cast %71 : vector<1x256x32xbf16> to vector<256x32xbf16>
    %cst_59 = arith.constant dense<0.000000e+00> : vector<16x32xf32>
    %73 = tpu.matmul %70, %72, %cst_59 {dimension_numbers = #tpu.dot_dimension_numbers<[1], [0], [0], [1], [0, 0, 1, 1], [], []>} : vector<16x256xbf16>, vector<256x32xbf16>, vector<16x32xf32> -> vector<16x32xf32>
    %c1_60 = arith.constant 1 : index
    %c0_61 = arith.constant 0 : index
    %c0_62 = arith.constant 0 : index
    %74 = vector.load %arg8[%c1_60, %c0_61, %c0_62] : memref<3x16x16xbf16, #tpu.memory_space<vmem>>, vector<1x16x16xbf16>
    %75 = vector.shape_cast %74 : vector<1x16x16xbf16> to vector<16x16xbf16>
    %cst_63 = arith.constant dense<0.000000e+00> : vector<16x256xf32>
    %76 = tpu.matmul %75, %66, %cst_63 {dimension_numbers = #tpu.dot_dimension_numbers<[1], [0], [0], [1], [0, 0, 1, 1], [], []>} : vector<16x16xbf16>, vector<16x256xbf16>, vector<16x256xf32> -> vector<16x256xf32>
    %77 = arith.truncf %76 : vector<16x256xf32> to vector<16x256xbf16>
    %c1_64 = arith.constant 1 : index
    %c0_65 = arith.constant 0 : index
    %c0_66 = arith.constant 0 : index
    %78 = vector.load %arg9[%c1_64, %c0_65, %c0_66] : memref<3x256x32xbf16, #tpu.memory_space<vmem>>, vector<1x256x32xbf16>
    %79 = vector.shape_cast %78 : vector<1x256x32xbf16> to vector<256x32xbf16>
    %cst_67 = arith.constant dense<0.000000e+00> : vector<16x32xf32>
    %80 = tpu.matmul %77, %79, %cst_67 {dimension_numbers = #tpu.dot_dimension_numbers<[1], [0], [0], [1], [0, 0, 1, 1], [], []>} : vector<16x256xbf16>, vector<256x32xbf16>, vector<16x32xf32> -> vector<16x32xf32>
    %81 = arith.addf %73, %80 : vector<16x32xf32>
    %c2_68 = arith.constant 2 : index
    %c0_69 = arith.constant 0 : index
    %c0_70 = arith.constant 0 : index
    %82 = vector.load %arg8[%c2_68, %c0_69, %c0_70] : memref<3x16x16xbf16, #tpu.memory_space<vmem>>, vector<1x16x16xbf16>
    %83 = vector.shape_cast %82 : vector<1x16x16xbf16> to vector<16x16xbf16>
    %cst_71 = arith.constant dense<0.000000e+00> : vector<16x256xf32>
    %84 = tpu.matmul %83, %66, %cst_71 {dimension_numbers = #tpu.dot_dimension_numbers<[1], [0], [0], [1], [0, 0, 1, 1], [], []>} : vector<16x16xbf16>, vector<16x256xbf16>, vector<16x256xf32> -> vector<16x256xf32>
    %85 = arith.truncf %84 : vector<16x256xf32> to vector<16x256xbf16>
    %c2_72 = arith.constant 2 : index
    %c0_73 = arith.constant 0 : index
    %c0_74 = arith.constant 0 : index
    %86 = vector.load %arg9[%c2_72, %c0_73, %c0_74] : memref<3x256x32xbf16, #tpu.memory_space<vmem>>, vector<1x256x32xbf16>
    %87 = vector.shape_cast %86 : vector<1x256x32xbf16> to vector<256x32xbf16>
    %cst_75 = arith.constant dense<0.000000e+00> : vector<16x32xf32>
    %88 = tpu.matmul %85, %87, %cst_75 {dimension_numbers = #tpu.dot_dimension_numbers<[1], [0], [0], [1], [0, 0, 1, 1], [], []>} : vector<16x256xbf16>, vector<256x32xbf16>, vector<16x32xf32> -> vector<16x32xf32>
    %89 = arith.addf %81, %88 : vector<16x32xf32>
    %c0_76 = arith.constant 0 : index
    %c0_77 = arith.constant 0 : index
    %90 = vector.load %arg10[%c0_76, %c0_77] : memref<1x32xf32, #tpu.memory_space<vmem>>, vector<1x32xf32>
    %91 = vector.broadcast %90 : vector<1x32xf32> to vector<16x32xf32>
    %92 = arith.addf %89, %91 : vector<16x32xf32>
    %93 = arith.truncf %92 : vector<16x32xf32> to vector<16x32xbf16>
    %c0_78 = arith.constant 0 : index
    %c0_79 = arith.constant 0 : index
    %94 = vector.load %arg11[%c0_78, %c0_79] : memref<16x32xbf16, #tpu.memory_space<vmem>>, vector<16x32xbf16>
    tpu.vector_store %arg11[%c0_78, %c0_79], %93 {strides = array<i32>} : memref<16x32xbf16, #tpu.memory_space<vmem>>, vector<16x32xbf16>,
    return
  }
  func.func @transform_0(%arg0: i32) -> (i32, i32) {
    %c0_i32 = arith.constant 0 : i32
    %c0_i32_0 = arith.constant 0 : i32
    return %arg0, %c0_i32 : i32, i32
  }
  func.func @transform_1(%arg0: i32) -> (i32, i32, i32) {
    %c0_i32 = arith.constant 0 : i32
    %c0_i32_0 = arith.constant 0 : i32
    %c0_i32_1 = arith.constant 0 : i32
    %c0_i32_2 = arith.constant 0 : i32
    return %c0_i32, %c0_i32_0, %c0_i32_1 : i32, i32, i32
  }
  func.func @transform_2(%arg0: i32) -> (i32, i32, i32) {
    %c0_i32 = arith.constant 0 : i32
    %c0_i32_0 = arith.constant 0 : i32
    %c0_i32_1 = arith.constant 0 : i32
    %c0_i32_2 = arith.constant 0 : i32
    return %c0_i32, %c0_i32_0, %c0_i32_1 : i32, i32, i32
  }
  func.func @transform_3(%arg0: i32) -> (i32, i32) {
    %c0_i32 = arith.constant 0 : i32
    %c0_i32_0 = arith.constant 0 : i32
    %c0_i32_1 = arith.constant 0 : i32
    return %c0_i32, %c0_i32_0 : i32, i32
  }
  func.func @transform_4(%arg0: i32) -> (i32, i32, i32) {
    %c0_i32 = arith.constant 0 : i32
    %c0_i32_0 = arith.constant 0 : i32
    %c0_i32_1 = arith.constant 0 : i32
    %c0_i32_2 = arith.constant 0 : i32
    return %c0_i32, %c0_i32_0, %c0_i32_1 : i32, i32, i32
  }
  func.func @transform_5(%arg0: i32) -> (i32, i32, i32) {
    %c0_i32 = arith.constant 0 : i32
    %c0_i32_0 = arith.constant 0 : i32
    %c0_i32_1 = arith.constant 0 : i32
    %c0_i32_2 = arith.constant 0 : i32
    return %c0_i32, %c0_i32_0, %c0_i32_1 : i32, i32, i32
  }
  func.func @transform_6(%arg0: i32) -> (i32, i32) {
    %c0_i32 = arith.constant 0 : i32
    %c0_i32_0 = arith.constant 0 : i32
    %c0_i32_1 = arith.constant 0 : i32
    return %c0_i32, %c0_i32_0 : i32, i32
  }
  func.func @transform_7(%arg0: i32) -> (i32, i32, i32) {
    %c0_i32 = arith.constant 0 : i32
    %c0_i32_0 = arith.constant 0 : i32
    %c0_i32_1 = arith.constant 0 : i32
    %c0_i32_2 = arith.constant 0 : i32
    return %c0_i32, %c0_i32_0, %c0_i32_1 : i32, i32, i32
  }
  func.func @transform_8(%arg0: i32) -> (i32, i32, i32) {
    %c0_i32 = arith.constant 0 : i32
    %c0_i32_0 = arith.constant 0 : i32
    %c0_i32_1 = arith.constant 0 : i32
    %c0_i32_2 = arith.constant 0 : i32
    return %c0_i32, %c0_i32_0, %c0_i32_1 : i32, i32, i32
  }
  func.func @transform_9(%arg0: i32) -> (i32, i32) {
    %c0_i32 = arith.constant 0 : i32
    %c0_i32_0 = arith.constant 0 : i32
    %c0_i32_1 = arith.constant 0 : i32
    return %c0_i32, %c0_i32_0 : i32, i32
  }
  func.func @transform_10(%arg0: i32) -> (i32, i32) {
    %c0_i32 = arith.constant 0 : i32
    %c0_i32_0 = arith.constant 0 : i32
    return %arg0, %c0_i32 : i32, i32
  }
}

</mosaic_0001>

<llo_original>
// kernel: tpu_custom_call.1
$region0: #{tpu_custom_call.1}
  #allocation0 [shape = 'u32[]', space=smem, size = 0x4, offset = 0x4, fixed_abs, tag = 'smem constant byte address 0x4 - core index']
  #allocation1 [shape = 'u32[144,128]{1,0:T(1,128)}', space=vmem, size = 0x12000, scoped, tag = 'internal scratch']
  %s0 = inlined_call_operand.vmem [shape: bf16[64,48], index: 0, kind: input, shape index: {}]
  %s1 = inlined_call_operand.vmem [shape: bf16[3,32,32], index: 1, kind: input, shape index: {}]
  %s2 = inlined_call_operand.vmem [shape: bf16[3,48,512], index: 2, kind: input, shape index: {}]
  %s3 = inlined_call_operand.vmem [shape: f32[1,512], index: 3, kind: input, shape index: {}]
  %s4 = inlined_call_operand.vmem [shape: bf16[3,16,32], index: 4, kind: input, shape index: {}]
  %s5 = inlined_call_operand.hbm [shape: bf16[3,512,256], index: 5, kind: input, shape index: {}]
  %s6 = inlined_call_operand.vmem [shape: f32[1,256], index: 6, kind: input, shape index: {}]
  %s7 = inlined_call_operand.vmem [shape: bf16[3,16,16], index: 7, kind: input, shape index: {}]
  %s8 = inlined_call_operand.vmem [shape: bf16[3,256,32], index: 8, kind: input, shape index: {}]
  %s9 = inlined_call_operand.vmem [shape: f32[1,32], index: 9, kind: input, shape index: {}]
  %s10 = inlined_call_operand.hbm [shape: bf16[32,32], index: 10, kind: output, shape index: {}]
  %s11 = sld [smem:[#allocation0]]
  $region77: #{tpu_custom_call.1} parent=0
    _
  %s13 = ssub.s32 1, %s11
  %s14 = scalar_select 0, %s13, %s11
  $region1: #{tpu_custom_call.1} parent=0
    #allocation2 [shape = 'u8[786432]{0}', space=vmem, size = 0xc0000, scoped, tag = 'input window, operand 5, single buffered']
    #allocation3 [shape = 's32[2]{0}', space=sflag, size = 0x8, scoped, tag = 'scoped memory for tpu_custom_call.1']
    #allocation4 [shape = 's32[2]{0}', space=sflag, size = 0x8, scoped, tag = 'scoped memory for tpu_custom_call.1']
    #allocation5 [shape = 'u8[8192]{0}', space=vmem, size = 0x2000, scoped, tag = 'output window, operand 0']
    %15 = vsyncpa [#allocation3], 0
    %16 = vsyncpa [#allocation4], 0
    %s17 = scalar_lea.sflag [#allocation4], 1
    %18 = vsyncpa %s17, 0
    loop: start=0, step=1, limit=4
    $region2: #{tpu_custom_call.1} parent=1 // loop_pre_header
      _
    $region3: #{tpu_custom_call.1} parent=1 // loop_header
      %s20 = sphi 0, %s24
      %p21 = scmp.ge.s32.totalorder %s20, 4
      %s30 = sphi 0, %s32
      %s33 = sphi 0, %s30
      %s34 = sphi 0, %s33
      %s50 = sphi 0, %s34
      %s54 = sphi 0, %s54
      %s56 = sphi 0, %s54
      %s57 = sphi 0, %s56
      %s71 = sphi 0, %s57
      %s75 = sphi 0, %s75
      %s77 = sphi 0, %s75
      %s78 = sphi 0, %s77
      %s92 = sphi 0, %s78
      %s96 = sphi 0, %s96
      %s98 = sphi 0, %s96
      %s99 = sphi 0, %s98
      %s113 = sphi 0, %s99
      %s117 = sphi 0, %s117
      %s119 = sphi 0, %s117
      %s120 = sphi 0, %s119
      %s134 = sphi 0, %s120
      %s138 = sphi 0, %s138
      %s140 = sphi 0, %s138
      %s141 = sphi 0, %s140
      %s155 = sphi 0, %s141
      %s159 = sphi 0, %s159
      %s161 = sphi 0, %s159
      %s162 = sphi 0, %s161
      %s176 = sphi 0, %s162
      %s180 = sphi 0, %s180
      %s182 = sphi 0, %s180
      %s183 = sphi 0, %s182
      %s197 = sphi 0, %s183
      %s201 = sphi 0, %s201
      %s203 = sphi 0, %s201
      %s204 = sphi 0, %s203
      %s218 = sphi 0, %s204
      %s222 = sphi 0, %s222
      %s224 = sphi 0, %s222
      %s225 = sphi 0, %s224
      %s239 = sphi 0, %s225
      %s245 = sphi 0, %s247
      %s248 = sphi 0, %s245
      %s249 = sphi 0, %s248
      %s265 = sphi 0, %s249
    $region4: #{tpu_custom_call.1} parent=1 // loop_header_branch
      %23 = sbr.rel (%p21) target = $region8
    $region5: #{tpu_custom_call.1} parent=1 // loop_body
      %s25 = ssub.s32 %s20, 1
      %s26 = ssub.s32 %s20, 2
      %s27 = sadd.s32 %s20, 1
      %s28 = ssub.s32 %s20, %s27
      %p29 = scmp.eq.s32.totalorder %s28, 0
      %s31 = sadd.s32 %s30, 1
      %s32 = scalar_select %p29, %s30, %s31
      %p35 = pneg %p29
      %p36 = scmp.eq.s32.totalorder %s20, 1
      %p37 = por %p35, %p36
      %p38 = scmp.ne.s32.totalorder %s30, %s33
      %p39 = scmp.eq.s32.totalorder %s20, 0
      %p40 = por %p38, %p39
      %p41 = scmp.ne.s32.totalorder %s30, %s33
      %p42 = scmp.eq.s32.totalorder %s25, 1
      %p43 = por %p41, %p42
      %p44 = scmp.ne.s32.totalorder %s33, %s34
      %p45 = scmp.eq.s32.totalorder %s25, 0
      %p46 = por %p44, %p45
      %p47 = scmp.ne.s32.totalorder %s33, %s34
      %p48 = scmp.eq.s32.totalorder %s26, 1
      %p49 = por %p47, %p48
      %p51 = scmp.ne.s32.totalorder %s34, %s50
      %p52 = scmp.eq.s32.totalorder %s26, 0
      %p53 = por %p51, %p52
      %s55 = sadd.s32 %s54, 1
      %p58 = scmp.eq.s32.totalorder %s20, 1
      %p59 = scmp.ne.s32.totalorder %s54, %s56
      %p60 = scmp.eq.s32.totalorder %s20, 0
      %p61 = por %p59, %p60
      %p62 = scmp.ne.s32.totalorder %s54, %s56
      %p63 = scmp.eq.s32.totalorder %s25, 1
      %p64 = por %p62, %p63
      %p65 = scmp.ne.s32.totalorder %s56, %s57
      %p66 = scmp.eq.s32.totalorder %s25, 0
      %p67 = por %p65, %p66
      %p68 = scmp.ne.s32.totalorder %s56, %s57
      %p69 = scmp.eq.s32.totalorder %s26, 1
      %p70 = por %p68, %p69
      %p72 = scmp.ne.s32.totalorder %s57, %s71
      %p73 = scmp.eq.s32.totalorder %s26, 0
      %p74 = por %p72, %p73
      %s76 = sadd.s32 %s75, 1
      %p79 = scmp.eq.s32.totalorder %s20, 1
      %p80 = scmp.ne.s32.totalorder %s75, %s77
      %p81 = scmp.eq.s32.totalorder %s20, 0
      %p82 = por %p80, %p81
      %p83 = scmp.ne.s32.totalorder %s75, %s77
      %p84 = scmp.eq.s32.totalorder %s25, 1
      %p85 = por %p83, %p84
      %p86 = scmp.ne.s32.totalorder %s77, %s78
      %p87 = scmp.eq.s32.totalorder %s25, 0
      %p88 = por %p86, %p87
      %p89 = scmp.ne.s32.totalorder %s77, %s78
      %p90 = scmp.eq.s32.totalorder %s26, 1
      %p91 = por %p89, %p90
      %p93 = scmp.ne.s32.totalorder %s78, %s92
      %p94 = scmp.eq.s32.totalorder %s26, 0
      %p95 = por %p93, %p94
      %s97 = sadd.s32 %s96, 1
      %p100 = scmp.eq.s32.totalorder %s20, 1
      %p101 = scmp.ne.s32.totalorder %s96, %s98
      %p102 = scmp.eq.s32.totalorder %s20, 0
      %p103 = por %p101, %p102
      %p104 = scmp.ne.s32.totalorder %s96, %s98
      %p105 = scmp.eq.s32.totalorder %s25, 1
      %p106 = por %p104, %p105
      %p107 = scmp.ne.s32.totalorder %s98, %s99
      %p108 = scmp.eq.s32.totalorder %s25, 0
      %p109 = por %p107, %p108
      %p110 = scmp.ne.s32.totalorder %s98, %s99
      %p111 = scmp.eq.s32.totalorder %s26, 1
      %p112 = por %p110, %p111
      %p114 = scmp.ne.s32.totalorder %s99, %s113
      %p115 = scmp.eq.s32.totalorder %s26, 0
      %p116 = por %p114, %p115
      %s118 = sadd.s32 %s117, 1
      %p121 = scmp.eq.s32.totalorder %s20, 1
      %p122 = scmp.ne.s32.totalorder %s117, %s119
      %p123 = scmp.eq.s32.totalorder %s20, 0
      %p124 = por %p122, %p123
      %p125 = scmp.ne.s32.totalorder %s117, %s119
      %p126 = scmp.eq.s32.totalorder %s25, 1
      %p127 = por %p125, %p126
      %p128 = scmp.ne.s32.totalorder %s119, %s120
      %p129 = scmp.eq.s32.totalorder %s25, 0
      %p130 = por %p128, %p129
      %p131 = scmp.ne.s32.totalorder %s119, %s120
      %p132 = scmp.eq.s32.totalorder %s26, 1
      %p133 = por %p131, %p132
      %p135 = scmp.ne.s32.totalorder %s120, %s134
      %p136 = scmp.eq.s32.totalorder %s26, 0
      %p137 = por %p135, %p136
      %s139 = sadd.s32 %s138, 1
      %p142 = scmp.eq.s32.totalorder %s20, 1
      %p143 = scmp.ne.s32.totalorder %s138, %s140
      %p144 = scmp.eq.s32.totalorder %s20, 0
      %p145 = por %p143, %p144
      %p146 = scmp.ne.s32.totalorder %s138, %s140
      %p147 = scmp.eq.s32.totalorder %s25, 1
      %p148 = por %p146, %p147
      %p149 = scmp.ne.s32.totalorder %s140, %s141
      %p150 = scmp.eq.s32.totalorder %s25, 0
      %p151 = por %p149, %p150
      %p152 = scmp.ne.s32.totalorder %s140, %s141
      %p153 = scmp.eq.s32.totalorder %s26, 1
      %p154 = por %p152, %p153
      %p156 = scmp.ne.s32.totalorder %s141, %s155
      %p157 = scmp.eq.s32.totalorder %s26, 0
      %p158 = por %p156, %p157
      %s160 = sadd.s32 %s159, 1
      %p163 = scmp.eq.s32.totalorder %s20, 1
      %p164 = scmp.ne.s32.totalorder %s159, %s161
      %p165 = scmp.eq.s32.totalorder %s20, 0
      %p166 = por %p164, %p165
      %p167 = scmp.ne.s32.totalorder %s159, %s161
      %p168 = scmp.eq.s32.totalorder %s25, 1
      %p169 = por %p167, %p168
      %p170 = scmp.ne.s32.totalorder %s161, %s162
      %p171 = scmp.eq.s32.totalorder %s25, 0
      %p172 = por %p170, %p171
      %p173 = scmp.ne.s32.totalorder %s161, %s162
      %p174 = scmp.eq.s32.totalorder %s26, 1
      %p175 = por %p173, %p174
      %p177 = scmp.ne.s32.totalorder %s162, %s176
      %p178 = scmp.eq.s32.totalorder %s26, 0
      %p179 = por %p177, %p178
      %s181 = sadd.s32 %s180, 1
      %p184 = scmp.eq.s32.totalorder %s20, 1
      %p185 = scmp.ne.s32.totalorder %s180, %s182
      %p186 = scmp.eq.s32.totalorder %s20, 0
      %p187 = por %p185, %p186
      %p188 = scmp.ne.s32.totalorder %s180, %s182
      %p189 = scmp.eq.s32.totalorder %s25, 1
      %p190 = por %p188, %p189
      %p191 = scmp.ne.s32.totalorder %s182, %s183
      %p192 = scmp.eq.s32.totalorder %s25, 0
      %p193 = por %p191, %p192
      %p194 = scmp.ne.s32.totalorder %s182, %s183
      %p195 = scmp.eq.s32.totalorder %s26, 1
      %p196 = por %p194, %p195
      %p198 = scmp.ne.s32.totalorder %s183, %s197
      %p199 = scmp.eq.s32.totalorder %s26, 0
      %p200 = por %p198, %p199
      %s202 = sadd.s32 %s201, 1
      %p205 = scmp.eq.s32.totalorder %s20, 1
      %p206 = scmp.ne.s32.totalorder %s201, %s203
      %p207 = scmp.eq.s32.totalorder %s20, 0
      %p208 = por %p206, %p207
      %p209 = scmp.ne.s32.totalorder %s201, %s203
      %p210 = scmp.eq.s32.totalorder %s25, 1
      %p211 = por %p209, %p210
      %p212 = scmp.ne.s32.totalorder %s203, %s204
      %p213 = scmp.eq.s32.totalorder %s25, 0
      %p214 = por %p212, %p213
      %p215 = scmp.ne.s32.totalorder %s203, %s204
      %p216 = scmp.eq.s32.totalorder %s26, 1
      %p217 = por %p215, %p216
      %p219 = scmp.ne.s32.totalorder %s204, %s218
      %p220 = scmp.eq.s32.totalorder %s26, 0
      %p221 = por %p219, %p220
      %s223 = sadd.s32 %s222, 1
      %p226 = scmp.eq.s32.totalorder %s20, 1
      %p227 = scmp.ne.s32.totalorder %s222, %s224
      %p228 = scmp.eq.s32.totalorder %s20, 0
      %p229 = por %p227, %p228
      %p230 = scmp.ne.s32.totalorder %s222, %s224
      %p231 = scmp.eq.s32.totalorder %s25, 1
      %p232 = por %p230, %p231
      %p233 = scmp.ne.s32.totalorder %s224, %s225
      %p234 = scmp.eq.s32.totalorder %s25, 0
      %p235 = por %p233, %p234
      %p236 = scmp.ne.s32.totalorder %s224, %s225
      %p237 = scmp.eq.s32.totalorder %s26, 1
      %p238 = por %p236, %p237
      %p240 = scmp.ne.s32.totalorder %s225, %s239
      %p241 = scmp.eq.s32.totalorder %s26, 0
      %p242 = por %p240, %p241
      %s243 = ssub.s32 %s20, %s27
      %p244 = scmp.eq.s32.totalorder %s243, 0
      %s246 = sadd.s32 %s245, 1
      %s247 = scalar_select %p244, %s245, %s246
      %p250 = pneg %p244
      %p251 = scmp.eq.s32.totalorder %s20, 1
      %p252 = por %p250, %p251
      %p253 = scmp.ne.s32.totalorder %s245, %s248
      %p254 = scmp.eq.s32.totalorder %s20, 0
      %p255 = por %p253, %p254
      %p256 = scmp.ne.s32.totalorder %s245, %s248
      %p257 = scmp.eq.s32.totalorder %s25, 1
      %p258 = por %p256, %p257
      %p259 = scmp.ne.s32.totalorder %s248, %s249
      %p260 = scmp.eq.s32.totalorder %s25, 0
      %p261 = por %p259, %p260
      %p262 = scmp.ne.s32.totalorder %s248, %s249
      %p263 = scmp.eq.s32.totalorder %s26, 1
      %p264 = por %p262, %p263
      %p266 = scmp.ne.s32.totalorder %s249, %s265
      %p267 = scmp.eq.s32.totalorder %s26, 0
      %p268 = por %p266, %p267
      %p269 = scmp.le.s32.totalorder 1, %s20
      %p270 = scmp.lt.s32.totalorder %s20, 3
      %p271 = pnand %p269, %p270
      %p272 = pneg %p271
      // Predicated region
      $region9: #{tpu_custom_call.1} parent=5 // pred_check
        _
      $region10: #{tpu_custom_call.1} parent=5 // pred_check_branch
        %274 = sbr.rel (%p271) target = $region12
      $region11: #{tpu_custom_call.1} parent=5 // pred_region
        %s275 = ssub.s32 %s20, 1
        // Predicated region
        $region13: #{tpu_custom_call.1} parent=11 // pred_check
          %p276 = pneg %p67
        $region14: #{tpu_custom_call.1} parent=11 // pred_check_branch
          %278 = sbr.rel (%p276) target = $region16
        $region15: #{tpu_custom_call.1} parent=11 // pred_region
          _
        $region16: #{tpu_custom_call.1} parent=11 // pred_fallthru
          _
        // Predicated region
        $region17: #{tpu_custom_call.1} parent=11 // pred_check
          %p279 = pneg %p88
        $region18: #{tpu_custom_call.1} parent=11 // pred_check_branch
          %281 = sbr.rel (%p279) target = $region20
        $region19: #{tpu_custom_call.1} parent=11 // pred_region
          _
        $region20: #{tpu_custom_call.1} parent=11 // pred_fallthru
          _
        // Predicated region
        $region21: #{tpu_custom_call.1} parent=11 // pred_check
          %p282 = pneg %p109
        $region22: #{tpu_custom_call.1} parent=11 // pred_check_branch
          %284 = sbr.rel (%p282) target = $region24
        $region23: #{tpu_custom_call.1} parent=11 // pred_region
          _
        $region24: #{tpu_custom_call.1} parent=11 // pred_fallthru
          _
        // Predicated region
        $region25: #{tpu_custom_call.1} parent=11 // pred_check
          %p285 = pneg %p130
        $region26: #{tpu_custom_call.1} parent=11 // pred_check_branch
          %287 = sbr.rel (%p285) target = $region28
        $region27: #{tpu_custom_call.1} parent=11 // pred_region
          _
        $region28: #{tpu_custom_call.1} parent=11 // pred_fallthru
          _
        // Predicated region
        $region29: #{tpu_custom_call.1} parent=11 // pred_check
          %p288 = pneg %p151
        $region30: #{tpu_custom_call.1} parent=11 // pred_check_branch
          %290 = sbr.rel (%p288) target = $region32
        $region31: #{tpu_custom_call.1} parent=11 // pred_region
          %s292 = ssub.s32 24576, 24576
          %293 = vsyncadd [#allocation3], %s292
          %s294 = sshll.u32 [#allocation2], 4
          %s295 = int_to_ptr.vmem [resolvable:$true] %s294
          %300 = dma.hbm_to_vmem [thread:$0]  %s5, 24576, %s295, [#allocation3], 128, 128, 8
        $region32: #{tpu_custom_call.1} parent=11 // pred_fallthru
          _
        // Predicated region
        $region33: #{tpu_custom_call.1} parent=11 // pred_check
          %p301 = pneg %p172
        $region34: #{tpu_custom_call.1} parent=11 // pred_check_branch
          %303 = sbr.rel (%p301) target = $region36
        $region35: #{tpu_custom_call.1} parent=11 // pred_region
          _
        $region36: #{tpu_custom_call.1} parent=11 // pred_fallthru
          _
        // Predicated region
        $region37: #{tpu_custom_call.1} parent=11 // pred_check
          %p304 = pneg %p193
        $region38: #{tpu_custom_call.1} parent=11 // pred_check_branch
          %306 = sbr.rel (%p304) target = $region40
        $region39: #{tpu_custom_call.1} parent=11 // pred_region
          _
        $region40: #{tpu_custom_call.1} parent=11 // pred_fallthru
          _
        // Predicated region
        $region41: #{tpu_custom_call.1} parent=11 // pred_check
          %p307 = pneg %p214
        $region42: #{tpu_custom_call.1} parent=11 // pred_check_branch
          %309 = sbr.rel (%p307) target = $region44
        $region43: #{tpu_custom_call.1} parent=11 // pred_region
          _
        $region44: #{tpu_custom_call.1} parent=11 // pred_fallthru
          _
        // Predicated region
        $region45: #{tpu_custom_call.1} parent=11 // pred_check
          %p310 = pneg %p235
        $region46: #{tpu_custom_call.1} parent=11 // pred_check_branch
          %312 = sbr.rel (%p310) target = $region48
        $region47: #{tpu_custom_call.1} parent=11 // pred_region
          _
        $region48: #{tpu_custom_call.1} parent=11 // pred_fallthru
          _
      $region12: #{tpu_custom_call.1} parent=5 // pred_fallthru
        _
      %p313 = scmp.lt.s32.totalorder %s20, 2
      // Predicated region
      $region49: #{tpu_custom_call.1} parent=5 // pred_check
        %p314 = pneg %p313
      $region50: #{tpu_custom_call.1} parent=5 // pred_check_branch
        %316 = sbr.rel (%p314) target = $region52
      $region51: #{tpu_custom_call.1} parent=5 // pred_region
        // Predicated region
        $region53: #{tpu_custom_call.1} parent=51 // pred_check
          %p317 = pneg %p40
        $region54: #{tpu_custom_call.1} parent=51 // pred_check_branch
          %319 = sbr.rel (%p317) target = $region56
        $region55: #{tpu_custom_call.1} parent=51 // pred_region
          %s320 = smul.u32 4, %s20
          %p321 = scmp.lt.s32.totalorder %s320, 7
          %s322 = scalar_select %p321, %s320, 7
          %s323 = smul.addr %s322, 4
          %s324 = scalar_lea.vmem %s0, %s323
          %s325 = smul.u32 4, %s20
        $region56: #{tpu_custom_call.1} parent=51 // pred_fallthru
          _
      $region52: #{tpu_custom_call.1} parent=5 // pred_fallthru
        _
      %p326 = scmp.le.s32.totalorder 1, %s20
      %p327 = scmp.lt.s32.totalorder %s20, 3
      %p328 = pnand %p326, %p327
      %p329 = pneg %p328
      // Predicated region
      $region57: #{tpu_custom_call.1} parent=5 // pred_check
        _
      $region58: #{tpu_custom_call.1} parent=5 // pred_check_branch
        %331 = sbr.rel (%p328) target = $region60
      $region59: #{tpu_custom_call.1} parent=5 // pred_region
        %s332 = ssub.s32 %s20, 1
        // Predicated region
        $region61: #{tpu_custom_call.1} parent=59 // pred_check
          %p333 = pneg %p151
        $region62: #{tpu_custom_call.1} parent=59 // pred_check_branch
          %335 = sbr.rel (%p333) target = $region64
        $region63: #{tpu_custom_call.1} parent=59 // pred_region
          %336 = dma.done [#allocation3], 24576
        $region64: #{tpu_custom_call.1} parent=59 // pred_fallthru
          _
        %s337 = smul.u32 4, %s25
        %p338 = scmp.lt.s32.totalorder %s337, 7
        %s339 = scalar_select %p338, %s337, 7
        %s340 = smul.addr %s339, 4
        %s341 = scalar_lea.vmem %s0, %s340
        %p342 = pneg %p46
        %p343 = pneg %p43
        %p344 = pneg %p67
        %p345 = pneg %p64
        %p346 = pneg %p88
        %p347 = pneg %p85
        %p348 = pneg %p109
        %p349 = pneg %p106
        %p350 = pneg %p130
        %p351 = pneg %p127
        %p352 = pneg %p151
        %p353 = pneg %p148
        %p354 = pneg %p172
        %p355 = pneg %p169
        %p356 = pneg %p193
        %p357 = pneg %p190
        %p358 = pneg %p214
        %p359 = pneg %p211
        %p360 = pneg %p235
        %p361 = pneg %p232
        %p362 = pneg %p261
        %p363 = pneg %p258
        %s364 = sand.u32 %s248, 1
        %s365 = scalar_lea.sflag [#allocation4], %s364
        %s366 = sand.u32 %s248, 1
        %s367 = smul.addr %s366, 8
        %s368 = scalar_lea.vmem [#allocation5], %s367
        %s369 = smul.u32 4, %s25
        %p370 = scmp.lt.s32.totalorder %s369, 7
        %s371 = scalar_select %p370, %s369, 7
        %s372 = smul.addr %s371, 4
        %s373 = scalar_lea.vmem %s0, %s372
        %s374 = smul.u32 4, %s25
        %s375 = smul.u32 2, %s25
        %v377 = vld [vmem:[%s373] sm:$0xf]
        %v378 = vld [vmem:[%s373 + $0x4] sm:$0xf]
        %v379 = vld [vmem:[%s373 + $0x8] sm:$0xf]
        %v380 = vld [vmem:[%s373 + $0xc] sm:$0xf]
        %v381 = vld [vmem:[%s1] sm:$0xf]
        %v382 = vld [vmem:[%s1 + $0x4] sm:$0xf]
        %v383 = vld [vmem:[%s1 + $0x8] sm:$0xf]
        %v384 = vld [vmem:[%s1 + $0xc] sm:$0xf]
        %v389 = vunpack.c.l.b16 %v381
        %v390 = vunpack.c.l.b16 %v382
        %v391 = vunpack.c.l.b16 %v383
        %v392 = vunpack.c.l.b16 %v384
        %v393 = vpack.c.b16 %v390, %v389
        %v394 = vpack.c.b16 %v392, %v391
        %v399 = vunpack.c.l.b16 %v377
        %v400 = vunpack.c.l.b16 %v378
        %v401 = vunpack.c.l.b16 %v379
        %v402 = vunpack.c.l.b16 %v380
        %v403 = vpack.c.b16 %v400, %v399
        %v404 = vpack.c.b16 %v402, %v401
        %vm407 = vcmask 261120
        %v409 = vsel %vm407, %v393, 0
        %v412 = vsel %vm407, %v394, 0
        %414 = vmatprep.subr.bf16.mxu0 0
        %415 = vmatpush1.bf16.msra.mxu0 0
        %416 = vmatprep.subr.bf16.mxu0 0
        %417 = vmatpush1.bf16.msra.mxu0 0
        %418 = vmatprep.subr.bf16.mxu0 0
        %419 = vmatpush1.bf16.msra.mxu0 0
        %420 = vmatprep.subr.bf16.mxu0 0
        %421 = vmatpush1.bf16.msra.mxu0 0
        %422 = vmatprep.subr.bf16.mxu0 0
        %423 = vmatpush1.bf16.msra.mxu0 0
        %424 = vmatprep.subr.bf16.mxu0 0
        %425 = vmatpush1.bf16.msra.mxu0 0
        %426 = vmatprep.subr.bf16.mxu0 0
        %427 = vmatpush1.bf16.msra.mxu0 %v404
        %428 = vmatprep.subr.bf16.mxu0 0
        %429 = vmatpush1.bf16.msra.mxu0 %v403
        %430 = vmatprep.subr.bf16.mxu0 0
        %431 = vmatpush2.bf16.msra.mxu0 0
        %432 = vmatprep.subr.bf16.mxu0 0
        %433 = vmatpush2.bf16.msra.mxu0 0
        %434 = vmatprep.subr.bf16.mxu0 0
        %435 = vmatpush2.bf16.msra.mxu0 0
        %436 = vmatprep.subr.bf16.mxu0 0
        %437 = vmatpush2.bf16.msra.mxu0 0
        %438 = vmatprep.subr.bf16.mxu0 0
        %439 = vmatpush2.bf16.msra.mxu0 0
        %440 = vmatprep.subr.bf16.mxu0 0
        %441 = vmatpush2.bf16.msra.mxu0 0
        %442 = vmatprep.subr.bf16.mxu0 0
        %443 = vmatpush2.bf16.msra.mxu0 0
        %444 = vmatprep.subr.bf16.mxu0 0
        %445 = vmatpush2.bf16.msra.mxu0 0
        %446 = vmatprep.mubr.bf16.mxu0 0
        %447 = vmatmul.mubr.bf16.gmra.mxu0 %v409
        %v448 = vpop.f32.mrf.mxu0
        %v449 = vadd.f32 0.0, %v448
        %v450 = vpop.f32.mrf.mxu0
        %v451 = vpop.f32.mrf.mxu0
        %v452 = vadd.f32 0.0, %v451
        %v453 = vpop.f32.mrf.mxu0
        %454 = vmatprep.mubr.bf16.mxu0 0
        %455 = vmatmul.mubr.bf16.gmra.mxu0 %v412
        %v456 = vpop.f32.mrf.mxu0
        %v457 = vadd.f32 0.0, %v456
        %v458 = vpop.f32.mrf.mxu0
        %v459 = vpop.f32.mrf.mxu0
        %v460 = vadd.f32 0.0, %v459
        %v461 = vpop.f32.mrf.mxu0
        %462 = vdwg.mxu0
        %v463 = vpack.c.bf16 %v452, %v449
        %v464 = vpack.c.bf16 %v460, %v457
        %v465 = vld [vmem:[%s2] sm:$0xff]
        %v466 = vld [vmem:[%s2 + $0x8] sm:$0xff]
        %v467 = vld [vmem:[%s2 + $0x10] sm:$0xff]
        %v468 = vld [vmem:[%s2 + $0x18] sm:$0xff]
        %v469 = vld [vmem:[%s2 + $0x20] sm:$0xff]
        %v470 = vld [vmem:[%s2 + $0x28] sm:$0xff]
        %v471 = vld [vmem:[%s2 + $0x30] sm:$0xff]
        %v472 = vld [vmem:[%s2 + $0x38] sm:$0xff]
        %v473 = vld [vmem:[%s2 + $0x40] sm:$0xff]
        %v474 = vld [vmem:[%s2 + $0x48] sm:$0xff]
        %v475 = vld [vmem:[%s2 + $0x50] sm:$0xff]
        %v476 = vld [vmem:[%s2 + $0x58] sm:$0xff]
        %s477 = scalar_lea.vmem %s1, 16
        %v478 = vld [vmem:[%s477] sm:$0xf]
        %v479 = vld [vmem:[%s477 + $0x4] sm:$0xf]
        %v480 = vld [vmem:[%s477 + $0x8] sm:$0xf]
        %v481 = vld [vmem:[%s477 + $0xc] sm:$0xf]
        %v486 = vunpack.c.l.b16 %v478
        %v487 = vunpack.c.l.b16 %v479
        %v488 = vunpack.c.l.b16 %v480
        %v489 = vunpack.c.l.b16 %v481
        %v490 = vpack.c.b16 %v487, %v486
        %v491 = vpack.c.b16 %v489, %v488
        %v493 = vsel %vm407, %v490, 0
        %v496 = vsel %vm407, %v491, 0
        %498 = vmatprep.subr.bf16.mxu0 0
        %499 = vmatpush1.bf16.msra.mxu0 0
        %500 = vmatprep.subr.bf16.mxu0 0
        %501 = vmatpush1.bf16.msra.mxu0 0
        %502 = vmatprep.subr.bf16.mxu0 0
        %503 = vmatpush1.bf16.msra.mxu0 0
        %504 = vmatprep.subr.bf16.mxu0 0
        %505 = vmatpush1.bf16.msra.mxu0 0
        %506 = vmatprep.subr.bf16.mxu0 0
        %507 = vmatpush1.bf16.msra.mxu0 0
        %508 = vmatprep.subr.bf16.mxu0 0
        %509 = vmatpush1.bf16.msra.mxu0 0
        %510 = vmatprep.subr.bf16.mxu0 0
        %511 = vmatpush1.bf16.msra.mxu0 %v404
        %512 = vmatprep.subr.bf16.mxu0 0
        %513 = vmatpush1.bf16.msra.mxu0 %v403
        %514 = vmatprep.subr.bf16.mxu0 0
        %515 = vmatpush2.bf16.msra.mxu0 0
        %516 = vmatprep.subr.bf16.mxu0 0
        %517 = vmatpush2.bf16.msra.mxu0 0
        %518 = vmatprep.subr.bf16.mxu0 0
        %519 = vmatpush2.bf16.msra.mxu0 0
        %520 = vmatprep.subr.bf16.mxu0 0
        %521 = vmatpush2.bf16.msra.mxu0 0
        %522 = vmatprep.subr.bf16.mxu0 0
        %523 = vmatpush2.bf16.msra.mxu0 0
        %524 = vmatprep.subr.bf16.mxu0 0
        %525 = vmatpush2.bf16.msra.mxu0 0
        %526 = vmatprep.subr.bf16.mxu0 0
        %527 = vmatpush2.bf16.msra.mxu0 0
        %528 = vmatprep.subr.bf16.mxu0 0
        %529 = vmatpush2.bf16.msra.mxu0 0
        %530 = vmatprep.mubr.bf16.mxu0 0
        %531 = vmatmul.mubr.bf16.gmra.mxu0 %v493
        %v532 = vpop.f32.mrf.mxu0
        %v533 = vadd.f32 0.0, %v532
        %v534 = vpop.f32.mrf.mxu0
        %v535 = vpop.f32.mrf.mxu0
        %v536 = vadd.f32 0.0, %v535
        %v537 = vpop.f32.mrf.mxu0
        %538 = vmatprep.mubr.bf16.mxu0 0
        %539 = vmatmul.mubr.bf16.gmra.mxu0 %v496
        %v540 = vpop.f32.mrf.mxu0
        %v541 = vadd.f32 0.0, %v540
        %v542 = vpop.f32.mrf.mxu0
        %v543 = vpop.f32.mrf.mxu0
        %v544 = vadd.f32 0.0, %v543
        %v545 = vpop.f32.mrf.mxu0
        %546 = vdwg.mxu0
        %v547 = vpack.c.bf16 %v536, %v533
        %v548 = vpack.c.bf16 %v544, %v541
        %s549 = scalar_lea.vmem %s2, 96
        %v550 = vld [vmem:[%s549] sm:$0xff]
        %v551 = vld [vmem:[%s549 + $0x8] sm:$0xff]
        %v552 = vld [vmem:[%s549 + $0x10] sm:$0xff]
        %v553 = vld [vmem:[%s549 + $0x18] sm:$0xff]
        %v554 = vld [vmem:[%s549 + $0x20] sm:$0xff]
        %v555 = vld [vmem:[%s549 + $0x28] sm:$0xff]
        %v556 = vld [vmem:[%s549 + $0x30] sm:$0xff]
        %v557 = vld [vmem:[%s549 + $0x38] sm:$0xff]
        %v558 = vld [vmem:[%s549 + $0x40] sm:$0xff]
        %v559 = vld [vmem:[%s549 + $0x48] sm:$0xff]
        %v560 = vld [vmem:[%s549 + $0x50] sm:$0xff]
        %v561 = vld [vmem:[%s549 + $0x58] sm:$0xff]
        %v574 = vunpack.c.l.b16 %v550
        %v575 = vunpack.c.h.b16 %v550
        %v576 = vunpack.c.l.b16 %v551
        %v577 = vunpack.c.h.b16 %v551
        %v578 = vunpack.c.l.b16 %v552
        %v579 = vunpack.c.h.b16 %v552
        %v580 = vunpack.c.l.b16 %v553
        %v581 = vunpack.c.h.b16 %v553
        %v582 = vunpack.c.l.b16 %v554
        %v583 = vunpack.c.h.b16 %v554
        %v584 = vunpack.c.l.b16 %v555
        %v585 = vunpack.c.h.b16 %v555
        %v586 = vunpack.c.l.b16 %v556
        %v587 = vunpack.c.h.b16 %v556
        %v588 = vunpack.c.l.b16 %v557
        %v589 = vunpack.c.h.b16 %v557
        %v590 = vunpack.c.l.b16 %v558
        %v591 = vunpack.c.h.b16 %v558
        %v592 = vunpack.c.l.b16 %v559
        %v593 = vunpack.c.h.b16 %v559
        %v594 = vunpack.c.l.b16 %v560
        %v595 = vunpack.c.h.b16 %v560
        %v596 = vunpack.c.l.b16 %v561
        %v597 = vunpack.c.h.b16 %v561
        %v598 = vpack.c.b16 %v578, %v574
        %v599 = vpack.c.b16 %v579, %v575
        %v600 = vpack.c.b16 %v580, %v576
        %v601 = vpack.c.b16 %v581, %v577
        %v602 = vpack.c.b16 %v586, %v582
        %v603 = vpack.c.b16 %v587, %v583
        %v604 = vpack.c.b16 %v588, %v584
        %v605 = vpack.c.b16 %v589, %v585
        %v606 = vpack.c.b16 %v594, %v590
        %v607 = vpack.c.b16 %v595, %v591
        %v608 = vpack.c.b16 %v596, %v592
        %v609 = vpack.c.b16 %v597, %v593
        %vm622 = vcmask 392192
        %v624 = vsel %vm622, %v547, 0
        %v627 = vsel %vm622, %v548, 0
        %629 = vmatprep.subr.bf16.mxu0 0
        %630 = vmatpush1.bf16.msra.mxu0 0
        %631 = vmatprep.subr.bf16.mxu0 0
        %632 = vmatpush1.bf16.msra.mxu0 0
        %633 = vmatprep.subr.bf16.mxu0 0
        %634 = vmatpush1.bf16.msra.mxu0 0
        %635 = vmatprep.subr.bf16.mxu0 0
        %636 = vmatpush1.bf16.msra.mxu0 0
        %637 = vmatprep.subr.bf16.mxu0 0
        %638 = vmatpush1.bf16.msra.mxu0 0
        %639 = vmatprep.subr.bf16.mxu0 %v607
        %640 = vmatpush1.bf16.msra.mxu0 %v606
        %641 = vmatprep.subr.bf16.mxu0 %v603
        %642 = vmatpush1.bf16.msra.mxu0 %v602
        %643 = vmatprep.subr.bf16.mxu0 %v599
        %644 = vmatpush1.bf16.msra.mxu0 %v598
        %645 = vmatprep.subr.bf16.mxu0 0
        %646 = vmatpush2.bf16.msra.mxu0 0
        %647 = vmatprep.subr.bf16.mxu0 0
        %648 = vmatpush2.bf16.msra.mxu0 0
        %649 = vmatprep.subr.bf16.mxu0 0
        %650 = vmatpush2.bf16.msra.mxu0 0
        %651 = vmatprep.subr.bf16.mxu0 0
        %652 = vmatpush2.bf16.msra.mxu0 0
        %653 = vmatprep.subr.bf16.mxu0 0
        %654 = vmatpush2.bf16.msra.mxu0 0
        %655 = vmatprep.subr.bf16.mxu0 0
        %656 = vmatpush2.bf16.msra.mxu0 0
        %657 = vmatprep.subr.bf16.mxu0 0
        %658 = vmatpush2.bf16.msra.mxu0 0
        %659 = vmatprep.subr.bf16.mxu0 0
        %660 = vmatpush2.bf16.msra.mxu0 0
        %661 = vmatprep.mubr.bf16.mxu0 0
        %662 = vmatmul.mubr.bf16.gmra.mxu0 %v624
        %v663 = vpop.f32.mrf.mxu0
        %v664 = vadd.f32 0.0, %v663
        %v665 = vpop.f32.mrf.mxu0
        %v666 = vadd.f32 0.0, %v665
        %v667 = vpop.f32.mrf.mxu0
        %v668 = vadd.f32 0.0, %v667
        %v669 = vpop.f32.mrf.mxu0
        %v670 = vadd.f32 0.0, %v669
        %671 = vmatprep.mubr.bf16.mxu0 0
        %672 = vmatmul.mubr.bf16.gmra.mxu0 %v627
        %v673 = vpop.f32.mrf.mxu0
        %v674 = vadd.f32 0.0, %v673
        %v675 = vpop.f32.mrf.mxu0
        %v676 = vadd.f32 0.0, %v675
        %v677 = vpop.f32.mrf.mxu0
        %v678 = vadd.f32 0.0, %v677
        %v679 = vpop.f32.mrf.mxu0
        %v680 = vadd.f32 0.0, %v679
        %681 = vdwg.mxu0
        %682 = vmatprep.subr.bf16.mxu0 0
        %683 = vmatpush1.bf16.msra.mxu0 0
        %684 = vmatprep.subr.bf16.mxu0 0
        %685 = vmatpush1.bf16.msra.mxu0 0
        %686 = vmatprep.subr.bf16.mxu0 0
        %687 = vmatpush1.bf16.msra.mxu0 0
        %688 = vmatprep.subr.bf16.mxu0 0
        %689 = vmatpush1.bf16.msra.mxu0 0
        %690 = vmatprep.subr.bf16.mxu0 0
        %691 = vmatpush1.bf16.msra.mxu0 0
        %692 = vmatprep.subr.bf16.mxu0 %v609
        %693 = vmatpush1.bf16.msra.mxu0 %v608
        %694 = vmatprep.subr.bf16.mxu0 %v605
        %695 = vmatpush1.bf16.msra.mxu0 %v604
        %696 = vmatprep.subr.bf16.mxu0 %v601
        %697 = vmatpush1.bf16.msra.mxu0 %v600
        %698 = vmatprep.subr.bf16.mxu0 0
        %699 = vmatpush2.bf16.msra.mxu0 0
        %700 = vmatprep.subr.bf16.mxu0 0
        %701 = vmatpush2.bf16.msra.mxu0 0
        %702 = vmatprep.subr.bf16.mxu0 0
        %703 = vmatpush2.bf16.msra.mxu0 0
        %704 = vmatprep.subr.bf16.mxu0 0
        %705 = vmatpush2.bf16.msra.mxu0 0
        %706 = vmatprep.subr.bf16.mxu0 0
        %707 = vmatpush2.bf16.msra.mxu0 0
        %708 = vmatprep.subr.bf16.mxu0 0
        %709 = vmatpush2.bf16.msra.mxu0 0
        %710 = vmatprep.subr.bf16.mxu0 0
        %711 = vmatpush2.bf16.msra.mxu0 0
        %712 = vmatprep.subr.bf16.mxu0 0
        %713 = vmatpush2.bf16.msra.mxu0 0
        %714 = vmatprep.mubr.bf16.mxu0 0
        %715 = vmatmul.mubr.bf16.gmra.mxu0 %v624
        %v716 = vpop.f32.mrf.mxu0
        %v717 = vadd.f32 0.0, %v716
        %v718 = vpop.f32.mrf.mxu0
        %v719 = vadd.f32 0.0, %v718
        %v720 = vpop.f32.mrf.mxu0
        %v721 = vadd.f32 0.0, %v720
        %v722 = vpop.f32.mrf.mxu0
        %v723 = vadd.f32 0.0, %v722
        %724 = vmatprep.mubr.bf16.mxu0 0
        %725 = vmatmul.mubr.bf16.gmra.mxu0 %v627
        %v726 = vpop.f32.mrf.mxu0
        %v727 = vadd.f32 0.0, %v726
        %v728 = vpop.f32.mrf.mxu0
        %v729 = vadd.f32 0.0, %v728
        %v730 = vpop.f32.mrf.mxu0
        %v731 = vadd.f32 0.0, %v730
        %v732 = vpop.f32.mrf.mxu0
        %v733 = vadd.f32 0.0, %v732
        %734 = vdwg.mxu0
        %v747 = vunpack.c.l.b16 %v465
        %v748 = vunpack.c.h.b16 %v465
        %v749 = vunpack.c.l.b16 %v466
        %v750 = vunpack.c.h.b16 %v466
        %v751 = vunpack.c.l.b16 %v467
        %v752 = vunpack.c.h.b16 %v467
        %v753 = vunpack.c.l.b16 %v468
        %v754 = vunpack.c.h.b16 %v468
        %v755 = vunpack.c.l.b16 %v469
        %v756 = vunpack.c.h.b16 %v469
        %v757 = vunpack.c.l.b16 %v470
        %v758 = vunpack.c.h.b16 %v470
        %v759 = vunpack.c.l.b16 %v471
        %v760 = vunpack.c.h.b16 %v471
        %v761 = vunpack.c.l.b16 %v472
        %v762 = vunpack.c.h.b16 %v472
        %v763 = vunpack.c.l.b16 %v473
        %v764 = vunpack.c.h.b16 %v473
        %v765 = vunpack.c.l.b16 %v474
        %v766 = vunpack.c.h.b16 %v474
        %v767 = vunpack.c.l.b16 %v475
        %v768 = vunpack.c.h.b16 %v475
        %v769 = vunpack.c.l.b16 %v476
        %v770 = vunpack.c.h.b16 %v476
        %v771 = vpack.c.b16 %v751, %v747
        %v772 = vpack.c.b16 %v752, %v748
        %v773 = vpack.c.b16 %v753, %v749
        %v774 = vpack.c.b16 %v754, %v750
        %v775 = vpack.c.b16 %v759, %v755
        %v776 = vpack.c.b16 %v760, %v756
        %v777 = vpack.c.b16 %v761, %v757
        %v778 = vpack.c.b16 %v762, %v758
        %v779 = vpack.c.b16 %v767, %v763
        %v780 = vpack.c.b16 %v768, %v764
        %v781 = vpack.c.b16 %v769, %v765
        %v782 = vpack.c.b16 %v770, %v766
        %v796 = vsel %vm622, %v463, 0
        %v799 = vsel %vm622, %v464, 0
        %801 = vmatprep.subr.bf16.mxu0 0
        %802 = vmatpush1.bf16.msra.mxu0 0
        %803 = vmatprep.subr.bf16.mxu0 0
        %804 = vmatpush1.bf16.msra.mxu0 0
        %805 = vmatprep.subr.bf16.mxu0 0
        %806 = vmatpush1.bf16.msra.mxu0 0
        %807 = vmatprep.subr.bf16.mxu0 0
        %808 = vmatpush1.bf16.msra.mxu0 0
        %809 = vmatprep.subr.bf16.mxu0 0
        %810 = vmatpush1.bf16.msra.mxu0 0
        %811 = vmatprep.subr.bf16.mxu0 %v780
        %812 = vmatpush1.bf16.msra.mxu0 %v779
        %813 = vmatprep.subr.bf16.mxu0 %v776
        %814 = vmatpush1.bf16.msra.mxu0 %v775
        %815 = vmatprep.subr.bf16.mxu0 %v772
        %816 = vmatpush1.bf16.msra.mxu0 %v771
        %817 = vmatprep.subr.bf16.mxu0 0
        %818 = vmatpush2.bf16.msra.mxu0 0
        %819 = vmatprep.subr.bf16.mxu0 0
        %820 = vmatpush2.bf16.msra.mxu0 0
        %821 = vmatprep.subr.bf16.mxu0 0
        %822 = vmatpush2.bf16.msra.mxu0 0
        %823 = vmatprep.subr.bf16.mxu0 0
        %824 = vmatpush2.bf16.msra.mxu0 0
        %825 = vmatprep.subr.bf16.mxu0 0
        %826 = vmatpush2.bf16.msra.mxu0 0
        %827 = vmatprep.subr.bf16.mxu0 0
        %828 = vmatpush2.bf16.msra.mxu0 0
        %829 = vmatprep.subr.bf16.mxu0 0
        %830 = vmatpush2.bf16.msra.mxu0 0
        %831 = vmatprep.subr.bf16.mxu0 0
        %832 = vmatpush2.bf16.msra.mxu0 0
        %833 = vmatprep.mubr.bf16.mxu0 0
        %834 = vmatmul.mubr.bf16.gmra.mxu0 %v796
        %v835 = vpop.f32.mrf.mxu0
        %v836 = vadd.f32 %v664, %v835
        %v837 = vpop.f32.mrf.mxu0
        %v838 = vadd.f32 %v666, %v837
        %v839 = vpop.f32.mrf.mxu0
        %v840 = vadd.f32 %v668, %v839
        %v841 = vpop.f32.mrf.mxu0
        %v842 = vadd.f32 %v670, %v841
        %843 = vmatprep.mubr.bf16.mxu0 0
        %844 = vmatmul.mubr.bf16.gmra.mxu0 %v799
        %v845 = vpop.f32.mrf.mxu0
        %v846 = vadd.f32 %v674, %v845
        %v847 = vpop.f32.mrf.mxu0
        %v848 = vadd.f32 %v676, %v847
        %v849 = vpop.f32.mrf.mxu0
        %v850 = vadd.f32 %v678, %v849
        %v851 = vpop.f32.mrf.mxu0
        %v852 = vadd.f32 %v680, %v851
        %853 = vdwg.mxu0
        %854 = vmatprep.subr.bf16.mxu0 0
        %855 = vmatpush1.bf16.msra.mxu0 0
        %856 = vmatprep.subr.bf16.mxu0 0
        %857 = vmatpush1.bf16.msra.mxu0 0
        %858 = vmatprep.subr.bf16.mxu0 0
        %859 = vmatpush1.bf16.msra.mxu0 0
        %860 = vmatprep.subr.bf16.mxu0 0
        %861 = vmatpush1.bf16.msra.mxu0 0
        %862 = vmatprep.subr.bf16.mxu0 0
        %863 = vmatpush1.bf16.msra.mxu0 0
        %864 = vmatprep.subr.bf16.mxu0 %v782
        %865 = vmatpush1.bf16.msra.mxu0 %v781
        %866 = vmatprep.subr.bf16.mxu0 %v778
        %867 = vmatpush1.bf16.msra.mxu0 %v777
        %868 = vmatprep.subr.bf16.mxu0 %v774
        %869 = vmatpush1.bf16.msra.mxu0 %v773
        %870 = vmatprep.subr.bf16.mxu0 0
        %871 = vmatpush2.bf16.msra.mxu0 0
        %872 = vmatprep.subr.bf16.mxu0 0
        %873 = vmatpush2.bf16.msra.mxu0 0
        %874 = vmatprep.subr.bf16.mxu0 0
        %875 = vmatpush2.bf16.msra.mxu0 0
        %876 = vmatprep.subr.bf16.mxu0 0
        %877 = vmatpush2.bf16.msra.mxu0 0
        %878 = vmatprep.subr.bf16.mxu0 0
        %879 = vmatpush2.bf16.msra.mxu0 0
        %880 = vmatprep.subr.bf16.mxu0 0
        %881 = vmatpush2.bf16.msra.mxu0 0
        %882 = vmatprep.subr.bf16.mxu0 0
        %883 = vmatpush2.bf16.msra.mxu0 0
        %884 = vmatprep.subr.bf16.mxu0 0
        %885 = vmatpush2.bf16.msra.mxu0 0
        %886 = vmatprep.mubr.bf16.mxu0 0
        %887 = vmatmul.mubr.bf16.gmra.mxu0 %v796
        %v888 = vpop.f32.mrf.mxu0
        %v889 = vadd.f32 %v717, %v888
        %v890 = vpop.f32.mrf.mxu0
        %v891 = vadd.f32 %v719, %v890
        %v892 = vpop.f32.mrf.mxu0
        %v893 = vadd.f32 %v721, %v892
        %v894 = vpop.f32.mrf.mxu0
        %v895 = vadd.f32 %v723, %v894
        %896 = vmatprep.mubr.bf16.mxu0 0
        %897 = vmatmul.mubr.bf16.gmra.mxu0 %v799
        %v898 = vpop.f32.mrf.mxu0
        %v899 = vadd.f32 %v727, %v898
        %v900 = vpop.f32.mrf.mxu0
        %v901 = vadd.f32 %v729, %v900
        %v902 = vpop.f32.mrf.mxu0
        %v903 = vadd.f32 %v731, %v902
        %v904 = vpop.f32.mrf.mxu0
        %v905 = vadd.f32 %v733, %v904
        %906 = vdwg.mxu0
        %s907 = scalar_lea.vmem %s1, 32
        %v908 = vld [vmem:[%s907] sm:$0xf]
        %v909 = vld [vmem:[%s907 + $0x4] sm:$0xf]
        %v910 = vld [vmem:[%s907 + $0x8] sm:$0xf]
        %v911 = vld [vmem:[%s907 + $0xc] sm:$0xf]
        %v916 = vunpack.c.l.b16 %v908
        %v917 = vunpack.c.l.b16 %v909
        %v918 = vunpack.c.l.b16 %v910
        %v919 = vunpack.c.l.b16 %v911
        %v920 = vpack.c.b16 %v917, %v916
        %v921 = vpack.c.b16 %v919, %v918
        %v923 = vsel %vm407, %v920, 0
        %v926 = vsel %vm407, %v921, 0
        %928 = vmatprep.subr.bf16.mxu0 0
        %929 = vmatpush1.bf16.msra.mxu0 0
        %930 = vmatprep.subr.bf16.mxu0 0
        %931 = vmatpush1.bf16.msra.mxu0 0
        %932 = vmatprep.subr.bf16.mxu0 0
        %933 = vmatpush1.bf16.msra.mxu0 0
        %934 = vmatprep.subr.bf16.mxu0 0
        %935 = vmatpush1.bf16.msra.mxu0 0
        %936 = vmatprep.subr.bf16.mxu0 0
        %937 = vmatpush1.bf16.msra.mxu0 0
        %938 = vmatprep.subr.bf16.mxu0 0
        %939 = vmatpush1.bf16.msra.mxu0 0
        %940 = vmatprep.subr.bf16.mxu0 0
        %941 = vmatpush1.bf16.msra.mxu0 %v404
        %942 = vmatprep.subr.bf16.mxu0 0
        %943 = vmatpush1.bf16.msra.mxu0 %v403
        %944 = vmatprep.subr.bf16.mxu0 0
        %945 = vmatpush2.bf16.msra.mxu0 0
        %946 = vmatprep.subr.bf16.mxu0 0
        %947 = vmatpush2.bf16.msra.mxu0 0
        %948 = vmatprep.subr.bf16.mxu0 0
        %949 = vmatpush2.bf16.msra.mxu0 0
        %950 = vmatprep.subr.bf16.mxu0 0
        %951 = vmatpush2.bf16.msra.mxu0 0
        %952 = vmatprep.subr.bf16.mxu0 0
        %953 = vmatpush2.bf16.msra.mxu0 0
        %954 = vmatprep.subr.bf16.mxu0 0
        %955 = vmatpush2.bf16.msra.mxu0 0
        %956 = vmatprep.subr.bf16.mxu0 0
        %957 = vmatpush2.bf16.msra.mxu0 0
        %958 = vmatprep.subr.bf16.mxu0 0
        %959 = vmatpush2.bf16.msra.mxu0 0
        %960 = vmatprep.mubr.bf16.mxu0 0
        %961 = vmatmul.mubr.bf16.gmra.mxu0 %v923
        %v962 = vpop.f32.mrf.mxu0
        %v963 = vadd.f32 0.0, %v962
        %v964 = vpop.f32.mrf.mxu0
        %v965 = vpop.f32.mrf.mxu0
        %v966 = vadd.f32 0.0, %v965
        %v967 = vpop.f32.mrf.mxu0
        %968 = vmatprep.mubr.bf16.mxu0 0
        %969 = vmatmul.mubr.bf16.gmra.mxu0 %v926
        %v970 = vpop.f32.mrf.mxu0
        %v971 = vadd.f32 0.0, %v970
        %v972 = vpop.f32.mrf.mxu0
        %v973 = vpop.f32.mrf.mxu0
        %v974 = vadd.f32 0.0, %v973
        %v975 = vpop.f32.mrf.mxu0
        %976 = vdwg.mxu0
        %v977 = vpack.c.bf16 %v966, %v963
        %v978 = vpack.c.bf16 %v974, %v971
        %s979 = scalar_lea.vmem %s2, 192
        %v980 = vld [vmem:[%s979] sm:$0xff]
        %v981 = vld [vmem:[%s979 + $0x8] sm:$0xff]
        %v982 = vld [vmem:[%s979 + $0x10] sm:$0xff]
        %v983 = vld [vmem:[%s979 + $0x18] sm:$0xff]
        %v984 = vld [vmem:[%s979 + $0x20] sm:$0xff]
        %v985 = vld [vmem:[%s979 + $0x28] sm:$0xff]
        %v986 = vld [vmem:[%s979 + $0x30] sm:$0xff]
        %v987 = vld [vmem:[%s979 + $0x38] sm:$0xff]
        %v988 = vld [vmem:[%s979 + $0x40] sm:$0xff]
        %v989 = vld [vmem:[%s979 + $0x48] sm:$0xff]
        %v990 = vld [vmem:[%s979 + $0x50] sm:$0xff]
        %v991 = vld [vmem:[%s979 + $0x58] sm:$0xff]
        %v1004 = vunpack.c.l.b16 %v980
        %v1005 = vunpack.c.h.b16 %v980
        %v1006 = vunpack.c.l.b16 %v981
        %v1007 = vunpack.c.h.b16 %v981
        %v1008 = vunpack.c.l.b16 %v982
        %v1009 = vunpack.c.h.b16 %v982
        %v1010 = vunpack.c.l.b16 %v983
        %v1011 = vunpack.c.h.b16 %v983
        %v1012 = vunpack.c.l.b16 %v984
        %v1013 = vunpack.c.h.b16 %v984
        %v1014 = vunpack.c.l.b16 %v985
        %v1015 = vunpack.c.h.b16 %v985
        %v1016 = vunpack.c.l.b16 %v986
        %v1017 = vunpack.c.h.b16 %v986
        %v1018 = vunpack.c.l.b16 %v987
        %v1019 = vunpack.c.h.b16 %v987
        %v1020 = vunpack.c.l.b16 %v988
        %v1021 = vunpack.c.h.b16 %v988
        %v1022 = vunpack.c.l.b16 %v989
        %v1023 = vunpack.c.h.b16 %v989
        %v1024 = vunpack.c.l.b16 %v990
        %v1025 = vunpack.c.h.b16 %v990
        %v1026 = vunpack.c.l.b16 %v991
        %v1027 = vunpack.c.h.b16 %v991
        %v1028 = vpack.c.b16 %v1008, %v1004
        %v1029 = vpack.c.b16 %v1009, %v1005
        %v1030 = vpack.c.b16 %v1010, %v1006
        %v1031 = vpack.c.b16 %v1011, %v1007
        %v1032 = vpack.c.b16 %v1016, %v1012
        %v1033 = vpack.c.b16 %v1017, %v1013
        %v1034 = vpack.c.b16 %v1018, %v1014
        %v1035 = vpack.c.b16 %v1019, %v1015
        %v1036 = vpack.c.b16 %v1024, %v1020
        %v1037 = vpack.c.b16 %v1025, %v1021
        %v1038 = vpack.c.b16 %v1026, %v1022
        %v1039 = vpack.c.b16 %v1027, %v1023
        %v1053 = vsel %vm622, %v977, 0
        %v1056 = vsel %vm622, %v978, 0
        %1058 = vmatprep.subr.bf16.mxu0 0
        %1059 = vmatpush1.bf16.msra.mxu0 0
        %1060 = vmatprep.subr.bf16.mxu0 0
        %1061 = vmatpush1.bf16.msra.mxu0 0
        %1062 = vmatprep.subr.bf16.mxu0 0
        %1063 = vmatpush1.bf16.msra.mxu0 0
        %1064 = vmatprep.subr.bf16.mxu0 0
        %1065 = vmatpush1.bf16.msra.mxu0 0
        %1066 = vmatprep.subr.bf16.mxu0 0
        %1067 = vmatpush1.bf16.msra.mxu0 0
        %1068 = vmatprep.subr.bf16.mxu0 %v1037
        %1069 = vmatpush1.bf16.msra.mxu0 %v1036
        %1070 = vmatprep.subr.bf16.mxu0 %v1033
        %1071 = vmatpush1.bf16.msra.mxu0 %v1032
        %1072 = vmatprep.subr.bf16.mxu0 %v1029
        %1073 = vmatpush1.bf16.msra.mxu0 %v1028
        %1074 = vmatprep.subr.bf16.mxu0 0
        %1075 = vmatpush2.bf16.msra.mxu0 0
        %1076 = vmatprep.subr.bf16.mxu0 0
        %1077 = vmatpush2.bf16.msra.mxu0 0
        %1078 = vmatprep.subr.bf16.mxu0 0
        %1079 = vmatpush2.bf16.msra.mxu0 0
        %1080 = vmatprep.subr.bf16.mxu0 0
        %1081 = vmatpush2.bf16.msra.mxu0 0
        %1082 = vmatprep.subr.bf16.mxu0 0
        %1083 = vmatpush2.bf16.msra.mxu0 0
        %1084 = vmatprep.subr.bf16.mxu0 0
        %1085 = vmatpush2.bf16.msra.mxu0 0
        %1086 = vmatprep.subr.bf16.mxu0 0
        %1087 = vmatpush2.bf16.msra.mxu0 0
        %1088 = vmatprep.subr.bf16.mxu0 0
        %1089 = vmatpush2.bf16.msra.mxu0 0
        %1090 = vmatprep.mubr.bf16.mxu0 0
        %1091 = vmatmul.mubr.bf16.gmra.mxu0 %v1053
        %v1092 = vpop.f32.mrf.mxu0
        %v1093 = vadd.f32 0.0, %v1092
        %v1094 = vpop.f32.mrf.mxu0
        %v1095 = vadd.f32 0.0, %v1094
        %v1096 = vpop.f32.mrf.mxu0
        %v1097 = vadd.f32 0.0, %v1096
        %v1098 = vpop.f32.mrf.mxu0
        %v1099 = vadd.f32 0.0, %v1098
        %1100 = vmatprep.mubr.bf16.mxu0 0
        %1101 = vmatmul.mubr.bf16.gmra.mxu0 %v1056
        %v1102 = vpop.f32.mrf.mxu0
        %v1103 = vadd.f32 0.0, %v1102
        %v1104 = vpop.f32.mrf.mxu0
        %v1105 = vadd.f32 0.0, %v1104
        %v1106 = vpop.f32.mrf.mxu0
        %v1107 = vadd.f32 0.0, %v1106
        %v1108 = vpop.f32.mrf.mxu0
        %v1109 = vadd.f32 0.0, %v1108
        %1110 = vdwg.mxu0
        %1111 = vmatprep.subr.bf16.mxu0 0
        %1112 = vmatpush1.bf16.msra.mxu0 0
        %1113 = vmatprep.subr.bf16.mxu0 0
        %1114 = vmatpush1.bf16.msra.mxu0 0
        %1115 = vmatprep.subr.bf16.mxu0 0
        %1116 = vmatpush1.bf16.msra.mxu0 0
        %1117 = vmatprep.subr.bf16.mxu0 0
        %1118 = vmatpush1.bf16.msra.mxu0 0
        %1119 = vmatprep.subr.bf16.mxu0 0
        %1120 = vmatpush1.bf16.msra.mxu0 0
        %1121 = vmatprep.subr.bf16.mxu0 %v1039
        %1122 = vmatpush1.bf16.msra.mxu0 %v1038
        %1123 = vmatprep.subr.bf16.mxu0 %v1035
        %1124 = vmatpush1.bf16.msra.mxu0 %v1034
        %1125 = vmatprep.subr.bf16.mxu0 %v1031
        %1126 = vmatpush1.bf16.msra.mxu0 %v1030
        %1127 = vmatprep.subr.bf16.mxu0 0
        %1128 = vmatpush2.bf16.msra.mxu0 0
        %1129 = vmatprep.subr.bf16.mxu0 0
        %1130 = vmatpush2.bf16.msra.mxu0 0
        %1131 = vmatprep.subr.bf16.mxu0 0
        %1132 = vmatpush2.bf16.msra.mxu0 0
        %1133 = vmatprep.subr.bf16.mxu0 0
        %1134 = vmatpush2.bf16.msra.mxu0 0
        %1135 = vmatprep.subr.bf16.mxu0 0
        %1136 = vmatpush2.bf16.msra.mxu0 0
        %1137 = vmatprep.subr.bf16.mxu0 0
        %1138 = vmatpush2.bf16.msra.mxu0 0
        %1139 = vmatprep.subr.bf16.mxu0 0
        %1140 = vmatpush2.bf16.msra.mxu0 0
        %1141 = vmatprep.subr.bf16.mxu0 0
        %1142 = vmatpush2.bf16.msra.mxu0 0
        %1143 = vmatprep.mubr.bf16.mxu0 0
        %1144 = vmatmul.mubr.bf16.gmra.mxu0 %v1053
        %v1145 = vpop.f32.mrf.mxu0
        %v1146 = vadd.f32 0.0, %v1145
        %v1147 = vpop.f32.mrf.mxu0
        %v1148 = vadd.f32 0.0, %v1147
        %v1149 = vpop.f32.mrf.mxu0
        %v1150 = vadd.f32 0.0, %v1149
        %v1151 = vpop.f32.mrf.mxu0
        %v1152 = vadd.f32 0.0, %v1151
        %1153 = vmatprep.mubr.bf16.mxu0 0
        %1154 = vmatmul.mubr.bf16.gmra.mxu0 %v1056
        %v1155 = vpop.f32.mrf.mxu0
        %v1156 = vadd.f32 0.0, %v1155
        %v1157 = vpop.f32.mrf.mxu0
        %v1158 = vadd.f32 0.0, %v1157
        %v1159 = vpop.f32.mrf.mxu0
        %v1160 = vadd.f32 0.0, %v1159
        %v1161 = vpop.f32.mrf.mxu0
        %v1162 = vadd.f32 0.0, %v1161
        %1163 = vdwg.mxu0
        %v1164 = vadd.f32 %v836, %v1093
        %v1165 = vadd.f32 %v838, %v1095
        %v1166 = vadd.f32 %v889, %v1146
        %v1167 = vadd.f32 %v891, %v1148
        %v1168 = vadd.f32 %v840, %v1097
        %v1169 = vadd.f32 %v842, %v1099
        %v1170 = vadd.f32 %v893, %v1150
        %v1171 = vadd.f32 %v895, %v1152
        %v1172 = vadd.f32 %v846, %v1103
        %v1173 = vadd.f32 %v848, %v1105
        %v1174 = vadd.f32 %v899, %v1156
        %v1175 = vadd.f32 %v901, %v1158
        %v1176 = vadd.f32 %v850, %v1107
        %v1177 = vadd.f32 %v852, %v1109
        %v1178 = vadd.f32 %v903, %v1160
        %v1179 = vadd.f32 %v905, %v1162
        %v1180 = vld [vmem:[%s3] sm:$0xf]
        %v1182 = vlaneseq
        %v1183 = vshrl.u32 %v1182, 7
        %v1184 = vsub.s32 0, %v1183
        %v1185 = vrot.slane %v1180, %v1184
        %v1186 = vlaneseq
        %v1187 = vshrl.u32 %v1186, 7
        %v1188 = vsub.s32 1, %v1187
        %v1189 = vrot.slane %v1180, %v1188
        %v1190 = vlaneseq
        %v1191 = vshrl.u32 %v1190, 7
        %v1192 = vsub.s32 2, %v1191
        %v1193 = vrot.slane %v1180, %v1192
        %v1194 = vlaneseq
        %v1195 = vshrl.u32 %v1194, 7
        %v1196 = vsub.s32 3, %v1195
        %v1197 = vrot.slane %v1180, %v1196
        %v1202 = vadd.f32 %v1164, %v1185
        %v1203 = vadd.f32 %v1165, %v1189
        %v1204 = vadd.f32 %v1166, %v1193
        %v1205 = vadd.f32 %v1167, %v1197
        %v1206 = vadd.f32 %v1168, %v1185
        %v1207 = vadd.f32 %v1169, %v1189
        %v1208 = vadd.f32 %v1170, %v1193
        %v1209 = vadd.f32 %v1171, %v1197
        %v1210 = vadd.f32 %v1172, %v1185
        %v1211 = vadd.f32 %v1173, %v1189
        %v1212 = vadd.f32 %v1174, %v1193
        %v1213 = vadd.f32 %v1175, %v1197
        %v1214 = vadd.f32 %v1176, %v1185
        %v1215 = vadd.f32 %v1177, %v1189
        %v1216 = vadd.f32 %v1178, %v1193
        %v1217 = vadd.f32 %v1179, %v1197
        %v1218 = vxor.u32 %v1202, 2147483648
        %v1219 = vxor.u32 %v1203, 2147483648
        %v1220 = vxor.u32 %v1204, 2147483648
        %v1221 = vxor.u32 %v1205, 2147483648
        %v1222 = vxor.u32 %v1206, 2147483648
        %v1223 = vxor.u32 %v1207, 2147483648
        %v1224 = vxor.u32 %v1208, 2147483648
        %v1225 = vxor.u32 %v1209, 2147483648
        %v1226 = vxor.u32 %v1210, 2147483648
        %v1227 = vxor.u32 %v1211, 2147483648
        %v1228 = vxor.u32 %v1212, 2147483648
        %v1229 = vxor.u32 %v1213, 2147483648
        %v1230 = vxor.u32 %v1214, 2147483648
        %v1231 = vxor.u32 %v1215, 2147483648
        %v1232 = vxor.u32 %v1216, 2147483648
        %v1233 = vxor.u32 %v1217, 2147483648
        %v1234 = vmul.f32 %v1218, 1.442695
        %v1235 = vpow.pop %v1234
        %v1236 = vmul.f32 %v1219, 1.442695
        %v1237 = vpow.pop %v1236
        %v1238 = vmul.f32 %v1220, 1.442695
        %v1239 = vpow.pop %v1238
        %v1240 = vmul.f32 %v1221, 1.442695
        %v1241 = vpow.pop %v1240
        %v1242 = vmul.f32 %v1222, 1.442695
        %v1243 = vpow.pop %v1242
        %v1244 = vmul.f32 %v1223, 1.442695
        %v1245 = vpow.pop %v1244
        %v1246 = vmul.f32 %v1224, 1.442695
        %v1247 = vpow.pop %v1246
        %v1248 = vmul.f32 %v1225, 1.442695
        %v1249 = vpow.pop %v1248
        %v1250 = vmul.f32 %v1226, 1.442695
        %v1251 = vpow.pop %v1250
        %v1252 = vmul.f32 %v1227, 1.442695
        %v1253 = vpow.pop %v1252
        %v1254 = vmul.f32 %v1228, 1.442695
        %v1255 = vpow.pop %v1254
        %v1256 = vmul.f32 %v1229, 1.442695
        %v1257 = vpow.pop %v1256
        %v1258 = vmul.f32 %v1230, 1.442695
        %v1259 = vpow.pop %v1258
        %v1260 = vmul.f32 %v1231, 1.442695
        %v1261 = vpow.pop %v1260
        %v1262 = vmul.f32 %v1232, 1.442695
        %v1263 = vpow.pop %v1262
        %v1264 = vmul.f32 %v1233, 1.442695
        %v1265 = vpow.pop %v1264
        %v1266 = vadd.f32 %v1235, 1.0
        %v1267 = vadd.f32 %v1237, 1.0
        %v1268 = vadd.f32 %v1239, 1.0
        %v1269 = vadd.f32 %v1241, 1.0
        %v1270 = vadd.f32 %v1243, 1.0
        %v1271 = vadd.f32 %v1245, 1.0
        %v1272 = vadd.f32 %v1247, 1.0
        %v1273 = vadd.f32 %v1249, 1.0
        %v1274 = vadd.f32 %v1251, 1.0
        %v1275 = vadd.f32 %v1253, 1.0
        %v1276 = vadd.f32 %v1255, 1.0
        %v1277 = vadd.f32 %v1257, 1.0
        %v1278 = vadd.f32 %v1259, 1.0
        %v1279 = vadd.f32 %v1261, 1.0
        %v1280 = vadd.f32 %v1263, 1.0
        %v1281 = vadd.f32 %v1265, 1.0
        %v1282 = vrcp.pop %v1266
        %v1283 = vmul.f32 1.0, %v1282
        %v1284 = vrcp.pop %v1267
        %v1285 = vmul.f32 1.0, %v1284
        %v1286 = vrcp.pop %v1268
        %v1287 = vmul.f32 1.0, %v1286
        %v1288 = vrcp.pop %v1269
        %v1289 = vmul.f32 1.0, %v1288
        %v1290 = vrcp.pop %v1270
        %v1291 = vmul.f32 1.0, %v1290
        %v1292 = vrcp.pop %v1271
        %v1293 = vmul.f32 1.0, %v1292
        %v1294 = vrcp.pop %v1272
        %v1295 = vmul.f32 1.0, %v1294
        %v1296 = vrcp.pop %v1273
        %v1297 = vmul.f32 1.0, %v1296
        %v1298 = vrcp.pop %v1274
        %v1299 = vmul.f32 1.0, %v1298
        %v1300 = vrcp.pop %v1275
        %v1301 = vmul.f32 1.0, %v1300
        %v1302 = vrcp.pop %v1276
        %v1303 = vmul.f32 1.0, %v1302
        %v1304 = vrcp.pop %v1277
        %v1305 = vmul.f32 1.0, %v1304
        %v1306 = vrcp.pop %v1278
        %v1307 = vmul.f32 1.0, %v1306
        %v1308 = vrcp.pop %v1279
        %v1309 = vmul.f32 1.0, %v1308
        %v1310 = vrcp.pop %v1280
        %v1311 = vmul.f32 1.0, %v1310
        %v1312 = vrcp.pop %v1281
        %v1313 = vmul.f32 1.0, %v1312
        %v1314 = vmul.f32 %v1202, %v1283
        %v1315 = vmul.f32 %v1203, %v1285
        %v1316 = vmul.f32 %v1204, %v1287
        %v1317 = vmul.f32 %v1205, %v1289
        %v1318 = vmul.f32 %v1206, %v1291
        %v1319 = vmul.f32 %v1207, %v1293
        %v1320 = vmul.f32 %v1208, %v1295
        %v1321 = vmul.f32 %v1209, %v1297
        %v1322 = vmul.f32 %v1210, %v1299
        %v1323 = vmul.f32 %v1211, %v1301
        %v1324 = vmul.f32 %v1212, %v1303
        %v1325 = vmul.f32 %v1213, %v1305
        %v1326 = vmul.f32 %v1214, %v1307
        %v1327 = vmul.f32 %v1215, %v1309
        %v1328 = vmul.f32 %v1216, %v1311
        %v1329 = vmul.f32 %v1217, %v1313
        %v1330 = vpack.c.bf16 %v1318, %v1314
        %v1331 = vpack.c.bf16 %v1319, %v1315
        %v1332 = vpack.c.bf16 %v1320, %v1316
        %v1333 = vpack.c.bf16 %v1321, %v1317
        %v1334 = vpack.c.bf16 %v1326, %v1322
        %v1335 = vpack.c.bf16 %v1327, %v1323
        %v1336 = vpack.c.bf16 %v1328, %v1324
        %v1337 = vpack.c.bf16 %v1329, %v1325
        %v1338 = vld [vmem:[%s4] sm:$0xf]
        %v1339 = vld [vmem:[%s4 + $0x4] sm:$0xf]
        %v1342 = vunpack.c.l.b16 %v1338
        %v1343 = vunpack.c.l.b16 %v1339
        %v1344 = vpack.c.b16 %v1343, %v1342
        %v1346 = vsel %vm407, %v1344, 0
        %1348 = vmatprep.subr.bf16.mxu0 0
        %1349 = vmatpush1.bf16.msra.mxu0 0
        %1350 = vmatprep.subr.bf16.mxu0 0
        %1351 = vmatpush1.bf16.msra.mxu0 0
        %1352 = vmatprep.subr.bf16.mxu0 0
        %1353 = vmatpush1.bf16.msra.mxu0 0
        %1354 = vmatprep.subr.bf16.mxu0 0
        %1355 = vmatpush1.bf16.msra.mxu0 0
        %1356 = vmatprep.subr.bf16.mxu0 0
        %1357 = vmatpush1.bf16.msra.mxu0 0
        %1358 = vmatprep.subr.bf16.mxu0 0
        %1359 = vmatpush1.bf16.msra.mxu0 0
        %1360 = vmatprep.subr.bf16.mxu0 %v1335
        %1361 = vmatpush1.bf16.msra.mxu0 %v1334
        %1362 = vmatprep.subr.bf16.mxu0 %v1331
        %1363 = vmatpush1.bf16.msra.mxu0 %v1330
        %1364 = vmatprep.subr.bf16.mxu0 0
        %1365 = vmatpush2.bf16.msra.mxu0 0
        %1366 = vmatprep.subr.bf16.mxu0 0
        %1367 = vmatpush2.bf16.msra.mxu0 0
        %1368 = vmatprep.subr.bf16.mxu0 0
        %1369 = vmatpush2.bf16.msra.mxu0 0
        %1370 = vmatprep.subr.bf16.mxu0 0
        %1371 = vmatpush2.bf16.msra.mxu0 0
        %1372 = vmatprep.subr.bf16.mxu0 0
        %1373 = vmatpush2.bf16.msra.mxu0 0
        %1374 = vmatprep.subr.bf16.mxu0 0
        %1375 = vmatpush2.bf16.msra.mxu0 0
        %1376 = vmatprep.subr.bf16.mxu0 0
        %1377 = vmatpush2.bf16.msra.mxu0 0
        %1378 = vmatprep.subr.bf16.mxu0 0
        %1379 = vmatpush2.bf16.msra.mxu0 0
        %1380 = vmatprep.mubr.bf16.mxu0 0
        %1381 = vmatmul.mubr.bf16.gmra.mxu0 %v1346
        %v1382 = vpop.f32.mrf.mxu0
        %v1383 = vadd.f32 0.0, %v1382
        %v1384 = vpop.f32.mrf.mxu0
        %v1385 = vadd.f32 0.0, %v1384
        %v1386 = vpop.f32.mrf.mxu0
        %v1387 = vadd.f32 0.0, %v1386
        %v1388 = vpop.f32.mrf.mxu0
        %v1389 = vadd.f32 0.0, %v1388
        %1390 = vdwg.mxu0
        %1391 = vmatprep.subr.bf16.mxu0 0
        %1392 = vmatpush1.bf16.msra.mxu0 0
        %1393 = vmatprep.subr.bf16.mxu0 0
        %1394 = vmatpush1.bf16.msra.mxu0 0
        %1395 = vmatprep.subr.bf16.mxu0 0
        %1396 = vmatpush1.bf16.msra.mxu0 0
        %1397 = vmatprep.subr.bf16.mxu0 0
        %1398 = vmatpush1.bf16.msra.mxu0 0
        %1399 = vmatprep.subr.bf16.mxu0 0
        %1400 = vmatpush1.bf16.msra.mxu0 0
        %1401 = vmatprep.subr.bf16.mxu0 0
        %1402 = vmatpush1.bf16.msra.mxu0 0
        %1403 = vmatprep.subr.bf16.mxu0 %v1337
        %1404 = vmatpush1.bf16.msra.mxu0 %v1336
        %1405 = vmatprep.subr.bf16.mxu0 %v1333
        %1406 = vmatpush1.bf16.msra.mxu0 %v1332
        %1407 = vmatprep.subr.bf16.mxu0 0
        %1408 = vmatpush2.bf16.msra.mxu0 0
        %1409 = vmatprep.subr.bf16.mxu0 0
        %1410 = vmatpush2.bf16.msra.mxu0 0
        %1411 = vmatprep.subr.bf16.mxu0 0
        %1412 = vmatpush2.bf16.msra.mxu0 0
        %1413 = vmatprep.subr.bf16.mxu0 0
        %1414 = vmatpush2.bf16.msra.mxu0 0
        %1415 = vmatprep.subr.bf16.mxu0 0
        %1416 = vmatpush2.bf16.msra.mxu0 0
        %1417 = vmatprep.subr.bf16.mxu0 0
        %1418 = vmatpush2.bf16.msra.mxu0 0
        %1419 = vmatprep.subr.bf16.mxu0 0
        %1420 = vmatpush2.bf16.msra.mxu0 0
        %1421 = vmatprep.subr.bf16.mxu0 0
        %1422 = vmatpush2.bf16.msra.mxu0 0
        %1423 = vmatprep.mubr.bf16.mxu0 0
        %1424 = vmatmul.mubr.bf16.gmra.mxu0 %v1346
        %v1425 = vpop.f32.mrf.mxu0
        %v1426 = vadd.f32 0.0, %v1425
        %v1427 = vpop.f32.mrf.mxu0
        %v1428 = vadd.f32 0.0, %v1427
        %v1429 = vpop.f32.mrf.mxu0
        %v1430 = vadd.f32 0.0, %v1429
        %v1431 = vpop.f32.mrf.mxu0
        %v1432 = vadd.f32 0.0, %v1431
        %1433 = vdwg.mxu0
        %v1434 = vpack.c.bf16 %v1387, %v1383
        %v1435 = vpack.c.bf16 %v1389, %v1385
        %v1436 = vpack.c.bf16 %v1430, %v1426
        %v1437 = vpack.c.bf16 %v1432, %v1428
        %v1438 = vld [vmem:[#allocation2] sm:$0xff]
        %v1439 = vld [vmem:[#allocation2 + $0x8] sm:$0xff]
        %v1440 = vld [vmem:[#allocation2 + $0x10] sm:$0xff]
        %v1441 = vld [vmem:[#allocation2 + $0x18] sm:$0xff]
        %v1442 = vld [vmem:[#allocation2 + $0x20] sm:$0xff]
        %v1443 = vld [vmem:[#allocation2 + $0x28] sm:$0xff]
        %v1444 = vld [vmem:[#allocation2 + $0x30] sm:$0xff]
        %v1445 = vld [vmem:[#allocation2 + $0x38] sm:$0xff]
        %v1446 = vld [vmem:[#allocation2 + $0x40] sm:$0xff]
        %v1447 = vld [vmem:[#allocation2 + $0x48] sm:$0xff]
        %v1448 = vld [vmem:[#allocation2 + $0x50] sm:$0xff]
        %v1449 = vld [vmem:[#allocation2 + $0x58] sm:$0xff]
        %v1450 = vld [vmem:[#allocation2 + $0x60] sm:$0xff]
        %v1451 = vld [vmem:[#allocation2 + $0x68] sm:$0xff]
        %v1452 = vld [vmem:[#allocation2 + $0x70] sm:$0xff]
        %v1453 = vld [vmem:[#allocation2 + $0x78] sm:$0xff]
        %v1454 = vld [vmem:[#allocation2 + $0x80] sm:$0xff]
        %v1455 = vld [vmem:[#allocation2 + $0x88] sm:$0xff]
        %v1456 = vld [vmem:[#allocation2 + $0x90] sm:$0xff]
        %v1457 = vld [vmem:[#allocation2 + $0x98] sm:$0xff]
        %v1458 = vld [vmem:[#allocation2 + $0xa0] sm:$0xff]
        %v1459 = vld [vmem:[#allocation2 + $0xa8] sm:$0xff]
        %v1460 = vld [vmem:[#allocation2 + $0xb0] sm:$0xff]
        %v1461 = vld [vmem:[#allocation2 + $0xb8] sm:$0xff]
        %v1462 = vld [vmem:[#allocation2 + $0xc0] sm:$0xff]
        %v1463 = vld [vmem:[#allocation2 + $0xc8] sm:$0xff]
        %v1464 = vld [vmem:[#allocation2 + $0xd0] sm:$0xff]
        %v1465 = vld [vmem:[#allocation2 + $0xd8] sm:$0xff]
        %v1466 = vld [vmem:[#allocation2 + $0xe0] sm:$0xff]
        %v1467 = vld [vmem:[#allocation2 + $0xe8] sm:$0xff]
        %v1468 = vld [vmem:[#allocation2 + $0xf0] sm:$0xff]
        %v1469 = vld [vmem:[#allocation2 + $0xf8] sm:$0xff]
        %v1470 = vld [vmem:[#allocation2 + $0x100] sm:$0xff]
        %v1471 = vld [vmem:[#allocation2 + $0x108] sm:$0xff]
        %v1472 = vld [vmem:[#allocation2 + $0x110] sm:$0xff]
        %v1473 = vld [vmem:[#allocation2 + $0x118] sm:$0xff]
        %v1474 = vld [vmem:[#allocation2 + $0x120] sm:$0xff]
        %v1475 = vld [vmem:[#allocation2 + $0x128] sm:$0xff]
        %v1476 = vld [vmem:[#allocation2 + $0x130] sm:$0xff]
        %v1477 = vld [vmem:[#allocation2 + $0x138] sm:$0xff]
        %v1478 = vld [vmem:[#allocation2 + $0x140] sm:$0xff]
        %v1479 = vld [vmem:[#allocation2 + $0x148] sm:$0xff]
        %v1480 = vld [vmem:[#allocation2 + $0x150] sm:$0xff]
        %v1481 = vld [vmem:[#allocation2 + $0x158] sm:$0xff]
        %v1482 = vld [vmem:[#allocation2 + $0x160] sm:$0xff]
        %v1483 = vld [vmem:[#allocation2 + $0x168] sm:$0xff]
        %v1484 = vld [vmem:[#allocation2 + $0x170] sm:$0xff]
        %v1485 = vld [vmem:[#allocation2 + $0x178] sm:$0xff]
        %v1486 = vld [vmem:[#allocation2 + $0x180] sm:$0xff]
        %v1487 = vld [vmem:[#allocation2 + $0x188] sm:$0xff]
        %v1488 = vld [vmem:[#allocation2 + $0x190] sm:$0xff]
        %v1489 = vld [vmem:[#allocation2 + $0x198] sm:$0xff]
        %v1490 = vld [vmem:[#allocation2 + $0x1a0] sm:$0xff]
        %v1491 = vld [vmem:[#allocation2 + $0x1a8] sm:$0xff]
        %v1492 = vld [vmem:[#allocation2 + $0x1b0] sm:$0xff]
        %v1493 = vld [vmem:[#allocation2 + $0x1b8] sm:$0xff]
        %v1494 = vld [vmem:[#allocation2 + $0x1c0] sm:$0xff]
        %v1495 = vld [vmem:[#allocation2 + $0x1c8] sm:$0xff]
        %v1496 = vld [vmem:[#allocation2 + $0x1d0] sm:$0xff]
        %v1497 = vld [vmem:[#allocation2 + $0x1d8] sm:$0xff]
        %v1498 = vld [vmem:[#allocation2 + $0x1e0] sm:$0xff]
        %v1499 = vld [vmem:[#allocation2 + $0x1e8] sm:$0xff]
        %v1500 = vld [vmem:[#allocation2 + $0x1f0] sm:$0xff]
        %v1501 = vld [vmem:[#allocation2 + $0x1f8] sm:$0xff]
        %s1502 = scalar_lea.vmem %s4, 8
        %v1503 = vld [vmem:[%s1502] sm:$0xf]
        %v1504 = vld [vmem:[%s1502 + $0x4] sm:$0xf]
        %v1507 = vunpack.c.l.b16 %v1503
        %v1508 = vunpack.c.l.b16 %v1504
        %v1509 = vpack.c.b16 %v1508, %v1507
        %v1511 = vsel %vm407, %v1509, 0
        %1513 = vmatprep.subr.bf16.mxu0 0
        %1514 = vmatpush1.bf16.msra.mxu0 0
        %1515 = vmatprep.subr.bf16.mxu0 0
        %1516 = vmatpush1.bf16.msra.mxu0 0
        %1517 = vmatprep.subr.bf16.mxu0 0
        %1518 = vmatpush1.bf16.msra.mxu0 0
        %1519 = vmatprep.subr.bf16.mxu0 0
        %1520 = vmatpush1.bf16.msra.mxu0 0
        %1521 = vmatprep.subr.bf16.mxu0 0
        %1522 = vmatpush1.bf16.msra.mxu0 0
        %1523 = vmatprep.subr.bf16.mxu0 0
        %1524 = vmatpush1.bf16.msra.mxu0 0
        %1525 = vmatprep.subr.bf16.mxu0 %v1335
        %1526 = vmatpush1.bf16.msra.mxu0 %v1334
        %1527 = vmatprep.subr.bf16.mxu0 %v1331
        %1528 = vmatpush1.bf16.msra.mxu0 %v1330
        %1529 = vmatprep.subr.bf16.mxu0 0
        %1530 = vmatpush2.bf16.msra.mxu0 0
        %1531 = vmatprep.subr.bf16.mxu0 0
        %1532 = vmatpush2.bf16.msra.mxu0 0
        %1533 = vmatprep.subr.bf16.mxu0 0
        %1534 = vmatpush2.bf16.msra.mxu0 0
        %1535 = vmatprep.subr.bf16.mxu0 0
        %1536 = vmatpush2.bf16.msra.mxu0 0
        %1537 = vmatprep.subr.bf16.mxu0 0
        %1538 = vmatpush2.bf16.msra.mxu0 0
        %1539 = vmatprep.subr.bf16.mxu0 0
        %1540 = vmatpush2.bf16.msra.mxu0 0
        %1541 = vmatprep.subr.bf16.mxu0 0
        %1542 = vmatpush2.bf16.msra.mxu0 0
        %1543 = vmatprep.subr.bf16.mxu0 0
        %1544 = vmatpush2.bf16.msra.mxu0 0
        %1545 = vmatprep.mubr.bf16.mxu0 0
        %1546 = vmatmul.mubr.bf16.gmra.mxu0 %v1511
        %v1547 = vpop.f32.mrf.mxu0
        %v1548 = vadd.f32 0.0, %v1547
        %v1549 = vpop.f32.mrf.mxu0
        %v1550 = vadd.f32 0.0, %v1549
        %v1551 = vpop.f32.mrf.mxu0
        %v1552 = vadd.f32 0.0, %v1551
        %v1553 = vpop.f32.mrf.mxu0
        %v1554 = vadd.f32 0.0, %v1553
        %1555 = vdwg.mxu0
        %1556 = vmatprep.subr.bf16.mxu0 0
        %1557 = vmatpush1.bf16.msra.mxu0 0
        %1558 = vmatprep.subr.bf16.mxu0 0
        %1559 = vmatpush1.bf16.msra.mxu0 0
        %1560 = vmatprep.subr.bf16.mxu0 0
        %1561 = vmatpush1.bf16.msra.mxu0 0
        %1562 = vmatprep.subr.bf16.mxu0 0
        %1563 = vmatpush1.bf16.msra.mxu0 0
        %1564 = vmatprep.subr.bf16.mxu0 0
        %1565 = vmatpush1.bf16.msra.mxu0 0
        %1566 = vmatprep.subr.bf16.mxu0 0
        %1567 = vmatpush1.bf16.msra.mxu0 0
        %1568 = vmatprep.subr.bf16.mxu0 %v1337
        %1569 = vmatpush1.bf16.msra.mxu0 %v1336
        %1570 = vmatprep.subr.bf16.mxu0 %v1333
        %1571 = vmatpush1.bf16.msra.mxu0 %v1332
        %1572 = vmatprep.subr.bf16.mxu0 0
        %1573 = vmatpush2.bf16.msra.mxu0 0
        %1574 = vmatprep.subr.bf16.mxu0 0
        %1575 = vmatpush2.bf16.msra.mxu0 0
        %1576 = vmatprep.subr.bf16.mxu0 0
        %1577 = vmatpush2.bf16.msra.mxu0 0
        %1578 = vmatprep.subr.bf16.mxu0 0
        %1579 = vmatpush2.bf16.msra.mxu0 0
        %1580 = vmatprep.subr.bf16.mxu0 0
        %1581 = vmatpush2.bf16.msra.mxu0 0
        %1582 = vmatprep.subr.bf16.mxu0 0
        %1583 = vmatpush2.bf16.msra.mxu0 0
        %1584 = vmatprep.subr.bf16.mxu0 0
        %1585 = vmatpush2.bf16.msra.mxu0 0
        %1586 = vmatprep.subr.bf16.mxu0 0
        %1587 = vmatpush2.bf16.msra.mxu0 0
        %1588 = vmatprep.mubr.bf16.mxu0 0
        %1589 = vmatmul.mubr.bf16.gmra.mxu0 %v1511
        %v1590 = vpop.f32.mrf.mxu0
        %v1591 = vadd.f32 0.0, %v1590
        %v1592 = vpop.f32.mrf.mxu0
        %v1593 = vadd.f32 0.0, %v1592
        %v1594 = vpop.f32.mrf.mxu0
        %v1595 = vadd.f32 0.0, %v1594
        %v1596 = vpop.f32.mrf.mxu0
        %v1597 = vadd.f32 0.0, %v1596
        %1598 = vdwg.mxu0
        %v1599 = vpack.c.bf16 %v1552, %v1548
        %v1600 = vpack.c.bf16 %v1554, %v1550
        %v1601 = vpack.c.bf16 %v1595, %v1591
        %v1602 = vpack.c.bf16 %v1597, %v1593
        %s1603 = scalar_lea.vmem [#allocation2], 512
        %v1604 = vld [vmem:[%s1603] sm:$0xff]
        %v1605 = vld [vmem:[%s1603 + $0x8] sm:$0xff]
        %v1606 = vld [vmem:[%s1603 + $0x10] sm:$0xff]
        %v1607 = vld [vmem:[%s1603 + $0x18] sm:$0xff]
        %v1608 = vld [vmem:[%s1603 + $0x20] sm:$0xff]
        %v1609 = vld [vmem:[%s1603 + $0x28] sm:$0xff]
        %v1610 = vld [vmem:[%s1603 + $0x30] sm:$0xff]
        %v1611 = vld [vmem:[%s1603 + $0x38] sm:$0xff]
        %v1612 = vld [vmem:[%s1603 + $0x40] sm:$0xff]
        %v1613 = vld [vmem:[%s1603 + $0x48] sm:$0xff]
        %v1614 = vld [vmem:[%s1603 + $0x50] sm:$0xff]
        %v1615 = vld [vmem:[%s1603 + $0x58] sm:$0xff]
        %v1616 = vld [vmem:[%s1603 + $0x60] sm:$0xff]
        %v1617 = vld [vmem:[%s1603 + $0x68] sm:$0xff]
        %v1618 = vld [vmem:[%s1603 + $0x70] sm:$0xff]
        %v1619 = vld [vmem:[%s1603 + $0x78] sm:$0xff]
        %v1620 = vld [vmem:[%s1603 + $0x80] sm:$0xff]
        %v1621 = vld [vmem:[%s1603 + $0x88] sm:$0xff]
        %v1622 = vld [vmem:[%s1603 + $0x90] sm:$0xff]
        %v1623 = vld [vmem:[%s1603 + $0x98] sm:$0xff]
        %v1624 = vld [vmem:[%s1603 + $0xa0] sm:$0xff]
        %v1625 = vld [vmem:[%s1603 + $0xa8] sm:$0xff]
        %v1626 = vld [vmem:[%s1603 + $0xb0] sm:$0xff]
        %v1627 = vld [vmem:[%s1603 + $0xb8] sm:$0xff]
        %v1628 = vld [vmem:[%s1603 + $0xc0] sm:$0xff]
        %v1629 = vld [vmem:[%s1603 + $0xc8] sm:$0xff]
        %v1630 = vld [vmem:[%s1603 + $0xd0] sm:$0xff]
        %v1631 = vld [vmem:[%s1603 + $0xd8] sm:$0xff]
        %v1632 = vld [vmem:[%s1603 + $0xe0] sm:$0xff]
        %v1633 = vld [vmem:[%s1603 + $0xe8] sm:$0xff]
        %v1634 = vld [vmem:[%s1603 + $0xf0] sm:$0xff]
        %v1635 = vld [vmem:[%s1603 + $0xf8] sm:$0xff]
        %v1636 = vld [vmem:[%s1603 + $0x100] sm:$0xff]
        %v1637 = vld [vmem:[%s1603 + $0x108] sm:$0xff]
        %v1638 = vld [vmem:[%s1603 + $0x110] sm:$0xff]
        %v1639 = vld [vmem:[%s1603 + $0x118] sm:$0xff]
        %v1640 = vld [vmem:[%s1603 + $0x120] sm:$0xff]
        %v1641 = vld [vmem:[%s1603 + $0x128] sm:$0xff]
        %v1642 = vld [vmem:[%s1603 + $0x130] sm:$0xff]
        %v1643 = vld [vmem:[%s1603 + $0x138] sm:$0xff]
        %v1644 = vld [vmem:[%s1603 + $0x140] sm:$0xff]
        %v1645 = vld [vmem:[%s1603 + $0x148] sm:$0xff]
        %v1646 = vld [vmem:[%s1603 + $0x150] sm:$0xff]
        %v1647 = vld [vmem:[%s1603 + $0x158] sm:$0xff]
        %v1648 = vld [vmem:[%s1603 + $0x160] sm:$0xff]
        %v1649 = vld [vmem:[%s1603 + $0x168] sm:$0xff]
        %v1650 = vld [vmem:[%s1603 + $0x170] sm:$0xff]
        %v1651 = vld [vmem:[%s1603 + $0x178] sm:$0xff]
        %v1652 = vld [vmem:[%s1603 + $0x180] sm:$0xff]
        %v1653 = vld [vmem:[%s1603 + $0x188] sm:$0xff]
        %v1654 = vld [vmem:[%s1603 + $0x190] sm:$0xff]
        %v1655 = vld [vmem:[%s1603 + $0x198] sm:$0xff]
        %v1656 = vld [vmem:[%s1603 + $0x1a0] sm:$0xff]
        %v1657 = vld [vmem:[%s1603 + $0x1a8] sm:$0xff]
        %v1658 = vld [vmem:[%s1603 + $0x1b0] sm:$0xff]
        %v1659 = vld [vmem:[%s1603 + $0x1b8] sm:$0xff]
        %v1660 = vld [vmem:[%s1603 + $0x1c0] sm:$0xff]
        %v1661 = vld [vmem:[%s1603 + $0x1c8] sm:$0xff]
        %v1662 = vld [vmem:[%s1603 + $0x1d0] sm:$0xff]
        %v1663 = vld [vmem:[%s1603 + $0x1d8] sm:$0xff]
        %v1664 = vld [vmem:[%s1603 + $0x1e0] sm:$0xff]
        %v1665 = vld [vmem:[%s1603 + $0x1e8] sm:$0xff]
        %v1666 = vld [vmem:[%s1603 + $0x1f0] sm:$0xff]
        %v1667 = vld [vmem:[%s1603 + $0x1f8] sm:$0xff]
        %v1732 = vunpack.c.l.b16 %v1604
        %v1733 = vunpack.c.h.b16 %v1604
        %v1734 = vunpack.c.l.b16 %v1605
        %v1735 = vunpack.c.h.b16 %v1605
        %v1736 = vunpack.c.l.b16 %v1606
        %v1737 = vunpack.c.h.b16 %v1606
        %v1738 = vunpack.c.l.b16 %v1607
        %v1739 = vunpack.c.h.b16 %v1607
        %v1740 = vunpack.c.l.b16 %v1608
        %v1741 = vunpack.c.h.b16 %v1608
        %v1742 = vunpack.c.l.b16 %v1609
        %v1743 = vunpack.c.h.b16 %v1609
        %v1744 = vunpack.c.l.b16 %v1610
        %v1745 = vunpack.c.h.b16 %v1610
        %v1746 = vunpack.c.l.b16 %v1611
        %v1747 = vunpack.c.h.b16 %v1611
        %v1748 = vunpack.c.l.b16 %v1612
        %v1749 = vunpack.c.h.b16 %v1612
        %v1750 = vunpack.c.l.b16 %v1613
        %v1751 = vunpack.c.h.b16 %v1613
        %v1752 = vunpack.c.l.b16 %v1614
        %v1753 = vunpack.c.h.b16 %v1614
        %v1754 = vunpack.c.l.b16 %v1615
        %v1755 = vunpack.c.h.b16 %v1615
        %v1756 = vunpack.c.l.b16 %v1616
        %v1757 = vunpack.c.h.b16 %v1616
        %v1758 = vunpack.c.l.b16 %v1617
        %v1759 = vunpack.c.h.b16 %v1617
        %v1760 = vunpack.c.l.b16 %v1618
        %v1761 = vunpack.c.h.b16 %v1618
        %v1762 = vunpack.c.l.b16 %v1619
        %v1763 = vunpack.c.h.b16 %v1619
        %v1764 = vunpack.c.l.b16 %v1620
        %v1765 = vunpack.c.h.b16 %v1620
        %v1766 = vunpack.c.l.b16 %v1621
        %v1767 = vunpack.c.h.b16 %v1621
        %v1768 = vunpack.c.l.b16 %v1622
        %v1769 = vunpack.c.h.b16 %v1622
        %v1770 = vunpack.c.l.b16 %v1623
        %v1771 = vunpack.c.h.b16 %v1623
        %v1772 = vunpack.c.l.b16 %v1624
        %v1773 = vunpack.c.h.b16 %v1624
        %v1774 = vunpack.c.l.b16 %v1625
        %v1775 = vunpack.c.h.b16 %v1625
        %v1776 = vunpack.c.l.b16 %v1626
        %v1777 = vunpack.c.h.b16 %v1626
        %v1778 = vunpack.c.l.b16 %v1627
        %v1779 = vunpack.c.h.b16 %v1627
        %v1780 = vunpack.c.l.b16 %v1628
        %v1781 = vunpack.c.h.b16 %v1628
        %v1782 = vunpack.c.l.b16 %v1629
        %v1783 = vunpack.c.h.b16 %v1629
        %v1784 = vunpack.c.l.b16 %v1630
        %v1785 = vunpack.c.h.b16 %v1630
        %v1786 = vunpack.c.l.b16 %v1631
        %v1787 = vunpack.c.h.b16 %v1631
        %v1788 = vunpack.c.l.b16 %v1632
        %v1789 = vunpack.c.h.b16 %v1632
        %v1790 = vunpack.c.l.b16 %v1633
        %v1791 = vunpack.c.h.b16 %v1633
        %v1792 = vunpack.c.l.b16 %v1634
        %v1793 = vunpack.c.h.b16 %v1634
        %v1794 = vunpack.c.l.b16 %v1635
        %v1795 = vunpack.c.h.b16 %v1635
        %v1796 = vunpack.c.l.b16 %v1636
        %v1797 = vunpack.c.h.b16 %v1636
        %v1798 = vunpack.c.l.b16 %v1637
        %v1799 = vunpack.c.h.b16 %v1637
        %v1800 = vunpack.c.l.b16 %v1638
        %v1801 = vunpack.c.h.b16 %v1638
        %v1802 = vunpack.c.l.b16 %v1639
        %v1803 = vunpack.c.h.b16 %v1639
        %v1804 = vunpack.c.l.b16 %v1640
        %v1805 = vunpack.c.h.b16 %v1640
        %v1806 = vunpack.c.l.b16 %v1641
        %v1807 = vunpack.c.h.b16 %v1641
        %v1808 = vunpack.c.l.b16 %v1642
        %v1809 = vunpack.c.h.b16 %v1642
        %v1810 = vunpack.c.l.b16 %v1643
        %v1811 = vunpack.c.h.b16 %v1643
        %v1812 = vunpack.c.l.b16 %v1644
        %v1813 = vunpack.c.h.b16 %v1644
        %v1814 = vunpack.c.l.b16 %v1645
        %v1815 = vunpack.c.h.b16 %v1645
        %v1816 = vunpack.c.l.b16 %v1646
        %v1817 = vunpack.c.h.b16 %v1646
        %v1818 = vunpack.c.l.b16 %v1647
        %v1819 = vunpack.c.h.b16 %v1647
        %v1820 = vunpack.c.l.b16 %v1648
        %v1821 = vunpack.c.h.b16 %v1648
        %v1822 = vunpack.c.l.b16 %v1649
        %v1823 = vunpack.c.h.b16 %v1649
        %v1824 = vunpack.c.l.b16 %v1650
        %v1825 = vunpack.c.h.b16 %v1650
        %v1826 = vunpack.c.l.b16 %v1651
        %v1827 = vunpack.c.h.b16 %v1651
        %v1828 = vunpack.c.l.b16 %v1652
        %v1829 = vunpack.c.h.b16 %v1652
        %v1830 = vunpack.c.l.b16 %v1653
        %v1831 = vunpack.c.h.b16 %v1653
        %v1832 = vunpack.c.l.b16 %v1654
        %v1833 = vunpack.c.h.b16 %v1654
        %v1834 = vunpack.c.l.b16 %v1655
        %v1835 = vunpack.c.h.b16 %v1655
        %v1836 = vunpack.c.l.b16 %v1656
        %v1837 = vunpack.c.h.b16 %v1656
        %v1838 = vunpack.c.l.b16 %v1657
        %v1839 = vunpack.c.h.b16 %v1657
        %v1840 = vunpack.c.l.b16 %v1658
        %v1841 = vunpack.c.h.b16 %v1658
        %v1842 = vunpack.c.l.b16 %v1659
        %v1843 = vunpack.c.h.b16 %v1659
        %v1844 = vunpack.c.l.b16 %v1660
        %v1845 = vunpack.c.h.b16 %v1660
        %v1846 = vunpack.c.l.b16 %v1661
        %v1847 = vunpack.c.h.b16 %v1661
        %v1848 = vunpack.c.l.b16 %v1662
        %v1849 = vunpack.c.h.b16 %v1662
        %v1850 = vunpack.c.l.b16 %v1663
        %v1851 = vunpack.c.h.b16 %v1663
        %v1852 = vunpack.c.l.b16 %v1664
        %v1853 = vunpack.c.h.b16 %v1664
        %v1854 = vunpack.c.l.b16 %v1665
        %v1855 = vunpack.c.h.b16 %v1665
        %v1856 = vunpack.c.l.b16 %v1666
        %v1857 = vunpack.c.h.b16 %v1666
        %v1858 = vunpack.c.l.b16 %v1667
        %v1859 = vunpack.c.h.b16 %v1667
        %v1860 = vpack.c.b16 %v1734, %v1732
        %v1861 = vpack.c.b16 %v1735, %v1733
        %v1862 = vpack.c.b16 %v1738, %v1736
        %v1863 = vpack.c.b16 %v1739, %v1737
        %v1864 = vpack.c.b16 %v1742, %v1740
        %v1865 = vpack.c.b16 %v1743, %v1741
        %v1866 = vpack.c.b16 %v1746, %v1744
        %v1867 = vpack.c.b16 %v1747, %v1745
        %v1868 = vpack.c.b16 %v1750, %v1748
        %v1869 = vpack.c.b16 %v1751, %v1749
        %v1870 = vpack.c.b16 %v1754, %v1752
        %v1871 = vpack.c.b16 %v1755, %v1753
        %v1872 = vpack.c.b16 %v1758, %v1756
        %v1873 = vpack.c.b16 %v1759, %v1757
        %v1874 = vpack.c.b16 %v1762, %v1760
        %v1875 = vpack.c.b16 %v1763, %v1761
        %v1876 = vpack.c.b16 %v1766, %v1764
        %v1877 = vpack.c.b16 %v1767, %v1765
        %v1878 = vpack.c.b16 %v1770, %v1768
        %v1879 = vpack.c.b16 %v1771, %v1769
        %v1880 = vpack.c.b16 %v1774, %v1772
        %v1881 = vpack.c.b16 %v1775, %v1773
        %v1882 = vpack.c.b16 %v1778, %v1776
        %v1883 = vpack.c.b16 %v1779, %v1777
        %v1884 = vpack.c.b16 %v1782, %v1780
        %v1885 = vpack.c.b16 %v1783, %v1781
        %v1886 = vpack.c.b16 %v1786, %v1784
        %v1887 = vpack.c.b16 %v1787, %v1785
        %v1888 = vpack.c.b16 %v1790, %v1788
        %v1889 = vpack.c.b16 %v1791, %v1789
        %v1890 = vpack.c.b16 %v1794, %v1792
        %v1891 = vpack.c.b16 %v1795, %v1793
        %v1892 = vpack.c.b16 %v1798, %v1796
        %v1893 = vpack.c.b16 %v1799, %v1797
        %v1894 = vpack.c.b16 %v1802, %v1800
        %v1895 = vpack.c.b16 %v1803, %v1801
        %v1896 = vpack.c.b16 %v1806, %v1804
        %v1897 = vpack.c.b16 %v1807, %v1805
        %v1898 = vpack.c.b16 %v1810, %v1808
        %v1899 = vpack.c.b16 %v1811, %v1809
        %v1900 = vpack.c.b16 %v1814, %v1812
        %v1901 = vpack.c.b16 %v1815, %v1813
        %v1902 = vpack.c.b16 %v1818, %v1816
        %v1903 = vpack.c.b16 %v1819, %v1817
        %v1904 = vpack.c.b16 %v1822, %v1820
        %v1905 = vpack.c.b16 %v1823, %v1821
        %v1906 = vpack.c.b16 %v1826, %v1824
        %v1907 = vpack.c.b16 %v1827, %v1825
        %v1908 = vpack.c.b16 %v1830, %v1828
        %v1909 = vpack.c.b16 %v1831, %v1829
        %v1910 = vpack.c.b16 %v1834, %v1832
        %v1911 = vpack.c.b16 %v1835, %v1833
        %v1912 = vpack.c.b16 %v1838, %v1836
        %v1913 = vpack.c.b16 %v1839, %v1837
        %v1914 = vpack.c.b16 %v1842, %v1840
        %v1915 = vpack.c.b16 %v1843, %v1841
        %v1916 = vpack.c.b16 %v1846, %v1844
        %v1917 = vpack.c.b16 %v1847, %v1845
        %v1918 = vpack.c.b16 %v1850, %v1848
        %v1919 = vpack.c.b16 %v1851, %v1849
        %v1920 = vpack.c.b16 %v1854, %v1852
        %v1921 = vpack.c.b16 %v1855, %v1853
        %v1922 = vpack.c.b16 %v1858, %v1856
        %v1923 = vpack.c.b16 %v1859, %v1857
        %1988 = vmatprep.subr.bf16.mxu0 %v1875
        %1989 = vmatpush1.bf16.msra.mxu0 %v1874
        %1990 = vmatprep.subr.bf16.mxu0 %v1873
        %1991 = vmatpush1.bf16.msra.mxu0 %v1872
        %1992 = vmatprep.subr.bf16.mxu0 %v1871
        %1993 = vmatpush1.bf16.msra.mxu0 %v1870
        %1994 = vmatprep.subr.bf16.mxu0 %v1869
        %1995 = vmatpush1.bf16.msra.mxu0 %v1868
        %1996 = vmatprep.subr.bf16.mxu0 %v1867
        %1997 = vmatpush1.bf16.msra.mxu0 %v1866
        %1998 = vmatprep.subr.bf16.mxu0 %v1865
        %1999 = vmatpush1.bf16.msra.mxu0 %v1864
        %2000 = vmatprep.subr.bf16.mxu0 %v1863
        %2001 = vmatpush1.bf16.msra.mxu0 %v1862
        %2002 = vmatprep.subr.bf16.mxu0 %v1861
        %2003 = vmatpush1.bf16.msra.mxu0 %v1860
        %2004 = vmatprep.subr.bf16.mxu0 %v1891
        %2005 = vmatpush2.bf16.msra.mxu0 %v1890
        %2006 = vmatprep.subr.bf16.mxu0 %v1889
        %2007 = vmatpush2.bf16.msra.mxu0 %v1888
        %2008 = vmatprep.subr.bf16.mxu0 %v1887
        %2009 = vmatpush2.bf16.msra.mxu0 %v1886
        %2010 = vmatprep.subr.bf16.mxu0 %v1885
        %2011 = vmatpush2.bf16.msra.mxu0 %v1884
        %2012 = vmatprep.subr.bf16.mxu0 %v1883
        %2013 = vmatpush2.bf16.msra.mxu0 %v1882
        %2014 = vmatprep.subr.bf16.mxu0 %v1881
        %2015 = vmatpush2.bf16.msra.mxu0 %v1880
        %2016 = vmatprep.subr.bf16.mxu0 %v1879
        %2017 = vmatpush2.bf16.msra.mxu0 %v1878
        %2018 = vmatprep.subr.bf16.mxu0 %v1877
        %2019 = vmatpush2.bf16.msra.mxu0 %v1876
        %2020 = vmatprep.mubr.bf16.mxu0 %v1600
        %2021 = vmatmul.mubr.bf16.gmra.mxu0 %v1599
        %v2022 = vpop.f32.mrf.mxu0
        %v2023 = vadd.f32 0.0, %v2022
        %v2024 = vpop.f32.mrf.mxu0
        %v2025 = vadd.f32 0.0, %v2024
        %v2026 = vpop.f32.mrf.mxu0
        %v2027 = vadd.f32 0.0, %v2026
        %v2028 = vpop.f32.mrf.mxu0
        %v2029 = vadd.f32 0.0, %v2028
        %2030 = vdwg.mxu0
        %2031 = vmatprep.subr.bf16.mxu0 %v1907
        %2032 = vmatpush1.bf16.msra.mxu0 %v1906
        %2033 = vmatprep.subr.bf16.mxu0 %v1905
        %2034 = vmatpush1.bf16.msra.mxu0 %v1904
        %2035 = vmatprep.subr.bf16.mxu0 %v1903
        %2036 = vmatpush1.bf16.msra.mxu0 %v1902
        %2037 = vmatprep.subr.bf16.mxu0 %v1901
        %2038 = vmatpush1.bf16.msra.mxu0 %v1900
        %2039 = vmatprep.subr.bf16.mxu0 %v1899
        %2040 = vmatpush1.bf16.msra.mxu0 %v1898
        %2041 = vmatprep.subr.bf16.mxu0 %v1897
        %2042 = vmatpush1.bf16.msra.mxu0 %v1896
        %2043 = vmatprep.subr.bf16.mxu0 %v1895
        %2044 = vmatpush1.bf16.msra.mxu0 %v1894
        %2045 = vmatprep.subr.bf16.mxu0 %v1893
        %2046 = vmatpush1.bf16.msra.mxu0 %v1892
        %2047 = vmatprep.subr.bf16.mxu0 %v1923
        %2048 = vmatpush2.bf16.msra.mxu0 %v1922
        %2049 = vmatprep.subr.bf16.mxu0 %v1921
        %2050 = vmatpush2.bf16.msra.mxu0 %v1920
        %2051 = vmatprep.subr.bf16.mxu0 %v1919
        %2052 = vmatpush2.bf16.msra.mxu0 %v1918
        %2053 = vmatprep.subr.bf16.mxu0 %v1917
        %2054 = vmatpush2.bf16.msra.mxu0 %v1916
        %2055 = vmatprep.subr.bf16.mxu0 %v1915
        %2056 = vmatpush2.bf16.msra.mxu0 %v1914
        %2057 = vmatprep.subr.bf16.mxu0 %v1913
        %2058 = vmatpush2.bf16.msra.mxu0 %v1912
        %2059 = vmatprep.subr.bf16.mxu0 %v1911
        %2060 = vmatpush2.bf16.msra.mxu0 %v1910
        %2061 = vmatprep.subr.bf16.mxu0 %v1909
        %2062 = vmatpush2.bf16.msra.mxu0 %v1908
        %2063 = vmatprep.mubr.bf16.mxu0 %v1602
        %2064 = vmatmul.mubr.bf16.gmra.mxu0 %v1601
        %v2065 = vpop.f32.mrf.mxu0
        %v2066 = vadd.f32 %v2023, %v2065
        %v2067 = vpop.f32.mrf.mxu0
        %v2068 = vadd.f32 %v2025, %v2067
        %v2069 = vpop.f32.mrf.mxu0
        %v2070 = vadd.f32 %v2027, %v2069
        %v2071 = vpop.f32.mrf.mxu0
        %v2072 = vadd.f32 %v2029, %v2071
        %2073 = vdwg.mxu0
        %v2138 = vunpack.c.l.b16 %v1438
        %v2139 = vunpack.c.h.b16 %v1438
        %v2140 = vunpack.c.l.b16 %v1439
        %v2141 = vunpack.c.h.b16 %v1439
        %v2142 = vunpack.c.l.b16 %v1440
        %v2143 = vunpack.c.h.b16 %v1440
        %v2144 = vunpack.c.l.b16 %v1441
        %v2145 = vunpack.c.h.b16 %v1441
        %v2146 = vunpack.c.l.b16 %v1442
        %v2147 = vunpack.c.h.b16 %v1442
        %v2148 = vunpack.c.l.b16 %v1443
        %v2149 = vunpack.c.h.b16 %v1443
        %v2150 = vunpack.c.l.b16 %v1444
        %v2151 = vunpack.c.h.b16 %v1444
        %v2152 = vunpack.c.l.b16 %v1445
        %v2153 = vunpack.c.h.b16 %v1445
        %v2154 = vunpack.c.l.b16 %v1446
        %v2155 = vunpack.c.h.b16 %v1446
        %v2156 = vunpack.c.l.b16 %v1447
        %v2157 = vunpack.c.h.b16 %v1447
        %v2158 = vunpack.c.l.b16 %v1448
        %v2159 = vunpack.c.h.b16 %v1448
        %v2160 = vunpack.c.l.b16 %v1449
        %v2161 = vunpack.c.h.b16 %v1449
        %v2162 = vunpack.c.l.b16 %v1450
        %v2163 = vunpack.c.h.b16 %v1450
        %v2164 = vunpack.c.l.b16 %v1451
        %v2165 = vunpack.c.h.b16 %v1451
        %v2166 = vunpack.c.l.b16 %v1452
        %v2167 = vunpack.c.h.b16 %v1452
        %v2168 = vunpack.c.l.b16 %v1453
        %v2169 = vunpack.c.h.b16 %v1453
        %v2170 = vunpack.c.l.b16 %v1454
        %v2171 = vunpack.c.h.b16 %v1454
        %v2172 = vunpack.c.l.b16 %v1455
        %v2173 = vunpack.c.h.b16 %v1455
        %v2174 = vunpack.c.l.b16 %v1456
        %v2175 = vunpack.c.h.b16 %v1456
        %v2176 = vunpack.c.l.b16 %v1457
        %v2177 = vunpack.c.h.b16 %v1457
        %v2178 = vunpack.c.l.b16 %v1458
        %v2179 = vunpack.c.h.b16 %v1458
        %v2180 = vunpack.c.l.b16 %v1459
        %v2181 = vunpack.c.h.b16 %v1459
        %v2182 = vunpack.c.l.b16 %v1460
        %v2183 = vunpack.c.h.b16 %v1460
        %v2184 = vunpack.c.l.b16 %v1461
        %v2185 = vunpack.c.h.b16 %v1461
        %v2186 = vunpack.c.l.b16 %v1462
        %v2187 = vunpack.c.h.b16 %v1462
        %v2188 = vunpack.c.l.b16 %v1463
        %v2189 = vunpack.c.h.b16 %v1463
        %v2190 = vunpack.c.l.b16 %v1464
        %v2191 = vunpack.c.h.b16 %v1464
        %v2192 = vunpack.c.l.b16 %v1465
        %v2193 = vunpack.c.h.b16 %v1465
        %v2194 = vunpack.c.l.b16 %v1466
        %v2195 = vunpack.c.h.b16 %v1466
        %v2196 = vunpack.c.l.b16 %v1467
        %v2197 = vunpack.c.h.b16 %v1467
        %v2198 = vunpack.c.l.b16 %v1468
        %v2199 = vunpack.c.h.b16 %v1468
        %v2200 = vunpack.c.l.b16 %v1469
        %v2201 = vunpack.c.h.b16 %v1469
        %v2202 = vunpack.c.l.b16 %v1470
        %v2203 = vunpack.c.h.b16 %v1470
        %v2204 = vunpack.c.l.b16 %v1471
        %v2205 = vunpack.c.h.b16 %v1471
        %v2206 = vunpack.c.l.b16 %v1472
        %v2207 = vunpack.c.h.b16 %v1472
        %v2208 = vunpack.c.l.b16 %v1473
        %v2209 = vunpack.c.h.b16 %v1473
        %v2210 = vunpack.c.l.b16 %v1474
        %v2211 = vunpack.c.h.b16 %v1474
        %v2212 = vunpack.c.l.b16 %v1475
        %v2213 = vunpack.c.h.b16 %v1475
        %v2214 = vunpack.c.l.b16 %v1476
        %v2215 = vunpack.c.h.b16 %v1476
        %v2216 = vunpack.c.l.b16 %v1477
        %v2217 = vunpack.c.h.b16 %v1477
        %v2218 = vunpack.c.l.b16 %v1478
        %v2219 = vunpack.c.h.b16 %v1478
        %v2220 = vunpack.c.l.b16 %v1479
        %v2221 = vunpack.c.h.b16 %v1479
        %v2222 = vunpack.c.l.b16 %v1480
        %v2223 = vunpack.c.h.b16 %v1480
        %v2224 = vunpack.c.l.b16 %v1481
        %v2225 = vunpack.c.h.b16 %v1481
        %v2226 = vunpack.c.l.b16 %v1482
        %v2227 = vunpack.c.h.b16 %v1482
        %v2228 = vunpack.c.l.b16 %v1483
        %v2229 = vunpack.c.h.b16 %v1483
        %v2230 = vunpack.c.l.b16 %v1484
        %v2231 = vunpack.c.h.b16 %v1484
        %v2232 = vunpack.c.l.b16 %v1485
        %v2233 = vunpack.c.h.b16 %v1485
        %v2234 = vunpack.c.l.b16 %v1486
        %v2235 = vunpack.c.h.b16 %v1486
        %v2236 = vunpack.c.l.b16 %v1487
        %v2237 = vunpack.c.h.b16 %v1487
        %v2238 = vunpack.c.l.b16 %v1488
        %v2239 = vunpack.c.h.b16 %v1488
        %v2240 = vunpack.c.l.b16 %v1489
        %v2241 = vunpack.c.h.b16 %v1489
        %v2242 = vunpack.c.l.b16 %v1490
        %v2243 = vunpack.c.h.b16 %v1490
        %v2244 = vunpack.c.l.b16 %v1491
        %v2245 = vunpack.c.h.b16 %v1491
        %v2246 = vunpack.c.l.b16 %v1492
        %v2247 = vunpack.c.h.b16 %v1492
        %v2248 = vunpack.c.l.b16 %v1493
        %v2249 = vunpack.c.h.b16 %v1493
        %v2250 = vunpack.c.l.b16 %v1494
        %v2251 = vunpack.c.h.b16 %v1494
        %v2252 = vunpack.c.l.b16 %v1495
        %v2253 = vunpack.c.h.b16 %v1495
        %v2254 = vunpack.c.l.b16 %v1496
        %v2255 = vunpack.c.h.b16 %v1496
        %v2256 = vunpack.c.l.b16 %v1497
        %v2257 = vunpack.c.h.b16 %v1497
        %v2258 = vunpack.c.l.b16 %v1498
        %v2259 = vunpack.c.h.b16 %v1498
        %v2260 = vunpack.c.l.b16 %v1499
        %v2261 = vunpack.c.h.b16 %v1499
        %v2262 = vunpack.c.l.b16 %v1500
        %v2263 = vunpack.c.h.b16 %v1500
        %v2264 = vunpack.c.l.b16 %v1501
        %v2265 = vunpack.c.h.b16 %v1501
        %v2266 = vpack.c.b16 %v2140, %v2138
        %v2267 = vpack.c.b16 %v2141, %v2139
        %v2268 = vpack.c.b16 %v2144, %v2142
        %v2269 = vpack.c.b16 %v2145, %v2143
        %v2270 = vpack.c.b16 %v2148, %v2146
        %v2271 = vpack.c.b16 %v2149, %v2147
        %v2272 = vpack.c.b16 %v2152, %v2150
        %v2273 = vpack.c.b16 %v2153, %v2151
        %v2274 = vpack.c.b16 %v2156, %v2154
        %v2275 = vpack.c.b16 %v2157, %v2155
        %v2276 = vpack.c.b16 %v2160, %v2158
        %v2277 = vpack.c.b16 %v2161, %v2159
        %v2278 = vpack.c.b16 %v2164, %v2162
        %v2279 = vpack.c.b16 %v2165, %v2163
        %v2280 = vpack.c.b16 %v2168, %v2166
        %v2281 = vpack.c.b16 %v2169, %v2167
        %v2282 = vpack.c.b16 %v2172, %v2170
        %v2283 = vpack.c.b16 %v2173, %v2171
        %v2284 = vpack.c.b16 %v2176, %v2174
        %v2285 = vpack.c.b16 %v2177, %v2175
        %v2286 = vpack.c.b16 %v2180, %v2178
        %v2287 = vpack.c.b16 %v2181, %v2179
        %v2288 = vpack.c.b16 %v2184, %v2182
        %v2289 = vpack.c.b16 %v2185, %v2183
        %v2290 = vpack.c.b16 %v2188, %v2186
        %v2291 = vpack.c.b16 %v2189, %v2187
        %v2292 = vpack.c.b16 %v2192, %v2190
        %v2293 = vpack.c.b16 %v2193, %v2191
        %v2294 = vpack.c.b16 %v2196, %v2194
        %v2295 = vpack.c.b16 %v2197, %v2195
        %v2296 = vpack.c.b16 %v2200, %v2198
        %v2297 = vpack.c.b16 %v2201, %v2199
        %v2298 = vpack.c.b16 %v2204, %v2202
        %v2299 = vpack.c.b16 %v2205, %v2203
        %v2300 = vpack.c.b16 %v2208, %v2206
        %v2301 = vpack.c.b16 %v2209, %v2207
        %v2302 = vpack.c.b16 %v2212, %v2210
        %v2303 = vpack.c.b16 %v2213, %v2211
        %v2304 = vpack.c.b16 %v2216, %v2214
        %v2305 = vpack.c.b16 %v2217, %v2215
        %v2306 = vpack.c.b16 %v2220, %v2218
        %v2307 = vpack.c.b16 %v2221, %v2219
        %v2308 = vpack.c.b16 %v2224, %v2222
        %v2309 = vpack.c.b16 %v2225, %v2223
        %v2310 = vpack.c.b16 %v2228, %v2226
        %v2311 = vpack.c.b16 %v2229, %v2227
        %v2312 = vpack.c.b16 %v2232, %v2230
        %v2313 = vpack.c.b16 %v2233, %v2231
        %v2314 = vpack.c.b16 %v2236, %v2234
        %v2315 = vpack.c.b16 %v2237, %v2235
        %v2316 = vpack.c.b16 %v2240, %v2238
        %v2317 = vpack.c.b16 %v2241, %v2239
        %v2318 = vpack.c.b16 %v2244, %v2242
        %v2319 = vpack.c.b16 %v2245, %v2243
        %v2320 = vpack.c.b16 %v2248, %v2246
        %v2321 = vpack.c.b16 %v2249, %v2247
        %v2322 = vpack.c.b16 %v2252, %v2250
        %v2323 = vpack.c.b16 %v2253, %v2251
        %v2324 = vpack.c.b16 %v2256, %v2254
        %v2325 = vpack.c.b16 %v2257, %v2255
        %v2326 = vpack.c.b16 %v2260, %v2258
        %v2327 = vpack.c.b16 %v2261, %v2259
        %v2328 = vpack.c.b16 %v2264, %v2262
        %v2329 = vpack.c.b16 %v2265, %v2263
        %2394 = vmatprep.subr.bf16.mxu0 %v2281
        %2395 = vmatpush1.bf16.msra.mxu0 %v2280
        %2396 = vmatprep.subr.bf16.mxu0 %v2279
        %2397 = vmatpush1.bf16.msra.mxu0 %v2278
        %2398 = vmatprep.subr.bf16.mxu0 %v2277
        %2399 = vmatpush1.bf16.msra.mxu0 %v2276
        %2400 = vmatprep.subr.bf16.mxu0 %v2275
        %2401 = vmatpush1.bf16.msra.mxu0 %v2274
        %2402 = vmatprep.subr.bf16.mxu0 %v2273
        %2403 = vmatpush1.bf16.msra.mxu0 %v2272
        %2404 = vmatprep.subr.bf16.mxu0 %v2271
        %2405 = vmatpush1.bf16.msra.mxu0 %v2270
        %2406 = vmatprep.subr.bf16.mxu0 %v2269
        %2407 = vmatpush1.bf16.msra.mxu0 %v2268
        %2408 = vmatprep.subr.bf16.mxu0 %v2267
        %2409 = vmatpush1.bf16.msra.mxu0 %v2266
        %2410 = vmatprep.subr.bf16.mxu0 %v2297
        %2411 = vmatpush2.bf16.msra.mxu0 %v2296
        %2412 = vmatprep.subr.bf16.mxu0 %v2295
        %2413 = vmatpush2.bf16.msra.mxu0 %v2294
        %2414 = vmatprep.subr.bf16.mxu0 %v2293
        %2415 = vmatpush2.bf16.msra.mxu0 %v2292
        %2416 = vmatprep.subr.bf16.mxu0 %v2291
        %2417 = vmatpush2.bf16.msra.mxu0 %v2290
        %2418 = vmatprep.subr.bf16.mxu0 %v2289
        %2419 = vmatpush2.bf16.msra.mxu0 %v2288
        %2420 = vmatprep.subr.bf16.mxu0 %v2287
        %2421 = vmatpush2.bf16.msra.mxu0 %v2286
        %2422 = vmatprep.subr.bf16.mxu0 %v2285
        %2423 = vmatpush2.bf16.msra.mxu0 %v2284
        %2424 = vmatprep.subr.bf16.mxu0 %v2283
        %2425 = vmatpush2.bf16.msra.mxu0 %v2282
        %2426 = vmatprep.mubr.bf16.mxu0 %v1435
        %2427 = vmatmul.mubr.bf16.gmra.mxu0 %v1434
        %v2428 = vpop.f32.mrf.mxu0
        %v2429 = vadd.f32 %v2066, %v2428
        %v2430 = vpop.f32.mrf.mxu0
        %v2431 = vadd.f32 %v2068, %v2430
        %v2432 = vpop.f32.mrf.mxu0
        %v2433 = vadd.f32 %v2070, %v2432
        %v2434 = vpop.f32.mrf.mxu0
        %v2435 = vadd.f32 %v2072, %v2434
        %2436 = vdwg.mxu0
        %2437 = vmatprep.subr.bf16.mxu0 %v2313
        %2438 = vmatpush1.bf16.msra.mxu0 %v2312
        %2439 = vmatprep.subr.bf16.mxu0 %v2311
        %2440 = vmatpush1.bf16.msra.mxu0 %v2310
        %2441 = vmatprep.subr.bf16.mxu0 %v2309
        %2442 = vmatpush1.bf16.msra.mxu0 %v2308
        %2443 = vmatprep.subr.bf16.mxu0 %v2307
        %2444 = vmatpush1.bf16.msra.mxu0 %v2306
        %2445 = vmatprep.subr.bf16.mxu0 %v2305
        %2446 = vmatpush1.bf16.msra.mxu0 %v2304
        %2447 = vmatprep.subr.bf16.mxu0 %v2303
        %2448 = vmatpush1.bf16.msra.mxu0 %v2302
        %2449 = vmatprep.subr.bf16.mxu0 %v2301
        %2450 = vmatpush1.bf16.msra.mxu0 %v2300
        %2451 = vmatprep.subr.bf16.mxu0 %v2299
        %2452 = vmatpush1.bf16.msra.mxu0 %v2298
        %2453 = vmatprep.subr.bf16.mxu0 %v2329
        %2454 = vmatpush2.bf16.msra.mxu0 %v2328
        %2455 = vmatprep.subr.bf16.mxu0 %v2327
        %2456 = vmatpush2.bf16.msra.mxu0 %v2326
        %2457 = vmatprep.subr.bf16.mxu0 %v2325
        %2458 = vmatpush2.bf16.msra.mxu0 %v2324
        %2459 = vmatprep.subr.bf16.mxu0 %v2323
        %2460 = vmatpush2.bf16.msra.mxu0 %v2322
        %2461 = vmatprep.subr.bf16.mxu0 %v2321
        %2462 = vmatpush2.bf16.msra.mxu0 %v2320
        %2463 = vmatprep.subr.bf16.mxu0 %v2319
        %2464 = vmatpush2.bf16.msra.mxu0 %v2318
        %2465 = vmatprep.subr.bf16.mxu0 %v2317
        %2466 = vmatpush2.bf16.msra.mxu0 %v2316
        %2467 = vmatprep.subr.bf16.mxu0 %v2315
        %2468 = vmatpush2.bf16.msra.mxu0 %v2314
        %2469 = vmatprep.mubr.bf16.mxu0 %v1437
        %2470 = vmatmul.mubr.bf16.gmra.mxu0 %v1436
        %v2471 = vpop.f32.mrf.mxu0
        %v2472 = vadd.f32 %v2429, %v2471
        %v2473 = vpop.f32.mrf.mxu0
        %v2474 = vadd.f32 %v2431, %v2473
        %v2475 = vpop.f32.mrf.mxu0
        %v2476 = vadd.f32 %v2433, %v2475
        %v2477 = vpop.f32.mrf.mxu0
        %v2478 = vadd.f32 %v2435, %v2477
        %2479 = vdwg.mxu0
        %s2480 = scalar_lea.vmem %s4, 16
        %v2481 = vld [vmem:[%s2480] sm:$0xf]
        %v2482 = vld [vmem:[%s2480 + $0x4] sm:$0xf]
        %v2485 = vunpack.c.l.b16 %v2481
        %v2486 = vunpack.c.l.b16 %v2482
        %v2487 = vpack.c.b16 %v2486, %v2485
        %v2489 = vsel %vm407, %v2487, 0
        %2491 = vmatprep.subr.bf16.mxu0 0
        %2492 = vmatpush1.bf16.msra.mxu0 0
        %2493 = vmatprep.subr.bf16.mxu0 0
        %2494 = vmatpush1.bf16.msra.mxu0 0
        %2495 = vmatprep.subr.bf16.mxu0 0
        %2496 = vmatpush1.bf16.msra.mxu0 0
        %2497 = vmatprep.subr.bf16.mxu0 0
        %2498 = vmatpush1.bf16.msra.mxu0 0
        %2499 = vmatprep.subr.bf16.mxu0 0
        %2500 = vmatpush1.bf16.msra.mxu0 0
        %2501 = vmatprep.subr.bf16.mxu0 0
        %2502 = vmatpush1.bf16.msra.mxu0 0
        %2503 = vmatprep.subr.bf16.mxu0 %v1335
        %2504 = vmatpush1.bf16.msra.mxu0 %v1334
        %2505 = vmatprep.subr.bf16.mxu0 %v1331
        %2506 = vmatpush1.bf16.msra.mxu0 %v1330
        %2507 = vmatprep.subr.bf16.mxu0 0
        %2508 = vmatpush2.bf16.msra.mxu0 0
        %2509 = vmatprep.subr.bf16.mxu0 0
        %2510 = vmatpush2.bf16.msra.mxu0 0
        %2511 = vmatprep.subr.bf16.mxu0 0
        %2512 = vmatpush2.bf16.msra.mxu0 0
        %2513 = vmatprep.subr.bf16.mxu0 0
        %2514 = vmatpush2.bf16.msra.mxu0 0
        %2515 = vmatprep.subr.bf16.mxu0 0
        %2516 = vmatpush2.bf16.msra.mxu0 0
        %2517 = vmatprep.subr.bf16.mxu0 0
        %2518 = vmatpush2.bf16.msra.mxu0 0
        %2519 = vmatprep.subr.bf16.mxu0 0
        %2520 = vmatpush2.bf16.msra.mxu0 0
        %2521 = vmatprep.subr.bf16.mxu0 0
        %2522 = vmatpush2.bf16.msra.mxu0 0
        %2523 = vmatprep.mubr.bf16.mxu0 0
        %2524 = vmatmul.mubr.bf16.gmra.mxu0 %v2489
        %v2525 = vpop.f32.mrf.mxu0
        %v2526 = vadd.f32 0.0, %v2525
        %v2527 = vpop.f32.mrf.mxu0
        %v2528 = vadd.f32 0.0, %v2527
        %v2529 = vpop.f32.mrf.mxu0
        %v2530 = vadd.f32 0.0, %v2529
        %v2531 = vpop.f32.mrf.mxu0
        %v2532 = vadd.f32 0.0, %v2531
        %2533 = vdwg.mxu0
        %2534 = vmatprep.subr.bf16.mxu0 0
        %2535 = vmatpush1.bf16.msra.mxu0 0
        %2536 = vmatprep.subr.bf16.mxu0 0
        %2537 = vmatpush1.bf16.msra.mxu0 0
        %2538 = vmatprep.subr.bf16.mxu0 0
        %2539 = vmatpush1.bf16.msra.mxu0 0
        %2540 = vmatprep.subr.bf16.mxu0 0
        %2541 = vmatpush1.bf16.msra.mxu0 0
        %2542 = vmatprep.subr.bf16.mxu0 0
        %2543 = vmatpush1.bf16.msra.mxu0 0
        %2544 = vmatprep.subr.bf16.mxu0 0
        %2545 = vmatpush1.bf16.msra.mxu0 0
        %2546 = vmatprep.subr.bf16.mxu0 %v1337
        %2547 = vmatpush1.bf16.msra.mxu0 %v1336
        %2548 = vmatprep.subr.bf16.mxu0 %v1333
        %2549 = vmatpush1.bf16.msra.mxu0 %v1332
        %2550 = vmatprep.subr.bf16.mxu0 0
        %2551 = vmatpush2.bf16.msra.mxu0 0
        %2552 = vmatprep.subr.bf16.mxu0 0
        %2553 = vmatpush2.bf16.msra.mxu0 0
        %2554 = vmatprep.subr.bf16.mxu0 0
        %2555 = vmatpush2.bf16.msra.mxu0 0
        %2556 = vmatprep.subr.bf16.mxu0 0
        %2557 = vmatpush2.bf16.msra.mxu0 0
        %2558 = vmatprep.subr.bf16.mxu0 0
        %2559 = vmatpush2.bf16.msra.mxu0 0
        %2560 = vmatprep.subr.bf16.mxu0 0
        %2561 = vmatpush2.bf16.msra.mxu0 0
        %2562 = vmatprep.subr.bf16.mxu0 0
        %2563 = vmatpush2.bf16.msra.mxu0 0
        %2564 = vmatprep.subr.bf16.mxu0 0
        %2565 = vmatpush2.bf16.msra.mxu0 0
        %2566 = vmatprep.mubr.bf16.mxu0 0
        %2567 = vmatmul.mubr.bf16.gmra.mxu0 %v2489
        %v2568 = vpop.f32.mrf.mxu0
        %v2569 = vadd.f32 0.0, %v2568
        %v2570 = vpop.f32.mrf.mxu0
        %v2571 = vadd.f32 0.0, %v2570
        %v2572 = vpop.f32.mrf.mxu0
        %v2573 = vadd.f32 0.0, %v2572
        %v2574 = vpop.f32.mrf.mxu0
        %v2575 = vadd.f32 0.0, %v2574
        %2576 = vdwg.mxu0
        %v2577 = vpack.c.bf16 %v2530, %v2526
        %v2578 = vpack.c.bf16 %v2532, %v2528
        %v2579 = vpack.c.bf16 %v2573, %v2569
        %v2580 = vpack.c.bf16 %v2575, %v2571
        %s2581 = scalar_lea.vmem [#allocation2], 1024
        %v2582 = vld [vmem:[%s2581] sm:$0xff]
        %v2583 = vld [vmem:[%s2581 + $0x8] sm:$0xff]
        %v2584 = vld [vmem:[%s2581 + $0x10] sm:$0xff]
        %v2585 = vld [vmem:[%s2581 + $0x18] sm:$0xff]
        %v2586 = vld [vmem:[%s2581 + $0x20] sm:$0xff]
        %v2587 = vld [vmem:[%s2581 + $0x28] sm:$0xff]
        %v2588 = vld [vmem:[%s2581 + $0x30] sm:$0xff]
        %v2589 = vld [vmem:[%s2581 + $0x38] sm:$0xff]
        %v2590 = vld [vmem:[%s2581 + $0x40] sm:$0xff]
        %v2591 = vld [vmem:[%s2581 + $0x48] sm:$0xff]
        %v2592 = vld [vmem:[%s2581 + $0x50] sm:$0xff]
        %v2593 = vld [vmem:[%s2581 + $0x58] sm:$0xff]
        %v2594 = vld [vmem:[%s2581 + $0x60] sm:$0xff]
        %v2595 = vld [vmem:[%s2581 + $0x68] sm:$0xff]
        %v2596 = vld [vmem:[%s2581 + $0x70] sm:$0xff]
        %v2597 = vld [vmem:[%s2581 + $0x78] sm:$0xff]
        %v2598 = vld [vmem:[%s2581 + $0x80] sm:$0xff]
        %v2599 = vld [vmem:[%s2581 + $0x88] sm:$0xff]
        %v2600 = vld [vmem:[%s2581 + $0x90] sm:$0xff]
        %v2601 = vld [vmem:[%s2581 + $0x98] sm:$0xff]
        %v2602 = vld [vmem:[%s2581 + $0xa0] sm:$0xff]
        %v2603 = vld [vmem:[%s2581 + $0xa8] sm:$0xff]
        %v2604 = vld [vmem:[%s2581 + $0xb0] sm:$0xff]
        %v2605 = vld [vmem:[%s2581 + $0xb8] sm:$0xff]
        %v2606 = vld [vmem:[%s2581 + $0xc0] sm:$0xff]
        %v2607 = vld [vmem:[%s2581 + $0xc8] sm:$0xff]
        %v2608 = vld [vmem:[%s2581 + $0xd0] sm:$0xff]
        %v2609 = vld [vmem:[%s2581 + $0xd8] sm:$0xff]
        %v2610 = vld [vmem:[%s2581 + $0xe0] sm:$0xff]
        %v2611 = vld [vmem:[%s2581 + $0xe8] sm:$0xff]
        %v2612 = vld [vmem:[%s2581 + $0xf0] sm:$0xff]
        %v2613 = vld [vmem:[%s2581 + $0xf8] sm:$0xff]
        %v2614 = vld [vmem:[%s2581 + $0x100] sm:$0xff]
        %v2615 = vld [vmem:[%s2581 + $0x108] sm:$0xff]
        %v2616 = vld [vmem:[%s2581 + $0x110] sm:$0xff]
        %v2617 = vld [vmem:[%s2581 + $0x118] sm:$0xff]
        %v2618 = vld [vmem:[%s2581 + $0x120] sm:$0xff]
        %v2619 = vld [vmem:[%s2581 + $0x128] sm:$0xff]
        %v2620 = vld [vmem:[%s2581 + $0x130] sm:$0xff]
        %v2621 = vld [vmem:[%s2581 + $0x138] sm:$0xff]
        %v2622 = vld [vmem:[%s2581 + $0x140] sm:$0xff]
        %v2623 = vld [vmem:[%s2581 + $0x148] sm:$0xff]
        %v2624 = vld [vmem:[%s2581 + $0x150] sm:$0xff]
        %v2625 = vld [vmem:[%s2581 + $0x158] sm:$0xff]
        %v2626 = vld [vmem:[%s2581 + $0x160] sm:$0xff]
        %v2627 = vld [vmem:[%s2581 + $0x168] sm:$0xff]
        %v2628 = vld [vmem:[%s2581 + $0x170] sm:$0xff]
        %v2629 = vld [vmem:[%s2581 + $0x178] sm:$0xff]
        %v2630 = vld [vmem:[%s2581 + $0x180] sm:$0xff]
        %v2631 = vld [vmem:[%s2581 + $0x188] sm:$0xff]
        %v2632 = vld [vmem:[%s2581 + $0x190] sm:$0xff]
        %v2633 = vld [vmem:[%s2581 + $0x198] sm:$0xff]
        %v2634 = vld [vmem:[%s2581 + $0x1a0] sm:$0xff]
        %v2635 = vld [vmem:[%s2581 + $0x1a8] sm:$0xff]
        %v2636 = vld [vmem:[%s2581 + $0x1b0] sm:$0xff]
        %v2637 = vld [vmem:[%s2581 + $0x1b8] sm:$0xff]
        %v2638 = vld [vmem:[%s2581 + $0x1c0] sm:$0xff]
        %v2639 = vld [vmem:[%s2581 + $0x1c8] sm:$0xff]
        %v2640 = vld [vmem:[%s2581 + $0x1d0] sm:$0xff]
        %v2641 = vld [vmem:[%s2581 + $0x1d8] sm:$0xff]
        %v2642 = vld [vmem:[%s2581 + $0x1e0] sm:$0xff]
        %v2643 = vld [vmem:[%s2581 + $0x1e8] sm:$0xff]
        %v2644 = vld [vmem:[%s2581 + $0x1f0] sm:$0xff]
        %v2645 = vld [vmem:[%s2581 + $0x1f8] sm:$0xff]
        %v2710 = vunpack.c.l.b16 %v2582
        %v2711 = vunpack.c.h.b16 %v2582
        %v2712 = vunpack.c.l.b16 %v2583
        %v2713 = vunpack.c.h.b16 %v2583
        %v2714 = vunpack.c.l.b16 %v2584
        %v2715 = vunpack.c.h.b16 %v2584
        %v2716 = vunpack.c.l.b16 %v2585
        %v2717 = vunpack.c.h.b16 %v2585
        %v2718 = vunpack.c.l.b16 %v2586
        %v2719 = vunpack.c.h.b16 %v2586
        %v2720 = vunpack.c.l.b16 %v2587
        %v2721 = vunpack.c.h.b16 %v2587
        %v2722 = vunpack.c.l.b16 %v2588
        %v2723 = vunpack.c.h.b16 %v2588
        %v2724 = vunpack.c.l.b16 %v2589
        %v2725 = vunpack.c.h.b16 %v2589
        %v2726 = vunpack.c.l.b16 %v2590
        %v2727 = vunpack.c.h.b16 %v2590
        %v2728 = vunpack.c.l.b16 %v2591
        %v2729 = vunpack.c.h.b16 %v2591
        %v2730 = vunpack.c.l.b16 %v2592
        %v2731 = vunpack.c.h.b16 %v2592
        %v2732 = vunpack.c.l.b16 %v2593
        %v2733 = vunpack.c.h.b16 %v2593
        %v2734 = vunpack.c.l.b16 %v2594
        %v2735 = vunpack.c.h.b16 %v2594
        %v2736 = vunpack.c.l.b16 %v2595
        %v2737 = vunpack.c.h.b16 %v2595
        %v2738 = vunpack.c.l.b16 %v2596
        %v2739 = vunpack.c.h.b16 %v2596
        %v2740 = vunpack.c.l.b16 %v2597
        %v2741 = vunpack.c.h.b16 %v2597
        %v2742 = vunpack.c.l.b16 %v2598
        %v2743 = vunpack.c.h.b16 %v2598
        %v2744 = vunpack.c.l.b16 %v2599
        %v2745 = vunpack.c.h.b16 %v2599
        %v2746 = vunpack.c.l.b16 %v2600
        %v2747 = vunpack.c.h.b16 %v2600
        %v2748 = vunpack.c.l.b16 %v2601
        %v2749 = vunpack.c.h.b16 %v2601
        %v2750 = vunpack.c.l.b16 %v2602
        %v2751 = vunpack.c.h.b16 %v2602
        %v2752 = vunpack.c.l.b16 %v2603
        %v2753 = vunpack.c.h.b16 %v2603
        %v2754 = vunpack.c.l.b16 %v2604
        %v2755 = vunpack.c.h.b16 %v2604
        %v2756 = vunpack.c.l.b16 %v2605
        %v2757 = vunpack.c.h.b16 %v2605
        %v2758 = vunpack.c.l.b16 %v2606
        %v2759 = vunpack.c.h.b16 %v2606
        %v2760 = vunpack.c.l.b16 %v2607
        %v2761 = vunpack.c.h.b16 %v2607
        %v2762 = vunpack.c.l.b16 %v2608
        %v2763 = vunpack.c.h.b16 %v2608
        %v2764 = vunpack.c.l.b16 %v2609
        %v2765 = vunpack.c.h.b16 %v2609
        %v2766 = vunpack.c.l.b16 %v2610
        %v2767 = vunpack.c.h.b16 %v2610
        %v2768 = vunpack.c.l.b16 %v2611
        %v2769 = vunpack.c.h.b16 %v2611
        %v2770 = vunpack.c.l.b16 %v2612
        %v2771 = vunpack.c.h.b16 %v2612
        %v2772 = vunpack.c.l.b16 %v2613
        %v2773 = vunpack.c.h.b16 %v2613
        %v2774 = vunpack.c.l.b16 %v2614
        %v2775 = vunpack.c.h.b16 %v2614
        %v2776 = vunpack.c.l.b16 %v2615
        %v2777 = vunpack.c.h.b16 %v2615
        %v2778 = vunpack.c.l.b16 %v2616
        %v2779 = vunpack.c.h.b16 %v2616
        %v2780 = vunpack.c.l.b16 %v2617
        %v2781 = vunpack.c.h.b16 %v2617
        %v2782 = vunpack.c.l.b16 %v2618
        %v2783 = vunpack.c.h.b16 %v2618
        %v2784 = vunpack.c.l.b16 %v2619
        %v2785 = vunpack.c.h.b16 %v2619
        %v2786 = vunpack.c.l.b16 %v2620
        %v2787 = vunpack.c.h.b16 %v2620
        %v2788 = vunpack.c.l.b16 %v2621
        %v2789 = vunpack.c.h.b16 %v2621
        %v2790 = vunpack.c.l.b16 %v2622
        %v2791 = vunpack.c.h.b16 %v2622
        %v2792 = vunpack.c.l.b16 %v2623
        %v2793 = vunpack.c.h.b16 %v2623
        %v2794 = vunpack.c.l.b16 %v2624
        %v2795 = vunpack.c.h.b16 %v2624
        %v2796 = vunpack.c.l.b16 %v2625
        %v2797 = vunpack.c.h.b16 %v2625
        %v2798 = vunpack.c.l.b16 %v2626
        %v2799 = vunpack.c.h.b16 %v2626
        %v2800 = vunpack.c.l.b16 %v2627
        %v2801 = vunpack.c.h.b16 %v2627
        %v2802 = vunpack.c.l.b16 %v2628
        %v2803 = vunpack.c.h.b16 %v2628
        %v2804 = vunpack.c.l.b16 %v2629
        %v2805 = vunpack.c.h.b16 %v2629
        %v2806 = vunpack.c.l.b16 %v2630
        %v2807 = vunpack.c.h.b16 %v2630
        %v2808 = vunpack.c.l.b16 %v2631
        %v2809 = vunpack.c.h.b16 %v2631
        %v2810 = vunpack.c.l.b16 %v2632
        %v2811 = vunpack.c.h.b16 %v2632
        %v2812 = vunpack.c.l.b16 %v2633
        %v2813 = vunpack.c.h.b16 %v2633
        %v2814 = vunpack.c.l.b16 %v2634
        %v2815 = vunpack.c.h.b16 %v2634
        %v2816 = vunpack.c.l.b16 %v2635
        %v2817 = vunpack.c.h.b16 %v2635
        %v2818 = vunpack.c.l.b16 %v2636
        %v2819 = vunpack.c.h.b16 %v2636
        %v2820 = vunpack.c.l.b16 %v2637
        %v2821 = vunpack.c.h.b16 %v2637
        %v2822 = vunpack.c.l.b16 %v2638
        %v2823 = vunpack.c.h.b16 %v2638
        %v2824 = vunpack.c.l.b16 %v2639
        %v2825 = vunpack.c.h.b16 %v2639
        %v2826 = vunpack.c.l.b16 %v2640
        %v2827 = vunpack.c.h.b16 %v2640
        %v2828 = vunpack.c.l.b16 %v2641
        %v2829 = vunpack.c.h.b16 %v2641
        %v2830 = vunpack.c.l.b16 %v2642
        %v2831 = vunpack.c.h.b16 %v2642
        %v2832 = vunpack.c.l.b16 %v2643
        %v2833 = vunpack.c.h.b16 %v2643
        %v2834 = vunpack.c.l.b16 %v2644
        %v2835 = vunpack.c.h.b16 %v2644
        %v2836 = vunpack.c.l.b16 %v2645
        %v2837 = vunpack.c.h.b16 %v2645
        %v2838 = vpack.c.b16 %v2712, %v2710
        %v2839 = vpack.c.b16 %v2713, %v2711
        %v2840 = vpack.c.b16 %v2716, %v2714
        %v2841 = vpack.c.b16 %v2717, %v2715
        %v2842 = vpack.c.b16 %v2720, %v2718
        %v2843 = vpack.c.b16 %v2721, %v2719
        %v2844 = vpack.c.b16 %v2724, %v2722
        %v2845 = vpack.c.b16 %v2725, %v2723
        %v2846 = vpack.c.b16 %v2728, %v2726
        %v2847 = vpack.c.b16 %v2729, %v2727
        %v2848 = vpack.c.b16 %v2732, %v2730
        %v2849 = vpack.c.b16 %v2733, %v2731
        %v2850 = vpack.c.b16 %v2736, %v2734
        %v2851 = vpack.c.b16 %v2737, %v2735
        %v2852 = vpack.c.b16 %v2740, %v2738
        %v2853 = vpack.c.b16 %v2741, %v2739
        %v2854 = vpack.c.b16 %v2744, %v2742
        %v2855 = vpack.c.b16 %v2745, %v2743
        %v2856 = vpack.c.b16 %v2748, %v2746
        %v2857 = vpack.c.b16 %v2749, %v2747
        %v2858 = vpack.c.b16 %v2752, %v2750
        %v2859 = vpack.c.b16 %v2753, %v2751
        %v2860 = vpack.c.b16 %v2756, %v2754
        %v2861 = vpack.c.b16 %v2757, %v2755
        %v2862 = vpack.c.b16 %v2760, %v2758
        %v2863 = vpack.c.b16 %v2761, %v2759
        %v2864 = vpack.c.b16 %v2764, %v2762
        %v2865 = vpack.c.b16 %v2765, %v2763
        %v2866 = vpack.c.b16 %v2768, %v2766
        %v2867 = vpack.c.b16 %v2769, %v2767
        %v2868 = vpack.c.b16 %v2772, %v2770
        %v2869 = vpack.c.b16 %v2773, %v2771
        %v2870 = vpack.c.b16 %v2776, %v2774
        %v2871 = vpack.c.b16 %v2777, %v2775
        %v2872 = vpack.c.b16 %v2780, %v2778
        %v2873 = vpack.c.b16 %v2781, %v2779
        %v2874 = vpack.c.b16 %v2784, %v2782
        %v2875 = vpack.c.b16 %v2785, %v2783
        %v2876 = vpack.c.b16 %v2788, %v2786
        %v2877 = vpack.c.b16 %v2789, %v2787
        %v2878 = vpack.c.b16 %v2792, %v2790
        %v2879 = vpack.c.b16 %v2793, %v2791
        %v2880 = vpack.c.b16 %v2796, %v2794
        %v2881 = vpack.c.b16 %v2797, %v2795
        %v2882 = vpack.c.b16 %v2800, %v2798
        %v2883 = vpack.c.b16 %v2801, %v2799
        %v2884 = vpack.c.b16 %v2804, %v2802
        %v2885 = vpack.c.b16 %v2805, %v2803
        %v2886 = vpack.c.b16 %v2808, %v2806
        %v2887 = vpack.c.b16 %v2809, %v2807
        %v2888 = vpack.c.b16 %v2812, %v2810
        %v2889 = vpack.c.b16 %v2813, %v2811
        %v2890 = vpack.c.b16 %v2816, %v2814
        %v2891 = vpack.c.b16 %v2817, %v2815
        %v2892 = vpack.c.b16 %v2820, %v2818
        %v2893 = vpack.c.b16 %v2821, %v2819
        %v2894 = vpack.c.b16 %v2824, %v2822
        %v2895 = vpack.c.b16 %v2825, %v2823
        %v2896 = vpack.c.b16 %v2828, %v2826
        %v2897 = vpack.c.b16 %v2829, %v2827
        %v2898 = vpack.c.b16 %v2832, %v2830
        %v2899 = vpack.c.b16 %v2833, %v2831
        %v2900 = vpack.c.b16 %v2836, %v2834
        %v2901 = vpack.c.b16 %v2837, %v2835
        %2966 = vmatprep.subr.bf16.mxu0 %v2853
        %2967 = vmatpush1.bf16.msra.mxu0 %v2852
        %2968 = vmatprep.subr.bf16.mxu0 %v2851
        %2969 = vmatpush1.bf16.msra.mxu0 %v2850
        %2970 = vmatprep.subr.bf16.mxu0 %v2849
        %2971 = vmatpush1.bf16.msra.mxu0 %v2848
        %2972 = vmatprep.subr.bf16.mxu0 %v2847
        %2973 = vmatpush1.bf16.msra.mxu0 %v2846
        %2974 = vmatprep.subr.bf16.mxu0 %v2845
        %2975 = vmatpush1.bf16.msra.mxu0 %v2844
        %2976 = vmatprep.subr.bf16.mxu0 %v2843
        %2977 = vmatpush1.bf16.msra.mxu0 %v2842
        %2978 = vmatprep.subr.bf16.mxu0 %v2841
        %2979 = vmatpush1.bf16.msra.mxu0 %v2840
        %2980 = vmatprep.subr.bf16.mxu0 %v2839
        %2981 = vmatpush1.bf16.msra.mxu0 %v2838
        %2982 = vmatprep.subr.bf16.mxu0 %v2869
        %2983 = vmatpush2.bf16.msra.mxu0 %v2868
        %2984 = vmatprep.subr.bf16.mxu0 %v2867
        %2985 = vmatpush2.bf16.msra.mxu0 %v2866
        %2986 = vmatprep.subr.bf16.mxu0 %v2865
        %2987 = vmatpush2.bf16.msra.mxu0 %v2864
        %2988 = vmatprep.subr.bf16.mxu0 %v2863
        %2989 = vmatpush2.bf16.msra.mxu0 %v2862
        %2990 = vmatprep.subr.bf16.mxu0 %v2861
        %2991 = vmatpush2.bf16.msra.mxu0 %v2860
        %2992 = vmatprep.subr.bf16.mxu0 %v2859
        %2993 = vmatpush2.bf16.msra.mxu0 %v2858
        %2994 = vmatprep.subr.bf16.mxu0 %v2857
        %2995 = vmatpush2.bf16.msra.mxu0 %v2856
        %2996 = vmatprep.subr.bf16.mxu0 %v2855
        %2997 = vmatpush2.bf16.msra.mxu0 %v2854
        %2998 = vmatprep.mubr.bf16.mxu0 %v2578
        %2999 = vmatmul.mubr.bf16.gmra.mxu0 %v2577
        %v3000 = vpop.f32.mrf.mxu0
        %v3001 = vadd.f32 0.0, %v3000
        %v3002 = vpop.f32.mrf.mxu0
        %v3003 = vadd.f32 0.0, %v3002
        %v3004 = vpop.f32.mrf.mxu0
        %v3005 = vadd.f32 0.0, %v3004
        %v3006 = vpop.f32.mrf.mxu0
        %v3007 = vadd.f32 0.0, %v3006
        %3008 = vdwg.mxu0
        %3009 = vmatprep.subr.bf16.mxu0 %v2885
        %3010 = vmatpush1.bf16.msra.mxu0 %v2884
        %3011 = vmatprep.subr.bf16.mxu0 %v2883
        %3012 = vmatpush1.bf16.msra.mxu0 %v2882
        %3013 = vmatprep.subr.bf16.mxu0 %v2881
        %3014 = vmatpush1.bf16.msra.mxu0 %v2880
        %3015 = vmatprep.subr.bf16.mxu0 %v2879
        %3016 = vmatpush1.bf16.msra.mxu0 %v2878
        %3017 = vmatprep.subr.bf16.mxu0 %v2877
        %3018 = vmatpush1.bf16.msra.mxu0 %v2876
        %3019 = vmatprep.subr.bf16.mxu0 %v2875
        %3020 = vmatpush1.bf16.msra.mxu0 %v2874
        %3021 = vmatprep.subr.bf16.mxu0 %v2873
        %3022 = vmatpush1.bf16.msra.mxu0 %v2872
        %3023 = vmatprep.subr.bf16.mxu0 %v2871
        %3024 = vmatpush1.bf16.msra.mxu0 %v2870
        %3025 = vmatprep.subr.bf16.mxu0 %v2901
        %3026 = vmatpush2.bf16.msra.mxu0 %v2900
        %3027 = vmatprep.subr.bf16.mxu0 %v2899
        %3028 = vmatpush2.bf16.msra.mxu0 %v2898
        %3029 = vmatprep.subr.bf16.mxu0 %v2897
        %3030 = vmatpush2.bf16.msra.mxu0 %v2896
        %3031 = vmatprep.subr.bf16.mxu0 %v2895
        %3032 = vmatpush2.bf16.msra.mxu0 %v2894
        %3033 = vmatprep.subr.bf16.mxu0 %v2893
        %3034 = vmatpush2.bf16.msra.mxu0 %v2892
        %3035 = vmatprep.subr.bf16.mxu0 %v2891
        %3036 = vmatpush2.bf16.msra.mxu0 %v2890
        %3037 = vmatprep.subr.bf16.mxu0 %v2889
        %3038 = vmatpush2.bf16.msra.mxu0 %v2888
        %3039 = vmatprep.subr.bf16.mxu0 %v2887
        %3040 = vmatpush2.bf16.msra.mxu0 %v2886
        %3041 = vmatprep.mubr.bf16.mxu0 %v2580
        %3042 = vmatmul.mubr.bf16.gmra.mxu0 %v2579
        %v3043 = vpop.f32.mrf.mxu0
        %v3044 = vadd.f32 %v3001, %v3043
        %v3045 = vpop.f32.mrf.mxu0
        %v3046 = vadd.f32 %v3003, %v3045
        %v3047 = vpop.f32.mrf.mxu0
        %v3048 = vadd.f32 %v3005, %v3047
        %v3049 = vpop.f32.mrf.mxu0
        %v3050 = vadd.f32 %v3007, %v3049
        %3051 = vdwg.mxu0
        %v3052 = vadd.f32 %v2472, %v3044
        %v3053 = vadd.f32 %v2474, %v3046
        %v3054 = vadd.f32 %v2476, %v3048
        %v3055 = vadd.f32 %v2478, %v3050
        %v3056 = vld [vmem:[%s6] sm:$0x3]
        %v3058 = vlaneseq
        %v3059 = vshrl.u32 %v3058, 7
        %v3060 = vsub.s32 0, %v3059
        %v3061 = vrot.slane %v3056, %v3060
        %v3062 = vlaneseq
        %v3063 = vshrl.u32 %v3062, 7
        %v3064 = vsub.s32 1, %v3063
        %v3065 = vrot.slane %v3056, %v3064
        %v3068 = vadd.f32 %v3052, %v3061
        %v3069 = vadd.f32 %v3053, %v3065
        %v3070 = vadd.f32 %v3054, %v3061
        %v3071 = vadd.f32 %v3055, %v3065
        %v3072 = vxor.u32 %v3068, 2147483648
        %v3073 = vxor.u32 %v3069, 2147483648
        %v3074 = vxor.u32 %v3070, 2147483648
        %v3075 = vxor.u32 %v3071, 2147483648
        %v3076 = vmul.f32 %v3072, 1.442695
        %v3077 = vpow.pop %v3076
        %v3078 = vmul.f32 %v3073, 1.442695
        %v3079 = vpow.pop %v3078
        %v3080 = vmul.f32 %v3074, 1.442695
        %v3081 = vpow.pop %v3080
        %v3082 = vmul.f32 %v3075, 1.442695
        %v3083 = vpow.pop %v3082
        %v3084 = vadd.f32 %v3077, 1.0
        %v3085 = vadd.f32 %v3079, 1.0
        %v3086 = vadd.f32 %v3081, 1.0
        %v3087 = vadd.f32 %v3083, 1.0
        %v3088 = vrcp.pop %v3084
        %v3089 = vmul.f32 1.0, %v3088
        %v3090 = vrcp.pop %v3085
        %v3091 = vmul.f32 1.0, %v3090
        %v3092 = vrcp.pop %v3086
        %v3093 = vmul.f32 1.0, %v3092
        %v3094 = vrcp.pop %v3087
        %v3095 = vmul.f32 1.0, %v3094
        %v3096 = vmul.f32 %v3068, %v3089
        %v3097 = vmul.f32 %v3069, %v3091
        %v3098 = vmul.f32 %v3070, %v3093
        %v3099 = vmul.f32 %v3071, %v3095
        %v3100 = vpack.c.bf16 %v3098, %v3096
        %v3101 = vpack.c.bf16 %v3099, %v3097
        %v3102 = vld [vmem:[%s7] sm:$0xf]
        %v3103 = vld [vmem:[%s7 + $0x4] sm:$0xf]
        %v3106 = vunpack.c.l.b16 %v3102
        %v3107 = vunpack.c.l.b16 %v3103
        %v3108 = vpack.c.b16 %v3107, %v3106
        %vm3109 = vcmask 130048
        %v3111 = vsel %vm3109, %v3108, 0
        %3113 = vmatprep.subr.bf16.mxu0 0
        %3114 = vmatpush1.bf16.msra.mxu0 0
        %3115 = vmatprep.subr.bf16.mxu0 0
        %3116 = vmatpush1.bf16.msra.mxu0 0
        %3117 = vmatprep.subr.bf16.mxu0 0
        %3118 = vmatpush1.bf16.msra.mxu0 0
        %3119 = vmatprep.subr.bf16.mxu0 0
        %3120 = vmatpush1.bf16.msra.mxu0 0
        %3121 = vmatprep.subr.bf16.mxu0 0
        %3122 = vmatpush1.bf16.msra.mxu0 0
        %3123 = vmatprep.subr.bf16.mxu0 0
        %3124 = vmatpush1.bf16.msra.mxu0 0
        %3125 = vmatprep.subr.bf16.mxu0 0
        %3126 = vmatpush1.bf16.msra.mxu0 0
        %3127 = vmatprep.subr.bf16.mxu0 %v3101
        %3128 = vmatpush1.bf16.msra.mxu0 %v3100
        %3129 = vmatprep.subr.bf16.mxu0 0
        %3130 = vmatpush2.bf16.msra.mxu0 0
        %3131 = vmatprep.subr.bf16.mxu0 0
        %3132 = vmatpush2.bf16.msra.mxu0 0
        %3133 = vmatprep.subr.bf16.mxu0 0
        %3134 = vmatpush2.bf16.msra.mxu0 0
        %3135 = vmatprep.subr.bf16.mxu0 0
        %3136 = vmatpush2.bf16.msra.mxu0 0
        %3137 = vmatprep.subr.bf16.mxu0 0
        %3138 = vmatpush2.bf16.msra.mxu0 0
        %3139 = vmatprep.subr.bf16.mxu0 0
        %3140 = vmatpush2.bf16.msra.mxu0 0
        %3141 = vmatprep.subr.bf16.mxu0 0
        %3142 = vmatpush2.bf16.msra.mxu0 0
        %3143 = vmatprep.subr.bf16.mxu0 0
        %3144 = vmatpush2.bf16.msra.mxu0 0
        %3145 = vmatprep.mubr.bf16.mxu0 0
        %3146 = vmatmul.mubr.bf16.gmra.mxu0 %v3111
        %v3147 = vpop.f32.mrf.mxu0
        %v3148 = vadd.f32 0.0, %v3147
        %v3149 = vpop.f32.mrf.mxu0
        %v3150 = vadd.f32 0.0, %v3149
        %v3151 = vpop.f32.mrf.mxu0
        %v3152 = vadd.f32 0.0, %v3151
        %v3153 = vpop.f32.mrf.mxu0
        %v3154 = vadd.f32 0.0, %v3153
        %3155 = vdwg.mxu0
        %v3156 = vpack.c.bf16 %v3152, %v3148
        %v3157 = vpack.c.bf16 %v3154, %v3150
        %v3158 = vld [vmem:[%s8] sm:$0xf]
        %v3159 = vld [vmem:[%s8 + $0x4] sm:$0xf]
        %v3160 = vld [vmem:[%s8 + $0x8] sm:$0xf]
        %v3161 = vld [vmem:[%s8 + $0xc] sm:$0xf]
        %v3162 = vld [vmem:[%s8 + $0x10] sm:$0xf]
        %v3163 = vld [vmem:[%s8 + $0x14] sm:$0xf]
        %v3164 = vld [vmem:[%s8 + $0x18] sm:$0xf]
        %v3165 = vld [vmem:[%s8 + $0x1c] sm:$0xf]
        %v3166 = vld [vmem:[%s8 + $0x20] sm:$0xf]
        %v3167 = vld [vmem:[%s8 + $0x24] sm:$0xf]
        %v3168 = vld [vmem:[%s8 + $0x28] sm:$0xf]
        %v3169 = vld [vmem:[%s8 + $0x2c] sm:$0xf]
        %v3170 = vld [vmem:[%s8 + $0x30] sm:$0xf]
        %v3171 = vld [vmem:[%s8 + $0x34] sm:$0xf]
        %v3172 = vld [vmem:[%s8 + $0x38] sm:$0xf]
        %v3173 = vld [vmem:[%s8 + $0x3c] sm:$0xf]
        %v3174 = vld [vmem:[%s8 + $0x40] sm:$0xf]
        %v3175 = vld [vmem:[%s8 + $0x44] sm:$0xf]
        %v3176 = vld [vmem:[%s8 + $0x48] sm:$0xf]
        %v3177 = vld [vmem:[%s8 + $0x4c] sm:$0xf]
        %v3178 = vld [vmem:[%s8 + $0x50] sm:$0xf]
        %v3179 = vld [vmem:[%s8 + $0x54] sm:$0xf]
        %v3180 = vld [vmem:[%s8 + $0x58] sm:$0xf]
        %v3181 = vld [vmem:[%s8 + $0x5c] sm:$0xf]
        %v3182 = vld [vmem:[%s8 + $0x60] sm:$0xf]
        %v3183 = vld [vmem:[%s8 + $0x64] sm:$0xf]
        %v3184 = vld [vmem:[%s8 + $0x68] sm:$0xf]
        %v3185 = vld [vmem:[%s8 + $0x6c] sm:$0xf]
        %v3186 = vld [vmem:[%s8 + $0x70] sm:$0xf]
        %v3187 = vld [vmem:[%s8 + $0x74] sm:$0xf]
        %v3188 = vld [vmem:[%s8 + $0x78] sm:$0xf]
        %v3189 = vld [vmem:[%s8 + $0x7c] sm:$0xf]
        %s3190 = scalar_lea.vmem %s7, 8
        %v3191 = vld [vmem:[%s3190] sm:$0xf]
        %v3192 = vld [vmem:[%s3190 + $0x4] sm:$0xf]
        %v3195 = vunpack.c.l.b16 %v3191
        %v3196 = vunpack.c.l.b16 %v3192
        %v3197 = vpack.c.b16 %v3196, %v3195
        %v3199 = vsel %vm3109, %v3197, 0
        %3201 = vmatprep.subr.bf16.mxu0 0
        %3202 = vmatpush1.bf16.msra.mxu0 0
        %3203 = vmatprep.subr.bf16.mxu0 0
        %3204 = vmatpush1.bf16.msra.mxu0 0
        %3205 = vmatprep.subr.bf16.mxu0 0
        %3206 = vmatpush1.bf16.msra.mxu0 0
        %3207 = vmatprep.subr.bf16.mxu0 0
        %3208 = vmatpush1.bf16.msra.mxu0 0
        %3209 = vmatprep.subr.bf16.mxu0 0
        %3210 = vmatpush1.bf16.msra.mxu0 0
        %3211 = vmatprep.subr.bf16.mxu0 0
        %3212 = vmatpush1.bf16.msra.mxu0 0
        %3213 = vmatprep.subr.bf16.mxu0 0
        %3214 = vmatpush1.bf16.msra.mxu0 0
        %3215 = vmatprep.subr.bf16.mxu0 %v3101
        %3216 = vmatpush1.bf16.msra.mxu0 %v3100
        %3217 = vmatprep.subr.bf16.mxu0 0
        %3218 = vmatpush2.bf16.msra.mxu0 0
        %3219 = vmatprep.subr.bf16.mxu0 0
        %3220 = vmatpush2.bf16.msra.mxu0 0
        %3221 = vmatprep.subr.bf16.mxu0 0
        %3222 = vmatpush2.bf16.msra.mxu0 0
        %3223 = vmatprep.subr.bf16.mxu0 0
        %3224 = vmatpush2.bf16.msra.mxu0 0
        %3225 = vmatprep.subr.bf16.mxu0 0
        %3226 = vmatpush2.bf16.msra.mxu0 0
        %3227 = vmatprep.subr.bf16.mxu0 0
        %3228 = vmatpush2.bf16.msra.mxu0 0
        %3229 = vmatprep.subr.bf16.mxu0 0
        %3230 = vmatpush2.bf16.msra.mxu0 0
        %3231 = vmatprep.subr.bf16.mxu0 0
        %3232 = vmatpush2.bf16.msra.mxu0 0
        %3233 = vmatprep.mubr.bf16.mxu0 0
        %3234 = vmatmul.mubr.bf16.gmra.mxu0 %v3199
        %v3235 = vpop.f32.mrf.mxu0
        %v3236 = vadd.f32 0.0, %v3235
        %v3237 = vpop.f32.mrf.mxu0
        %v3238 = vadd.f32 0.0, %v3237
        %v3239 = vpop.f32.mrf.mxu0
        %v3240 = vadd.f32 0.0, %v3239
        %v3241 = vpop.f32.mrf.mxu0
        %v3242 = vadd.f32 0.0, %v3241
        %3243 = vdwg.mxu0
        %v3244 = vpack.c.bf16 %v3240, %v3236
        %v3245 = vpack.c.bf16 %v3242, %v3238
        %s3246 = scalar_lea.vmem %s8, 128
        %v3247 = vld [vmem:[%s3246] sm:$0xf]
        %v3248 = vld [vmem:[%s3246 + $0x4] sm:$0xf]
        %v3249 = vld [vmem:[%s3246 + $0x8] sm:$0xf]
        %v3250 = vld [vmem:[%s3246 + $0xc] sm:$0xf]
        %v3251 = vld [vmem:[%s3246 + $0x10] sm:$0xf]
        %v3252 = vld [vmem:[%s3246 + $0x14] sm:$0xf]
        %v3253 = vld [vmem:[%s3246 + $0x18] sm:$0xf]
        %v3254 = vld [vmem:[%s3246 + $0x1c] sm:$0xf]
        %v3255 = vld [vmem:[%s3246 + $0x20] sm:$0xf]
        %v3256 = vld [vmem:[%s3246 + $0x24] sm:$0xf]
        %v3257 = vld [vmem:[%s3246 + $0x28] sm:$0xf]
        %v3258 = vld [vmem:[%s3246 + $0x2c] sm:$0xf]
        %v3259 = vld [vmem:[%s3246 + $0x30] sm:$0xf]
        %v3260 = vld [vmem:[%s3246 + $0x34] sm:$0xf]
        %v3261 = vld [vmem:[%s3246 + $0x38] sm:$0xf]
        %v3262 = vld [vmem:[%s3246 + $0x3c] sm:$0xf]
        %v3263 = vld [vmem:[%s3246 + $0x40] sm:$0xf]
        %v3264 = vld [vmem:[%s3246 + $0x44] sm:$0xf]
        %v3265 = vld [vmem:[%s3246 + $0x48] sm:$0xf]
        %v3266 = vld [vmem:[%s3246 + $0x4c] sm:$0xf]
        %v3267 = vld [vmem:[%s3246 + $0x50] sm:$0xf]
        %v3268 = vld [vmem:[%s3246 + $0x54] sm:$0xf]
        %v3269 = vld [vmem:[%s3246 + $0x58] sm:$0xf]
        %v3270 = vld [vmem:[%s3246 + $0x5c] sm:$0xf]
        %v3271 = vld [vmem:[%s3246 + $0x60] sm:$0xf]
        %v3272 = vld [vmem:[%s3246 + $0x64] sm:$0xf]
        %v3273 = vld [vmem:[%s3246 + $0x68] sm:$0xf]
        %v3274 = vld [vmem:[%s3246 + $0x6c] sm:$0xf]
        %v3275 = vld [vmem:[%s3246 + $0x70] sm:$0xf]
        %v3276 = vld [vmem:[%s3246 + $0x74] sm:$0xf]
        %v3277 = vld [vmem:[%s3246 + $0x78] sm:$0xf]
        %v3278 = vld [vmem:[%s3246 + $0x7c] sm:$0xf]
        %v3311 = vunpack.c.l.b16 %v3247
        %v3312 = vunpack.c.l.b16 %v3248
        %v3313 = vunpack.c.l.b16 %v3249
        %v3314 = vunpack.c.l.b16 %v3250
        %v3315 = vunpack.c.l.b16 %v3251
        %v3316 = vunpack.c.l.b16 %v3252
        %v3317 = vunpack.c.l.b16 %v3253
        %v3318 = vunpack.c.l.b16 %v3254
        %v3319 = vunpack.c.l.b16 %v3255
        %v3320 = vunpack.c.l.b16 %v3256
        %v3321 = vunpack.c.l.b16 %v3257
        %v3322 = vunpack.c.l.b16 %v3258
        %v3323 = vunpack.c.l.b16 %v3259
        %v3324 = vunpack.c.l.b16 %v3260
        %v3325 = vunpack.c.l.b16 %v3261
        %v3326 = vunpack.c.l.b16 %v3262
        %v3327 = vunpack.c.l.b16 %v3263
        %v3328 = vunpack.c.l.b16 %v3264
        %v3329 = vunpack.c.l.b16 %v3265
        %v3330 = vunpack.c.l.b16 %v3266
        %v3331 = vunpack.c.l.b16 %v3267
        %v3332 = vunpack.c.l.b16 %v3268
        %v3333 = vunpack.c.l.b16 %v3269
        %v3334 = vunpack.c.l.b16 %v3270
        %v3335 = vunpack.c.l.b16 %v3271
        %v3336 = vunpack.c.l.b16 %v3272
        %v3337 = vunpack.c.l.b16 %v3273
        %v3338 = vunpack.c.l.b16 %v3274
        %v3339 = vunpack.c.l.b16 %v3275
        %v3340 = vunpack.c.l.b16 %v3276
        %v3341 = vunpack.c.l.b16 %v3277
        %v3342 = vunpack.c.l.b16 %v3278
        %v3343 = vpack.c.b16 %v3312, %v3311
        %v3344 = vpack.c.b16 %v3314, %v3313
        %v3345 = vpack.c.b16 %v3316, %v3315
        %v3346 = vpack.c.b16 %v3318, %v3317
        %v3347 = vpack.c.b16 %v3320, %v3319
        %v3348 = vpack.c.b16 %v3322, %v3321
        %v3349 = vpack.c.b16 %v3324, %v3323
        %v3350 = vpack.c.b16 %v3326, %v3325
        %v3351 = vpack.c.b16 %v3328, %v3327
        %v3352 = vpack.c.b16 %v3330, %v3329
        %v3353 = vpack.c.b16 %v3332, %v3331
        %v3354 = vpack.c.b16 %v3334, %v3333
        %v3355 = vpack.c.b16 %v3336, %v3335
        %v3356 = vpack.c.b16 %v3338, %v3337
        %v3357 = vpack.c.b16 %v3340, %v3339
        %v3358 = vpack.c.b16 %v3342, %v3341
        %3375 = vmatprep.subr.bf16.mxu0 0
        %3376 = vmatpush1.bf16.msra.mxu0 %v3350
        %3377 = vmatprep.subr.bf16.mxu0 0
        %3378 = vmatpush1.bf16.msra.mxu0 %v3349
        %3379 = vmatprep.subr.bf16.mxu0 0
        %3380 = vmatpush1.bf16.msra.mxu0 %v3348
        %3381 = vmatprep.subr.bf16.mxu0 0
        %3382 = vmatpush1.bf16.msra.mxu0 %v3347
        %3383 = vmatprep.subr.bf16.mxu0 0
        %3384 = vmatpush1.bf16.msra.mxu0 %v3346
        %3385 = vmatprep.subr.bf16.mxu0 0
        %3386 = vmatpush1.bf16.msra.mxu0 %v3345
        %3387 = vmatprep.subr.bf16.mxu0 0
        %3388 = vmatpush1.bf16.msra.mxu0 %v3344
        %3389 = vmatprep.subr.bf16.mxu0 0
        %3390 = vmatpush1.bf16.msra.mxu0 %v3343
        %3391 = vmatprep.subr.bf16.mxu0 0
        %3392 = vmatpush2.bf16.msra.mxu0 %v3358
        %3393 = vmatprep.subr.bf16.mxu0 0
        %3394 = vmatpush2.bf16.msra.mxu0 %v3357
        %3395 = vmatprep.subr.bf16.mxu0 0
        %3396 = vmatpush2.bf16.msra.mxu0 %v3356
        %3397 = vmatprep.subr.bf16.mxu0 0
        %3398 = vmatpush2.bf16.msra.mxu0 %v3355
        %3399 = vmatprep.subr.bf16.mxu0 0
        %3400 = vmatpush2.bf16.msra.mxu0 %v3354
        %3401 = vmatprep.subr.bf16.mxu0 0
        %3402 = vmatpush2.bf16.msra.mxu0 %v3353
        %3403 = vmatprep.subr.bf16.mxu0 0
        %3404 = vmatpush2.bf16.msra.mxu0 %v3352
        %3405 = vmatprep.subr.bf16.mxu0 0
        %3406 = vmatpush2.bf16.msra.mxu0 %v3351
        %3407 = vmatprep.mubr.bf16.mxu0 %v3245
        %3408 = vmatmul.mubr.bf16.gmra.mxu0 %v3244
        %v3409 = vpop.f32.mrf.mxu0
        %v3410 = vadd.f32 0.0, %v3409
        %v3411 = vpop.f32.mrf.mxu0
        %v3412 = vpop.f32.mrf.mxu0
        %v3413 = vadd.f32 0.0, %v3412
        %v3414 = vpop.f32.mrf.mxu0
        %3415 = vdwg.mxu0
        %v3448 = vunpack.c.l.b16 %v3158
        %v3449 = vunpack.c.l.b16 %v3159
        %v3450 = vunpack.c.l.b16 %v3160
        %v3451 = vunpack.c.l.b16 %v3161
        %v3452 = vunpack.c.l.b16 %v3162
        %v3453 = vunpack.c.l.b16 %v3163
        %v3454 = vunpack.c.l.b16 %v3164
        %v3455 = vunpack.c.l.b16 %v3165
        %v3456 = vunpack.c.l.b16 %v3166
        %v3457 = vunpack.c.l.b16 %v3167
        %v3458 = vunpack.c.l.b16 %v3168
        %v3459 = vunpack.c.l.b16 %v3169
        %v3460 = vunpack.c.l.b16 %v3170
        %v3461 = vunpack.c.l.b16 %v3171
        %v3462 = vunpack.c.l.b16 %v3172
        %v3463 = vunpack.c.l.b16 %v3173
        %v3464 = vunpack.c.l.b16 %v3174
        %v3465 = vunpack.c.l.b16 %v3175
        %v3466 = vunpack.c.l.b16 %v3176
        %v3467 = vunpack.c.l.b16 %v3177
        %v3468 = vunpack.c.l.b16 %v3178
        %v3469 = vunpack.c.l.b16 %v3179
        %v3470 = vunpack.c.l.b16 %v3180
        %v3471 = vunpack.c.l.b16 %v3181
        %v3472 = vunpack.c.l.b16 %v3182
        %v3473 = vunpack.c.l.b16 %v3183
        %v3474 = vunpack.c.l.b16 %v3184
        %v3475 = vunpack.c.l.b16 %v3185
        %v3476 = vunpack.c.l.b16 %v3186
        %v3477 = vunpack.c.l.b16 %v3187
        %v3478 = vunpack.c.l.b16 %v3188
        %v3479 = vunpack.c.l.b16 %v3189
        %v3480 = vpack.c.b16 %v3449, %v3448
        %v3481 = vpack.c.b16 %v3451, %v3450
        %v3482 = vpack.c.b16 %v3453, %v3452
        %v3483 = vpack.c.b16 %v3455, %v3454
        %v3484 = vpack.c.b16 %v3457, %v3456
        %v3485 = vpack.c.b16 %v3459, %v3458
        %v3486 = vpack.c.b16 %v3461, %v3460
        %v3487 = vpack.c.b16 %v3463, %v3462
        %v3488 = vpack.c.b16 %v3465, %v3464
        %v3489 = vpack.c.b16 %v3467, %v3466
        %v3490 = vpack.c.b16 %v3469, %v3468
        %v3491 = vpack.c.b16 %v3471, %v3470
        %v3492 = vpack.c.b16 %v3473, %v3472
        %v3493 = vpack.c.b16 %v3475, %v3474
        %v3494 = vpack.c.b16 %v3477, %v3476
        %v3495 = vpack.c.b16 %v3479, %v3478
        %3512 = vmatprep.subr.bf16.mxu0 0
        %3513 = vmatpush1.bf16.msra.mxu0 %v3487
        %3514 = vmatprep.subr.bf16.mxu0 0
        %3515 = vmatpush1.bf16.msra.mxu0 %v3486
        %3516 = vmatprep.subr.bf16.mxu0 0
        %3517 = vmatpush1.bf16.msra.mxu0 %v3485
        %3518 = vmatprep.subr.bf16.mxu0 0
        %3519 = vmatpush1.bf16.msra.mxu0 %v3484
        %3520 = vmatprep.subr.bf16.mxu0 0
        %3521 = vmatpush1.bf16.msra.mxu0 %v3483
        %3522 = vmatprep.subr.bf16.mxu0 0
        %3523 = vmatpush1.bf16.msra.mxu0 %v3482
        %3524 = vmatprep.subr.bf16.mxu0 0
        %3525 = vmatpush1.bf16.msra.mxu0 %v3481
        %3526 = vmatprep.subr.bf16.mxu0 0
        %3527 = vmatpush1.bf16.msra.mxu0 %v3480
        %3528 = vmatprep.subr.bf16.mxu0 0
        %3529 = vmatpush2.bf16.msra.mxu0 %v3495
        %3530 = vmatprep.subr.bf16.mxu0 0
        %3531 = vmatpush2.bf16.msra.mxu0 %v3494
        %3532 = vmatprep.subr.bf16.mxu0 0
        %3533 = vmatpush2.bf16.msra.mxu0 %v3493
        %3534 = vmatprep.subr.bf16.mxu0 0
        %3535 = vmatpush2.bf16.msra.mxu0 %v3492
        %3536 = vmatprep.subr.bf16.mxu0 0
        %3537 = vmatpush2.bf16.msra.mxu0 %v3491
        %3538 = vmatprep.subr.bf16.mxu0 0
        %3539 = vmatpush2.bf16.msra.mxu0 %v3490
        %3540 = vmatprep.subr.bf16.mxu0 0
        %3541 = vmatpush2.bf16.msra.mxu0 %v3489
        %3542 = vmatprep.subr.bf16.mxu0 0
        %3543 = vmatpush2.bf16.msra.mxu0 %v3488
        %3544 = vmatprep.mubr.bf16.mxu0 %v3157
        %3545 = vmatmul.mubr.bf16.gmra.mxu0 %v3156
        %v3546 = vpop.f32.mrf.mxu0
        %v3547 = vadd.f32 %v3410, %v3546
        %v3548 = vpop.f32.mrf.mxu0
        %v3549 = vpop.f32.mrf.mxu0
        %v3550 = vadd.f32 %v3413, %v3549
        %v3551 = vpop.f32.mrf.mxu0
        %3552 = vdwg.mxu0
        %s3553 = scalar_lea.vmem %s7, 16
        %v3554 = vld [vmem:[%s3553] sm:$0xf]
        %v3555 = vld [vmem:[%s3553 + $0x4] sm:$0xf]
        %v3558 = vunpack.c.l.b16 %v3554
        %v3559 = vunpack.c.l.b16 %v3555
        %v3560 = vpack.c.b16 %v3559, %v3558
        %v3562 = vsel %vm3109, %v3560, 0
        %3564 = vmatprep.subr.bf16.mxu0 0
        %3565 = vmatpush1.bf16.msra.mxu0 0
        %3566 = vmatprep.subr.bf16.mxu0 0
        %3567 = vmatpush1.bf16.msra.mxu0 0
        %3568 = vmatprep.subr.bf16.mxu0 0
        %3569 = vmatpush1.bf16.msra.mxu0 0
        %3570 = vmatprep.subr.bf16.mxu0 0
        %3571 = vmatpush1.bf16.msra.mxu0 0
        %3572 = vmatprep.subr.bf16.mxu0 0
        %3573 = vmatpush1.bf16.msra.mxu0 0
        %3574 = vmatprep.subr.bf16.mxu0 0
        %3575 = vmatpush1.bf16.msra.mxu0 0
        %3576 = vmatprep.subr.bf16.mxu0 0
        %3577 = vmatpush1.bf16.msra.mxu0 0
        %3578 = vmatprep.subr.bf16.mxu0 %v3101
        %3579 = vmatpush1.bf16.msra.mxu0 %v3100
        %3580 = vmatprep.subr.bf16.mxu0 0
        %3581 = vmatpush2.bf16.msra.mxu0 0
        %3582 = vmatprep.subr.bf16.mxu0 0
        %3583 = vmatpush2.bf16.msra.mxu0 0
        %3584 = vmatprep.subr.bf16.mxu0 0
        %3585 = vmatpush2.bf16.msra.mxu0 0
        %3586 = vmatprep.subr.bf16.mxu0 0
        %3587 = vmatpush2.bf16.msra.mxu0 0
        %3588 = vmatprep.subr.bf16.mxu0 0
        %3589 = vmatpush2.bf16.msra.mxu0 0
        %3590 = vmatprep.subr.bf16.mxu0 0
        %3591 = vmatpush2.bf16.msra.mxu0 0
        %3592 = vmatprep.subr.bf16.mxu0 0
        %3593 = vmatpush2.bf16.msra.mxu0 0
        %3594 = vmatprep.subr.bf16.mxu0 0
        %3595 = vmatpush2.bf16.msra.mxu0 0
        %3596 = vmatprep.mubr.bf16.mxu0 0
        %3597 = vmatmul.mubr.bf16.gmra.mxu0 %v3562
        %v3598 = vpop.f32.mrf.mxu0
        %v3599 = vadd.f32 0.0, %v3598
        %v3600 = vpop.f32.mrf.mxu0
        %v3601 = vadd.f32 0.0, %v3600
        %v3602 = vpop.f32.mrf.mxu0
        %v3603 = vadd.f32 0.0, %v3602
        %v3604 = vpop.f32.mrf.mxu0
        %v3605 = vadd.f32 0.0, %v3604
        %3606 = vdwg.mxu0
        %v3607 = vpack.c.bf16 %v3603, %v3599
        %v3608 = vpack.c.bf16 %v3605, %v3601
        %s3609 = scalar_lea.vmem %s8, 256
        %v3610 = vld [vmem:[%s3609] sm:$0xf]
        %v3611 = vld [vmem:[%s3609 + $0x4] sm:$0xf]
        %v3612 = vld [vmem:[%s3609 + $0x8] sm:$0xf]
        %v3613 = vld [vmem:[%s3609 + $0xc] sm:$0xf]
        %v3614 = vld [vmem:[%s3609 + $0x10] sm:$0xf]
        %v3615 = vld [vmem:[%s3609 + $0x14] sm:$0xf]
        %v3616 = vld [vmem:[%s3609 + $0x18] sm:$0xf]
        %v3617 = vld [vmem:[%s3609 + $0x1c] sm:$0xf]
        %v3618 = vld [vmem:[%s3609 + $0x20] sm:$0xf]
        %v3619 = vld [vmem:[%s3609 + $0x24] sm:$0xf]
        %v3620 = vld [vmem:[%s3609 + $0x28] sm:$0xf]
        %v3621 = vld [vmem:[%s3609 + $0x2c] sm:$0xf]
        %v3622 = vld [vmem:[%s3609 + $0x30] sm:$0xf]
        %v3623 = vld [vmem:[%s3609 + $0x34] sm:$0xf]
        %v3624 = vld [vmem:[%s3609 + $0x38] sm:$0xf]
        %v3625 = vld [vmem:[%s3609 + $0x3c] sm:$0xf]
        %v3626 = vld [vmem:[%s3609 + $0x40] sm:$0xf]
        %v3627 = vld [vmem:[%s3609 + $0x44] sm:$0xf]
        %v3628 = vld [vmem:[%s3609 + $0x48] sm:$0xf]
        %v3629 = vld [vmem:[%s3609 + $0x4c] sm:$0xf]
        %v3630 = vld [vmem:[%s3609 + $0x50] sm:$0xf]
        %v3631 = vld [vmem:[%s3609 + $0x54] sm:$0xf]
        %v3632 = vld [vmem:[%s3609 + $0x58] sm:$0xf]
        %v3633 = vld [vmem:[%s3609 + $0x5c] sm:$0xf]
        %v3634 = vld [vmem:[%s3609 + $0x60] sm:$0xf]
        %v3635 = vld [vmem:[%s3609 + $0x64] sm:$0xf]
        %v3636 = vld [vmem:[%s3609 + $0x68] sm:$0xf]
        %v3637 = vld [vmem:[%s3609 + $0x6c] sm:$0xf]
        %v3638 = vld [vmem:[%s3609 + $0x70] sm:$0xf]
        %v3639 = vld [vmem:[%s3609 + $0x74] sm:$0xf]
        %v3640 = vld [vmem:[%s3609 + $0x78] sm:$0xf]
        %v3641 = vld [vmem:[%s3609 + $0x7c] sm:$0xf]
        %v3674 = vunpack.c.l.b16 %v3610
        %v3675 = vunpack.c.l.b16 %v3611
        %v3676 = vunpack.c.l.b16 %v3612
        %v3677 = vunpack.c.l.b16 %v3613
        %v3678 = vunpack.c.l.b16 %v3614
        %v3679 = vunpack.c.l.b16 %v3615
        %v3680 = vunpack.c.l.b16 %v3616
        %v3681 = vunpack.c.l.b16 %v3617
        %v3682 = vunpack.c.l.b16 %v3618
        %v3683 = vunpack.c.l.b16 %v3619
        %v3684 = vunpack.c.l.b16 %v3620
        %v3685 = vunpack.c.l.b16 %v3621
        %v3686 = vunpack.c.l.b16 %v3622
        %v3687 = vunpack.c.l.b16 %v3623
        %v3688 = vunpack.c.l.b16 %v3624
        %v3689 = vunpack.c.l.b16 %v3625
        %v3690 = vunpack.c.l.b16 %v3626
        %v3691 = vunpack.c.l.b16 %v3627
        %v3692 = vunpack.c.l.b16 %v3628
        %v3693 = vunpack.c.l.b16 %v3629
        %v3694 = vunpack.c.l.b16 %v3630
        %v3695 = vunpack.c.l.b16 %v3631
        %v3696 = vunpack.c.l.b16 %v3632
        %v3697 = vunpack.c.l.b16 %v3633
        %v3698 = vunpack.c.l.b16 %v3634
        %v3699 = vunpack.c.l.b16 %v3635
        %v3700 = vunpack.c.l.b16 %v3636
        %v3701 = vunpack.c.l.b16 %v3637
        %v3702 = vunpack.c.l.b16 %v3638
        %v3703 = vunpack.c.l.b16 %v3639
        %v3704 = vunpack.c.l.b16 %v3640
        %v3705 = vunpack.c.l.b16 %v3641
        %v3706 = vpack.c.b16 %v3675, %v3674
        %v3707 = vpack.c.b16 %v3677, %v3676
        %v3708 = vpack.c.b16 %v3679, %v3678
        %v3709 = vpack.c.b16 %v3681, %v3680
        %v3710 = vpack.c.b16 %v3683, %v3682
        %v3711 = vpack.c.b16 %v3685, %v3684
        %v3712 = vpack.c.b16 %v3687, %v3686
        %v3713 = vpack.c.b16 %v3689, %v3688
        %v3714 = vpack.c.b16 %v3691, %v3690
        %v3715 = vpack.c.b16 %v3693, %v3692
        %v3716 = vpack.c.b16 %v3695, %v3694
        %v3717 = vpack.c.b16 %v3697, %v3696
        %v3718 = vpack.c.b16 %v3699, %v3698
        %v3719 = vpack.c.b16 %v3701, %v3700
        %v3720 = vpack.c.b16 %v3703, %v3702
        %v3721 = vpack.c.b16 %v3705, %v3704
        %3738 = vmatprep.subr.bf16.mxu0 0
        %3739 = vmatpush1.bf16.msra.mxu0 %v3713
        %3740 = vmatprep.subr.bf16.mxu0 0
        %3741 = vmatpush1.bf16.msra.mxu0 %v3712
        %3742 = vmatprep.subr.bf16.mxu0 0
        %3743 = vmatpush1.bf16.msra.mxu0 %v3711
        %3744 = vmatprep.subr.bf16.mxu0 0
        %3745 = vmatpush1.bf16.msra.mxu0 %v3710
        %3746 = vmatprep.subr.bf16.mxu0 0
        %3747 = vmatpush1.bf16.msra.mxu0 %v3709
        %3748 = vmatprep.subr.bf16.mxu0 0
        %3749 = vmatpush1.bf16.msra.mxu0 %v3708
        %3750 = vmatprep.subr.bf16.mxu0 0
        %3751 = vmatpush1.bf16.msra.mxu0 %v3707
        %3752 = vmatprep.subr.bf16.mxu0 0
        %3753 = vmatpush1.bf16.msra.mxu0 %v3706
        %3754 = vmatprep.subr.bf16.mxu0 0
        %3755 = vmatpush2.bf16.msra.mxu0 %v3721
        %3756 = vmatprep.subr.bf16.mxu0 0
        %3757 = vmatpush2.bf16.msra.mxu0 %v3720
        %3758 = vmatprep.subr.bf16.mxu0 0
        %3759 = vmatpush2.bf16.msra.mxu0 %v3719
        %3760 = vmatprep.subr.bf16.mxu0 0
        %3761 = vmatpush2.bf16.msra.mxu0 %v3718
        %3762 = vmatprep.subr.bf16.mxu0 0
        %3763 = vmatpush2.bf16.msra.mxu0 %v3717
        %3764 = vmatprep.subr.bf16.mxu0 0
        %3765 = vmatpush2.bf16.msra.mxu0 %v3716
        %3766 = vmatprep.subr.bf16.mxu0 0
        %3767 = vmatpush2.bf16.msra.mxu0 %v3715
        %3768 = vmatprep.subr.bf16.mxu0 0
        %3769 = vmatpush2.bf16.msra.mxu0 %v3714
        %3770 = vmatprep.mubr.bf16.mxu0 %v3608
        %3771 = vmatmul.mubr.bf16.gmra.mxu0 %v3607
        %v3772 = vpop.f32.mrf.mxu0
        %v3773 = vadd.f32 0.0, %v3772
        %v3774 = vpop.f32.mrf.mxu0
        %v3775 = vpop.f32.mrf.mxu0
        %v3776 = vadd.f32 0.0, %v3775
        %v3777 = vpop.f32.mrf.mxu0
        %3778 = vdwg.mxu0
        %v3779 = vadd.f32 %v3547, %v3773
        %v3780 = vadd.f32 %v3550, %v3776
        %v3781 = vld [vmem:[%s9] sm:$0x1]
        %v3783 = vlaneseq
        %v3784 = vshrl.u32 %v3783, 7
        %v3785 = vsub.s32 0, %v3784
        %v3786 = vrot.slane %v3781, %v3785
        %v3788 = vadd.f32 %v3779, %v3786
        %v3789 = vadd.f32 %v3780, %v3786
        %v3790 = vpack.c.bf16 %v3789, %v3788
        %v3792 = vunpack.c.l.b16 %v3790
        %v3793 = vunpack.c.h.b16 %v3790
        %v3794 = vpack.c.b16 %v3792, %v3792
        %v3795 = vpack.c.b16 %v3793, %v3793
        %vm3798 = vcmask 257024
        %3799 = vst.msk [vmem:[%s368] sm:$0xf] %vm3798, %v3794
        %3800 = vst.msk [vmem:[%s368 + $0x4] sm:$0xf] %vm3798, %v3795
        %s3801 = sand.u32 %s248, 1
        %s3802 = scalar_lea.sflag [#allocation4], %s3801
        %s3803 = sand.u32 %s248, 1
        %s3804 = smul.addr %s3803, 8
        %s3805 = scalar_lea.vmem [#allocation5], %s3804
        // Predicated region
        $region65: #{tpu_custom_call.1} parent=59 // pred_check
          %p3806 = pneg %p258
        $region66: #{tpu_custom_call.1} parent=59 // pred_check_branch
          %3808 = sbr.rel (%p3806) target = $region68
        $region67: #{tpu_custom_call.1} parent=59 // pred_region
          %s3809 = smul.u32 2, %s25
          %s3811 = ssub.s32 128, 128
          %3812 = vsyncadd %s3802, %s3811
          %s3813 = smul.addr %s3809, 64
          %s3814 = scalar_lea.hbm %s10, %s3813
          %s3815 = sshll.u32 %s3805, 4
          %s3816 = int_to_ptr.vmem [resolvable:$true] %s3815
          %3821 = dma.vmem_to_hbm [thread:$0]  %s3816, 128, %s3814, %s3802, 64, 64, 4
        $region68: #{tpu_custom_call.1} parent=59 // pred_fallthru
          _
      $region60: #{tpu_custom_call.1} parent=5 // pred_fallthru
        _
      %p3822 = scmp.le.s32.totalorder 2, %s20
      // Predicated region
      $region69: #{tpu_custom_call.1} parent=5 // pred_check
        %p3823 = pneg %p3822
      $region70: #{tpu_custom_call.1} parent=5 // pred_check_branch
        %3825 = sbr.rel (%p3823) target = $region72
      $region71: #{tpu_custom_call.1} parent=5 // pred_region
        %s3826 = ssub.s32 %s20, 2
        // Predicated region
        $region73: #{tpu_custom_call.1} parent=71 // pred_check
          %p3827 = pneg %p264
        $region74: #{tpu_custom_call.1} parent=71 // pred_check_branch
          %3829 = sbr.rel (%p3827) target = $region76
        $region75: #{tpu_custom_call.1} parent=71 // pred_region
          %s3830 = sand.u32 %s249, 1
          %s3831 = scalar_lea.sflag [#allocation4], %s3830
          %s3832 = sand.u32 %s249, 1
          %s3833 = smul.addr %s3832, 8
          %s3834 = scalar_lea.vmem [#allocation5], %s3833
          %3835 = dma.done %s3831, 128
        $region76: #{tpu_custom_call.1} parent=71 // pred_fallthru
          _
      $region72: #{tpu_custom_call.1} parent=5 // pred_fallthru
        _
    $region6: #{tpu_custom_call.1} parent=1 // loop_footer
      %s24 = sadd.s32 1, %s20
    $region7: #{tpu_custom_call.1} parent=1 // loop_footer_branch
      %19 = sbr.rel target = $region3
    $region8: #{tpu_custom_call.1} parent=1 // loop_exit
      _
    %3836 = vsyncpa [#allocation3], 1
    %s3837 = scalar_lea.sflag [#allocation3], 1
    %3838 = vsyncpa %s3837, 1
    %3839 = vsyncpa [#allocation4], 1
    %s3840 = scalar_lea.sflag [#allocation4], 1
    %3841 = vsyncpa %s3840, 1

</llo_original>
